<compile_context>
chip_gen: v5e
topology: v5e:2x2
jax: 0.10.0
libtpu: 0.0.40
codegen_flags: <defaults>
</compile_context>

<pallas_src>
import functools

import jax
import jax.numpy as jnp
from jax import lax
from jax.experimental import pallas as pl
from jax.experimental.pallas import tpu as pltpu


def _upconv_block_kernel(*refs, H, W, K, layer_cins, Cout, up_scale):
    # refs layout:
    #   x_ref                                (1, H, W, Cin)
    #   [w_flat_ref, b_ref] * nb_layers      (K*K*cin_l, Cout), (1, Cout)
    #   scale_ref, shift_ref                 (1, Cout) each  (folded BatchNorm affine)
    #   o_ref                                (1, H, up^2 * W * Cout)   lane-dense output
    #   xpad0_ref                            (Hp, Wp, Cin)   VMEM scratch (layer-0 input, padded)
    #   xpad1_ref                            (Hp, Wp, Cout)  VMEM scratch (inter-layer act, padded)
    nb_layers = len(layer_cins)
    x_ref = refs[0]
    scale_ref = refs[1 + 2 * nb_layers]
    shift_ref = refs[2 + 2 * nb_layers]
    o_ref = refs[3 + 2 * nb_layers]
    xpad0_ref = refs[4 + 2 * nb_layers]
    xpad1_ref = refs[5 + 2 * nb_layers]

    pad = (K - 1) // 2

    # In-kernel "SAME" padding: zero the halo, stage the input interior in VMEM.
    xpad0_ref[...] = jnp.zeros_like(xpad0_ref)
    xpad0_ref[pad:pad + H, pad:pad + W, :] = x_ref[0]
    if nb_layers > 1:
        xpad1_ref[...] = jnp.zeros_like(xpad1_ref)

    y = None
    for layer in range(nb_layers):
        cin = layer_cins[layer]
        w_ref = refs[1 + 2 * layer]     # (K*K*cin, Cout)
        b_ref = refs[2 + 2 * layer]     # (1, Cout)
        src = xpad0_ref if layer == 0 else xpad1_ref

        # Single im2col contraction per layer: concat the K*K shifted views once and do
        # one (H*W, K*K*cin) @ (K*K*cin, Cout) matmul (amortizes MXU push/drain).
        cols = []
        for kh in range(K):
            for kw in range(K):
                cols.append(src[kh:kh + H, kw:kw + W, :].reshape(H * W, cin))
        patch = jnp.concatenate(cols, axis=-1)                           # (H*W, K*K*cin)
        acc = jnp.dot(patch, w_ref[...], preferred_element_type=jnp.float32)
        y = jnp.maximum(acc + b_ref[...], 0.0)                           # bias + ReLU (f32)

        if layer == nb_layers - 1:
            y = y * scale_ref[...] + shift_ref[...]                      # fused BatchNorm2d (inference)
        else:
            # Keep the intermediate activation resident in VMEM for the next layer.
            xpad1_ref[pad:pad + H, pad:pad + W, :] = y.reshape(H, W, Cout)
        # TODO(synk): nn.Dropout after even layers runs as eval-mode identity (no masking).

    # Fused nearest-neighbor upsample (x up_scale) + lane-dense store.
    # Column replication: (H, W, Cout) -> (H, W, S*Cout) -> (H, S*W*Cout)
    # Row replication:    (H, S*W*Cout) -> (H, S*S*W*Cout); wrapper reshapes to (S*H, S*W, Cout).
    y3 = y.reshape(H, W, Cout)
    slab = jnp.concatenate([y3] * up_scale, axis=-1).reshape(H, up_scale * W * Cout)
    full = jnp.concatenate([slab] * up_scale, axis=-1)                   # (H, S*S*W*Cout)
    o_ref[0] = full.astype(o_ref.dtype)


def upconv_block_forward_nhwc(x_nhwc, conv_params, bn_params, up_scale=2, eps=1e-5):
    """Fused UpConvBlock forward in NHWC (preferred model-facing layout)."""
    N, H, W, Cin = x_nhwc.shape
    K = conv_params[0][0].shape[0]
    Cout = conv_params[0][0].shape[-1]
    assert K % 2 == 1, "symmetric SAME-padding fold assumes odd k_size"
    nb_layers = len(conv_params)
    S = up_scale
    pad = (K - 1) // 2
    Hp, Wp = H + 2 * pad, W + 2 * pad

    gamma, beta, mean, var = bn_params
    bn_scale = gamma / jnp.sqrt(var + eps)
    bn_shift = beta - mean * bn_scale

    layer_cins = tuple(w.shape[2] for (w, _) in conv_params)

    flat_inputs = [x_nhwc]
    in_specs = [pl.BlockSpec((1, H, W, Cin), lambda n: (n, 0, 0, 0))]
    for (w, b) in conv_params:
        cin_l = w.shape[2]
        flat_inputs.append(w.reshape(K * K * cin_l, Cout))   # (kh, kw, cin) row-major == im2col order
        flat_inputs.append(b.reshape(1, Cout))
        in_specs.append(pl.BlockSpec((K * K * cin_l, Cout), lambda n: (0, 0)))
        in_specs.append(pl.BlockSpec((1, Cout), lambda n: (0, 0)))
    flat_inputs.append(bn_scale.reshape(1, Cout))
    flat_inputs.append(bn_shift.reshape(1, Cout))
    in_specs.append(pl.BlockSpec((1, Cout), lambda n: (0, 0)))
    in_specs.append(pl.BlockSpec((1, Cout), lambda n: (0, 0)))

    kernel = functools.partial(_upconv_block_kernel, H=H, W=W, K=K,
                               layer_cins=layer_cins, Cout=Cout, up_scale=S)

    out = pl.pallas_call(
        kernel,
        out_shape=jax.ShapeDtypeStruct((N, H, S * S * W * Cout), jnp.float32),
        grid_spec=pltpu.PrefetchScalarGridSpec(
            num_scalar_prefetch=0,
            grid=(N,),
            in_specs=in_specs,
            out_specs=pl.BlockSpec((1, H, S * S * W * Cout), lambda n: (n, 0, 0)),
            scratch_shapes=[
                pltpu.VMEM((Hp, Wp, Cin), jnp.float32),
                pltpu.VMEM((Hp, Wp, Cout), jnp.float32),
            ],
        ),
        compiler_params=pltpu.CompilerParams(dimension_semantics=("parallel",)),
    )(*flat_inputs)

    # (N, H, S, S*W, Cout) row-major == (N, S*H, S*W, Cout): pure metadata reshape.
    return out.reshape(N, S * H, S * W, Cout)


def upconv_block_forward(x_nchw, conv_params, bn_params, up_scale=2, eps=1e-5):
    # PyTorch-layout convenience wrapper (demo only; keep surrounding model NHWC in production).
    x = jnp.transpose(x_nchw, (0, 2, 3, 1))
    y = upconv_block_forward_nhwc(x, conv_params, bn_params, up_scale=up_scale, eps=eps)
    return jnp.transpose(y, (0, 3, 1, 2))


def init_params(key, in_features, out_features, k_size, nb_layers):
    conv_params = []
    for i in range(nb_layers):
        cin = in_features if i == 0 else out_features
        key, kw_, kb_ = jax.random.split(key, 3)
        fan_in = cin * k_size * k_size
        w = jax.random.normal(kw_, (k_size, k_size, cin, out_features),
                              jnp.float32) / jnp.sqrt(fan_in)
        b = 0.01 * jax.random.normal(kb_, (out_features,), jnp.float32)
        conv_params.append((w, b))
    key, kg, kb2, km, kv = jax.random.split(key, 5)
    gamma = 1.0 + 0.1 * jax.random.normal(kg, (out_features,), jnp.float32)
    beta = 0.1 * jax.random.normal(kb2, (out_features,), jnp.float32)
    run_mean = 0.1 * jax.random.normal(km, (out_features,), jnp.float32)
    run_var = jnp.abs(1.0 + 0.1 * jax.random.normal(kv, (out_features,), jnp.float32))
    return conv_params, (gamma, beta, run_mean, run_var)


def reference_forward(x_nchw, conv_params, bn_params, up_scale=2, eps=1e-5):
    x = jnp.transpose(x_nchw, (0, 2, 3, 1))
    gamma, beta, mean, var = bn_params
    n = len(conv_params)
    for i, (w, b) in enumerate(conv_params):
        x = lax.conv_general_dilated(x, w, (1, 1), "SAME",
                                     dimension_numbers=("NHWC", "HWIO", "NHWC"))
        x = jnp.maximum(x + b, 0.0)
        if i == n - 1:
            x = (x - mean) / jnp.sqrt(var + eps) * gamma + beta
    x = jnp.repeat(jnp.repeat(x, up_scale, axis=1), up_scale, axis=2)
    return jnp.transpose(x, (0, 3, 1, 2))


if __name__ == "__main__":
    key = jax.random.PRNGKey(0)
    k_in, k_par = jax.random.split(key)

    # UpConvBlock(in_features=4, out_features=8, k_size=3, nb_layers=2,
    #             upsample=True, up_scale=2, batch_norm=True, dropout_p=0.2)
    N, Cin, Hs, Ws = 2, 4, 16, 16
    Cout, K, nb_layers, up_scale = 8, 3, 2, 2

    x = jax.random.normal(k_in, (N, Cin, Hs, Ws), jnp.float32)   # NCHW like PyTorch
    conv_params, bn_params = init_params(k_par, Cin, Cout, K, nb_layers)

    out = upconv_block_forward(x, conv_params, bn_params, up_scale=up_scale)
    out = jax.block_until_ready(out)

    ref = reference_forward(x, conv_params, bn_params, up_scale=up_scale)
    assert out.shape == (N, Cout, Hs * up_scale, Ws * up_scale), out.shape
    assert jnp.allclose(out, ref, rtol=2e-2, atol=2e-2), float(jnp.max(jnp.abs(out - ref)))

    print("KERNEL_OK")
</pallas_src>

<mosaic_0001>
module attributes {stable_mosaic.version = 11 : i64} {
  func.func @_upconv_block_kernel(%arg0: i32, %arg1: memref<1x16x16x4xf32, #tpu.memory_space<vmem>>, %arg2: memref<36x8xf32, #tpu.memory_space<vmem>>, %arg3: memref<1x8xf32, #tpu.memory_space<vmem>>, %arg4: memref<72x8xf32, #tpu.memory_space<vmem>>, %arg5: memref<1x8xf32, #tpu.memory_space<vmem>>, %arg6: memref<1x8xf32, #tpu.memory_space<vmem>>, %arg7: memref<1x8xf32, #tpu.memory_space<vmem>>, %arg8: memref<1x16x512xf32, #tpu.memory_space<vmem>>, %arg9: memref<18x18x4xf32, #tpu.memory_space<vmem>>, %arg10: memref<18x18x8xf32, #tpu.memory_space<vmem>>) attributes {dimension_semantics = [#tpu.dimension_semantics<parallel>], iteration_bounds = array<i64: 2>, scalar_prefetch = 0 : i64, scratch_operands = 2 : i64, tpu.core_type = #tpu.core_type<tc>, window_params = [{transform_indices = @transform_0, window_bounds = array<i64: 1, 16, 16, 4>}, {pipeline_mode = #tpu.pipeline_mode<synchronous>, transform_indices = @transform_1, window_bounds = array<i64: 36, 8>}, {pipeline_mode = #tpu.pipeline_mode<synchronous>, transform_indices = @transform_2, window_bounds = array<i64: 1, 8>}, {pipeline_mode = #tpu.pipeline_mode<synchronous>, transform_indices = @transform_3, window_bounds = array<i64: 72, 8>}, {pipeline_mode = #tpu.pipeline_mode<synchronous>, transform_indices = @transform_4, window_bounds = array<i64: 1, 8>}, {pipeline_mode = #tpu.pipeline_mode<synchronous>, transform_indices = @transform_5, window_bounds = array<i64: 1, 8>}, {pipeline_mode = #tpu.pipeline_mode<synchronous>, transform_indices = @transform_6, window_bounds = array<i64: 1, 8>}, {transform_indices = @transform_7, window_bounds = array<i64: 1, 16, 512>}]} {
    %cst = arith.constant 0.000000e+00 : f32
    %0 = vector.broadcast %cst : f32 to vector<18x18x4xf32>
    %c0 = arith.constant 0 : index
    %c0_0 = arith.constant 0 : index
    %c0_1 = arith.constant 0 : index
    %1 = vector.load %arg9[%c0, %c0_0, %c0_1] : memref<18x18x4xf32, #tpu.memory_space<vmem>>, vector<18x18x4xf32>
    tpu.vector_store %arg9[%c0, %c0_0, %c0_1], %0 {strides = array<i32>} : memref<18x18x4xf32, #tpu.memory_space<vmem>>, vector<18x18x4xf32>,
    %c0_2 = arith.constant 0 : index
    %c0_3 = arith.constant 0 : index
    %c0_4 = arith.constant 0 : index
    %c0_5 = arith.constant 0 : index
    %2 = vector.load %arg1[%c0_2, %c0_3, %c0_4, %c0_5] : memref<1x16x16x4xf32, #tpu.memory_space<vmem>>, vector<1x16x16x4xf32>
    %3 = vector.shape_cast %2 : vector<1x16x16x4xf32> to vector<16x16x4xf32>
    %c1 = arith.constant 1 : index
    %c1_6 = arith.constant 1 : index
    %c0_7 = arith.constant 0 : index
    %4 = vector.load %arg9[%c1, %c1_6, %c0_7] : memref<18x18x4xf32, #tpu.memory_space<vmem>>, vector<16x16x4xf32>
    tpu.vector_store %arg9[%c1, %c1_6, %c0_7], %3 {strides = array<i32>} : memref<18x18x4xf32, #tpu.memory_space<vmem>>, vector<16x16x4xf32>,
    %cst_8 = arith.constant 0.000000e+00 : f32
    %5 = vector.broadcast %cst_8 : f32 to vector<18x18x8xf32>
    %c0_9 = arith.constant 0 : index
    %c0_10 = arith.constant 0 : index
    %c0_11 = arith.constant 0 : index
    %6 = vector.load %arg10[%c0_9, %c0_10, %c0_11] : memref<18x18x8xf32, #tpu.memory_space<vmem>>, vector<18x18x8xf32>
    tpu.vector_store %arg10[%c0_9, %c0_10, %c0_11], %5 {strides = array<i32>} : memref<18x18x8xf32, #tpu.memory_space<vmem>>, vector<18x18x8xf32>,
    %c0_12 = arith.constant 0 : index
    %c0_13 = arith.constant 0 : index
    %c0_14 = arith.constant 0 : index
    %7 = vector.load %arg9[%c0_12, %c0_13, %c0_14] : memref<18x18x4xf32, #tpu.memory_space<vmem>>, vector<16x16x4xf32>
    %8 = vector.shape_cast %7 : vector<16x16x4xf32> to vector<256x4xf32>
    %c0_15 = arith.constant 0 : index
    %c1_16 = arith.constant 1 : index
    %c0_17 = arith.constant 0 : index
    %9 = vector.load %arg9[%c0_15, %c1_16, %c0_17] : memref<18x18x4xf32, #tpu.memory_space<vmem>>, vector<16x16x4xf32>
    %10 = vector.shape_cast %9 : vector<16x16x4xf32> to vector<256x4xf32>
    %c0_18 = arith.constant 0 : index
    %c2 = arith.constant 2 : index
    %c0_19 = arith.constant 0 : index
    %11 = vector.load %arg9[%c0_18, %c2, %c0_19] : memref<18x18x4xf32, #tpu.memory_space<vmem>>, vector<16x16x4xf32>
    %12 = vector.shape_cast %11 : vector<16x16x4xf32> to vector<256x4xf32>
    %c1_20 = arith.constant 1 : index
    %c0_21 = arith.constant 0 : index
    %c0_22 = arith.constant 0 : index
    %13 = vector.load %arg9[%c1_20, %c0_21, %c0_22] : memref<18x18x4xf32, #tpu.memory_space<vmem>>, vector<16x16x4xf32>
    %14 = vector.shape_cast %13 : vector<16x16x4xf32> to vector<256x4xf32>
    %c1_23 = arith.constant 1 : index
    %c1_24 = arith.constant 1 : index
    %c0_25 = arith.constant 0 : index
    %15 = vector.load %arg9[%c1_23, %c1_24, %c0_25] : memref<18x18x4xf32, #tpu.memory_space<vmem>>, vector<16x16x4xf32>
    %16 = vector.shape_cast %15 : vector<16x16x4xf32> to vector<256x4xf32>
    %c1_26 = arith.constant 1 : index
    %c2_27 = arith.constant 2 : index
    %c0_28 = arith.constant 0 : index
    %17 = vector.load %arg9[%c1_26, %c2_27, %c0_28] : memref<18x18x4xf32, #tpu.memory_space<vmem>>, vector<16x16x4xf32>
    %18 = vector.shape_cast %17 : vector<16x16x4xf32> to vector<256x4xf32>
    %c2_29 = arith.constant 2 : index
    %c0_30 = arith.constant 0 : index
    %c0_31 = arith.constant 0 : index
    %19 = vector.load %arg9[%c2_29, %c0_30, %c0_31] : memref<18x18x4xf32, #tpu.memory_space<vmem>>, vector<16x16x4xf32>
    %20 = vector.shape_cast %19 : vector<16x16x4xf32> to vector<256x4xf32>
    %c2_32 = arith.constant 2 : index
    %c1_33 = arith.constant 1 : index
    %c0_34 = arith.constant 0 : index
    %21 = vector.load %arg9[%c2_32, %c1_33, %c0_34] : memref<18x18x4xf32, #tpu.memory_space<vmem>>, vector<16x16x4xf32>
    %22 = vector.shape_cast %21 : vector<16x16x4xf32> to vector<256x4xf32>
    %c2_35 = arith.constant 2 : index
    %c2_36 = arith.constant 2 : index
    %c0_37 = arith.constant 0 : index
    %23 = vector.load %arg9[%c2_35, %c2_36, %c0_37] : memref<18x18x4xf32, #tpu.memory_space<vmem>>, vector<16x16x4xf32>
    %24 = vector.shape_cast %23 : vector<16x16x4xf32> to vector<256x4xf32>
    %25 = tpu.concatenate %8, %10, %12, %14, %16, %18, %20, %22, %24 in 1 : vector<256x4xf32>, vector<256x4xf32>, vector<256x4xf32>, vector<256x4xf32>, vector<256x4xf32>, vector<256x4xf32>, vector<256x4xf32>, vector<256x4xf32>, vector<256x4xf32> -> vector<256x36xf32>
    %c0_38 = arith.constant 0 : index
    %c0_39 = arith.constant 0 : index
    %26 = vector.load %arg2[%c0_38, %c0_39] : memref<36x8xf32, #tpu.memory_space<vmem>>, vector<36x8xf32>
    %cst_40 = arith.constant dense<0.000000e+00> : vector<256x8xf32>
    %27 = tpu.matmul %25, %26, %cst_40 {dimension_numbers = #tpu.dot_dimension_numbers<[1], [0], [0], [1], [0, 0, 1, 1], [], []>} : vector<256x36xf32>, vector<36x8xf32>, vector<256x8xf32> -> vector<256x8xf32>
    %c0_41 = arith.constant 0 : index
    %c0_42 = arith.constant 0 : index
    %28 = vector.load %arg3[%c0_41, %c0_42] : memref<1x8xf32, #tpu.memory_space<vmem>>, vector<1x8xf32>
    %29 = vector.broadcast %28 : vector<1x8xf32> to vector<256x8xf32>
    %30 = arith.addf %27, %29 : vector<256x8xf32>
    %cst_43 = arith.constant 0.000000e+00 : f32
    %31 = vector.broadcast %cst_43 : f32 to vector<256x8xf32>
    %32 = arith.maximumf %30, %31 : vector<256x8xf32>
    %33 = vector.shape_cast %32 : vector<256x8xf32> to vector<16x16x8xf32>
    %c1_44 = arith.constant 1 : index
    %c1_45 = arith.constant 1 : index
    %c0_46 = arith.constant 0 : index
    %34 = vector.load %arg10[%c1_44, %c1_45, %c0_46] : memref<18x18x8xf32, #tpu.memory_space<vmem>>, vector<16x16x8xf32>
    tpu.vector_store %arg10[%c1_44, %c1_45, %c0_46], %33 {strides = array<i32>} : memref<18x18x8xf32, #tpu.memory_space<vmem>>, vector<16x16x8xf32>,
    %c0_47 = arith.constant 0 : index
    %c0_48 = arith.constant 0 : index
    %c0_49 = arith.constant 0 : index
    %35 = vector.load %arg10[%c0_47, %c0_48, %c0_49] : memref<18x18x8xf32, #tpu.memory_space<vmem>>, vector<16x16x8xf32>
    %36 = vector.shape_cast %35 : vector<16x16x8xf32> to vector<256x8xf32>
    %c0_50 = arith.constant 0 : index
    %c1_51 = arith.constant 1 : index
    %c0_52 = arith.constant 0 : index
    %37 = vector.load %arg10[%c0_50, %c1_51, %c0_52] : memref<18x18x8xf32, #tpu.memory_space<vmem>>, vector<16x16x8xf32>
    %38 = vector.shape_cast %37 : vector<16x16x8xf32> to vector<256x8xf32>
    %c0_53 = arith.constant 0 : index
    %c2_54 = arith.constant 2 : index
    %c0_55 = arith.constant 0 : index
    %39 = vector.load %arg10[%c0_53, %c2_54, %c0_55] : memref<18x18x8xf32, #tpu.memory_space<vmem>>, vector<16x16x8xf32>
    %40 = vector.shape_cast %39 : vector<16x16x8xf32> to vector<256x8xf32>
    %c1_56 = arith.constant 1 : index
    %c0_57 = arith.constant 0 : index
    %c0_58 = arith.constant 0 : index
    %41 = vector.load %arg10[%c1_56, %c0_57, %c0_58] : memref<18x18x8xf32, #tpu.memory_space<vmem>>, vector<16x16x8xf32>
    %42 = vector.shape_cast %41 : vector<16x16x8xf32> to vector<256x8xf32>
    %c1_59 = arith.constant 1 : index
    %c1_60 = arith.constant 1 : index
    %c0_61 = arith.constant 0 : index
    %43 = vector.load %arg10[%c1_59, %c1_60, %c0_61] : memref<18x18x8xf32, #tpu.memory_space<vmem>>, vector<16x16x8xf32>
    %44 = vector.shape_cast %43 : vector<16x16x8xf32> to vector<256x8xf32>
    %c1_62 = arith.constant 1 : index
    %c2_63 = arith.constant 2 : index
    %c0_64 = arith.constant 0 : index
    %45 = vector.load %arg10[%c1_62, %c2_63, %c0_64] : memref<18x18x8xf32, #tpu.memory_space<vmem>>, vector<16x16x8xf32>
    %46 = vector.shape_cast %45 : vector<16x16x8xf32> to vector<256x8xf32>
    %c2_65 = arith.constant 2 : index
    %c0_66 = arith.constant 0 : index
    %c0_67 = arith.constant 0 : index
    %47 = vector.load %arg10[%c2_65, %c0_66, %c0_67] : memref<18x18x8xf32, #tpu.memory_space<vmem>>, vector<16x16x8xf32>
    %48 = vector.shape_cast %47 : vector<16x16x8xf32> to vector<256x8xf32>
    %c2_68 = arith.constant 2 : index
    %c1_69 = arith.constant 1 : index
    %c0_70 = arith.constant 0 : index
    %49 = vector.load %arg10[%c2_68, %c1_69, %c0_70] : memref<18x18x8xf32, #tpu.memory_space<vmem>>, vector<16x16x8xf32>
    %50 = vector.shape_cast %49 : vector<16x16x8xf32> to vector<256x8xf32>
    %c2_71 = arith.constant 2 : index
    %c2_72 = arith.constant 2 : index
    %c0_73 = arith.constant 0 : index
    %51 = vector.load %arg10[%c2_71, %c2_72, %c0_73] : memref<18x18x8xf32, #tpu.memory_space<vmem>>, vector<16x16x8xf32>
    %52 = vector.shape_cast %51 : vector<16x16x8xf32> to vector<256x8xf32>
    %53 = tpu.concatenate %36, %38, %40, %42, %44, %46, %48, %50, %52 in 1 : vector<256x8xf32>, vector<256x8xf32>, vector<256x8xf32>, vector<256x8xf32>, vector<256x8xf32>, vector<256x8xf32>, vector<256x8xf32>, vector<256x8xf32>, vector<256x8xf32> -> vector<256x72xf32>
    %c0_74 = arith.constant 0 : index
    %c0_75 = arith.constant 0 : index
    %54 = vector.load %arg4[%c0_74, %c0_75] : memref<72x8xf32, #tpu.memory_space<vmem>>, vector<72x8xf32>
    %cst_76 = arith.constant dense<0.000000e+00> : vector<256x8xf32>
    %55 = tpu.matmul %53, %54, %cst_76 {dimension_numbers = #tpu.dot_dimension_numbers<[1], [0], [0], [1], [0, 0, 1, 1], [], []>} : vector<256x72xf32>, vector<72x8xf32>, vector<256x8xf32> -> vector<256x8xf32>
    %c0_77 = arith.constant 0 : index
    %c0_78 = arith.constant 0 : index
    %56 = vector.load %arg5[%c0_77, %c0_78] : memref<1x8xf32, #tpu.memory_space<vmem>>, vector<1x8xf32>
    %57 = vector.broadcast %56 : vector<1x8xf32> to vector<256x8xf32>
    %58 = arith.addf %55, %57 : vector<256x8xf32>
    %cst_79 = arith.constant 0.000000e+00 : f32
    %59 = vector.broadcast %cst_79 : f32 to vector<256x8xf32>
    %60 = arith.maximumf %58, %59 : vector<256x8xf32>
    %c0_80 = arith.constant 0 : index
    %c0_81 = arith.constant 0 : index
    %61 = vector.load %arg6[%c0_80, %c0_81] : memref<1x8xf32, #tpu.memory_space<vmem>>, vector<1x8xf32>
    %62 = vector.broadcast %61 : vector<1x8xf32> to vector<256x8xf32>
    %63 = arith.mulf %60, %62 : vector<256x8xf32>
    %c0_82 = arith.constant 0 : index
    %c0_83 = arith.constant 0 : index
    %64 = vector.load %arg7[%c0_82, %c0_83] : memref<1x8xf32, #tpu.memory_space<vmem>>, vector<1x8xf32>
    %65 = vector.broadcast %64 : vector<1x8xf32> to vector<256x8xf32>
    %66 = arith.addf %63, %65 : vector<256x8xf32>
    %67 = vector.shape_cast %66 : vector<256x8xf32> to vector<16x16x8xf32>
    %68 = tpu.concatenate %67, %67 in 2 : vector<16x16x8xf32>, vector<16x16x8xf32> -> vector<16x16x16xf32>
    %69 = vector.shape_cast %68 : vector<16x16x16xf32> to vector<16x256xf32>
    %70 = tpu.concatenate %69, %69 in 1 : vector<16x256xf32>, vector<16x256xf32> -> vector<16x512xf32>
    %c0_84 = arith.constant 0 : index
    %c0_85 = arith.constant 0 : index
    %c0_86 = arith.constant 0 : index
    %71 = vector.load %arg8[%c0_84, %c0_85, %c0_86] : memref<1x16x512xf32, #tpu.memory_space<vmem>>, vector<1x16x512xf32>
    %72 = vector.shape_cast %71 : vector<1x16x512xf32> to vector<16x512xf32>
    %73 = vector.shape_cast %70 : vector<16x512xf32> to vector<1x16x512xf32>
    tpu.vector_store %arg8[%c0_84, %c0_85, %c0_86], %73 {strides = array<i32>} : memref<1x16x512xf32, #tpu.memory_space<vmem>>, vector<1x16x512xf32>,
    return
  }
  func.func @transform_0(%arg0: i32) -> (i32, i32, i32, i32) {
    %c0_i32 = arith.constant 0 : i32
    %c0_i32_0 = arith.constant 0 : i32
    %c0_i32_1 = arith.constant 0 : i32
    %c0_i32_2 = arith.constant 0 : i32
    return %arg0, %c0_i32, %c0_i32_0, %c0_i32_1 : i32, i32, i32, i32
  }
  func.func @transform_1(%arg0: i32) -> (i32, i32) {
    %c0_i32 = arith.constant 0 : i32
    %c0_i32_0 = arith.constant 0 : i32
    %c0_i32_1 = arith.constant 0 : i32
    return %c0_i32, %c0_i32_0 : i32, i32
  }
  func.func @transform_2(%arg0: i32) -> (i32, i32) {
    %c0_i32 = arith.constant 0 : i32
    %c0_i32_0 = arith.constant 0 : i32
    %c0_i32_1 = arith.constant 0 : i32
    return %c0_i32, %c0_i32_0 : i32, i32
  }
  func.func @transform_3(%arg0: i32) -> (i32, i32) {
    %c0_i32 = arith.constant 0 : i32
    %c0_i32_0 = arith.constant 0 : i32
    %c0_i32_1 = arith.constant 0 : i32
    return %c0_i32, %c0_i32_0 : i32, i32
  }
  func.func @transform_4(%arg0: i32) -> (i32, i32) {
    %c0_i32 = arith.constant 0 : i32
    %c0_i32_0 = arith.constant 0 : i32
    %c0_i32_1 = arith.constant 0 : i32
    return %c0_i32, %c0_i32_0 : i32, i32
  }
  func.func @transform_5(%arg0: i32) -> (i32, i32) {
    %c0_i32 = arith.constant 0 : i32
    %c0_i32_0 = arith.constant 0 : i32
    %c0_i32_1 = arith.constant 0 : i32
    return %c0_i32, %c0_i32_0 : i32, i32
  }
  func.func @transform_6(%arg0: i32) -> (i32, i32) {
    %c0_i32 = arith.constant 0 : i32
    %c0_i32_0 = arith.constant 0 : i32
    %c0_i32_1 = arith.constant 0 : i32
    return %c0_i32, %c0_i32_0 : i32, i32
  }
  func.func @transform_7(%arg0: i32) -> (i32, i32, i32) {
    %c0_i32 = arith.constant 0 : i32
    %c0_i32_0 = arith.constant 0 : i32
    %c0_i32_1 = arith.constant 0 : i32
    return %arg0, %c0_i32, %c0_i32_0 : i32, i32, i32
  }
}

</mosaic_0001>

<llo_original>
// kernel: tpu_custom_call.1
$region0: #{tpu_custom_call.1}
  #allocation0 [shape = 'u32[]', space=smem, size = 0x4, offset = 0x4, fixed_abs, tag = 'smem constant byte address 0x4 - core index']
  #allocation1 [shape = 'u32[72,128]{1,0:T(1,128)}', space=vmem, size = 0x9000, scoped, tag = 'internal scratch']
  #allocation2 [shape = 'f32[18,18,4]{2,1,0:T(8,128)}', space=vmem, size = 0x36000, scoped, tag = 'scratch operand']
  #allocation3 [shape = 'f32[18,18,8]{2,1,0:T(8,128)}', space=vmem, size = 0x36000, scoped, tag = 'scratch operand']
  %s0 = inlined_call_operand.vmem [shape: f32[2,16,16,4], index: 0, kind: input, shape index: {}]
  %s1 = inlined_call_operand.vmem [shape: f32[36,8], index: 1, kind: input, shape index: {}]
  %s2 = inlined_call_operand.vmem [shape: f32[1,8], index: 2, kind: input, shape index: {}]
  %s3 = inlined_call_operand.vmem [shape: f32[72,8], index: 3, kind: input, shape index: {}]
  %s4 = inlined_call_operand.vmem [shape: f32[1,8], index: 4, kind: input, shape index: {}]
  %s5 = inlined_call_operand.vmem [shape: f32[1,8], index: 5, kind: input, shape index: {}]
  %s6 = inlined_call_operand.vmem [shape: f32[1,8], index: 6, kind: input, shape index: {}]
  %s7 = inlined_call_operand.hbm [shape: f32[2,16,512], index: 7, kind: output, shape index: {}]
  %s8 = sld [smem:[#allocation0]]
  $region61: #{tpu_custom_call.1} parent=0
    _
  %s10 = ssub.s32 1, %s8
  %s11 = scalar_select 0, %s10, %s8
  $region1: #{tpu_custom_call.1} parent=0
    #allocation4 [shape = 'u8[65536]{0}', space=vmem, size = 0x10000, scoped, tag = 'output window, operand 0']
    #allocation5 [shape = 's32[2]{0}', space=sflag, size = 0x8, scoped, tag = 'scoped memory for tpu_custom_call.1']
    %12 = vsyncpa [#allocation5], 0
    %s13 = scalar_lea.sflag [#allocation5], 1
    %14 = vsyncpa %s13, 0
    loop: start=0, step=1, limit=4
    $region2: #{tpu_custom_call.1} parent=1 // loop_pre_header
      _
    $region3: #{tpu_custom_call.1} parent=1 // loop_header
      %s16 = sphi 0, %s20
      %p17 = scmp.ge.s32.totalorder %s16, 4
      %s26 = sphi 0, %s28
      %s29 = sphi 0, %s26
      %s30 = sphi 0, %s29
      %s46 = sphi 0, %s30
      %s50 = sphi 0, %s50
      %s52 = sphi 0, %s50
      %s53 = sphi 0, %s52
      %s67 = sphi 0, %s53
      %s71 = sphi 0, %s71
      %s73 = sphi 0, %s71
      %s74 = sphi 0, %s73
      %s88 = sphi 0, %s74
      %s92 = sphi 0, %s92
      %s94 = sphi 0, %s92
      %s95 = sphi 0, %s94
      %s109 = sphi 0, %s95
      %s113 = sphi 0, %s113
      %s115 = sphi 0, %s113
      %s116 = sphi 0, %s115
      %s130 = sphi 0, %s116
      %s134 = sphi 0, %s134
      %s136 = sphi 0, %s134
      %s137 = sphi 0, %s136
      %s151 = sphi 0, %s137
      %s155 = sphi 0, %s155
      %s157 = sphi 0, %s155
      %s158 = sphi 0, %s157
      %s172 = sphi 0, %s158
      %s178 = sphi 0, %s180
      %s181 = sphi 0, %s178
      %s182 = sphi 0, %s181
      %s198 = sphi 0, %s182
    $region4: #{tpu_custom_call.1} parent=1 // loop_header_branch
      %19 = sbr.rel (%p17) target = $region8
    $region5: #{tpu_custom_call.1} parent=1 // loop_body
      %s21 = ssub.s32 %s16, 1
      %s22 = ssub.s32 %s16, 2
      %s23 = sadd.s32 %s16, 1
      %s24 = ssub.s32 %s16, %s23
      %p25 = scmp.eq.s32.totalorder %s24, 0
      %s27 = sadd.s32 %s26, 1
      %s28 = scalar_select %p25, %s26, %s27
      %p31 = pneg %p25
      %p32 = scmp.eq.s32.totalorder %s16, 1
      %p33 = por %p31, %p32
      %p34 = scmp.ne.s32.totalorder %s26, %s29
      %p35 = scmp.eq.s32.totalorder %s16, 0
      %p36 = por %p34, %p35
      %p37 = scmp.ne.s32.totalorder %s26, %s29
      %p38 = scmp.eq.s32.totalorder %s21, 1
      %p39 = por %p37, %p38
      %p40 = scmp.ne.s32.totalorder %s29, %s30
      %p41 = scmp.eq.s32.totalorder %s21, 0
      %p42 = por %p40, %p41
      %p43 = scmp.ne.s32.totalorder %s29, %s30
      %p44 = scmp.eq.s32.totalorder %s22, 1
      %p45 = por %p43, %p44
      %p47 = scmp.ne.s32.totalorder %s30, %s46
      %p48 = scmp.eq.s32.totalorder %s22, 0
      %p49 = por %p47, %p48
      %s51 = sadd.s32 %s50, 1
      %p54 = scmp.eq.s32.totalorder %s16, 1
      %p55 = scmp.ne.s32.totalorder %s50, %s52
      %p56 = scmp.eq.s32.totalorder %s16, 0
      %p57 = por %p55, %p56
      %p58 = scmp.ne.s32.totalorder %s50, %s52
      %p59 = scmp.eq.s32.totalorder %s21, 1
      %p60 = por %p58, %p59
      %p61 = scmp.ne.s32.totalorder %s52, %s53
      %p62 = scmp.eq.s32.totalorder %s21, 0
      %p63 = por %p61, %p62
      %p64 = scmp.ne.s32.totalorder %s52, %s53
      %p65 = scmp.eq.s32.totalorder %s22, 1
      %p66 = por %p64, %p65
      %p68 = scmp.ne.s32.totalorder %s53, %s67
      %p69 = scmp.eq.s32.totalorder %s22, 0
      %p70 = por %p68, %p69
      %s72 = sadd.s32 %s71, 1
      %p75 = scmp.eq.s32.totalorder %s16, 1
      %p76 = scmp.ne.s32.totalorder %s71, %s73
      %p77 = scmp.eq.s32.totalorder %s16, 0
      %p78 = por %p76, %p77
      %p79 = scmp.ne.s32.totalorder %s71, %s73
      %p80 = scmp.eq.s32.totalorder %s21, 1
      %p81 = por %p79, %p80
      %p82 = scmp.ne.s32.totalorder %s73, %s74
      %p83 = scmp.eq.s32.totalorder %s21, 0
      %p84 = por %p82, %p83
      %p85 = scmp.ne.s32.totalorder %s73, %s74
      %p86 = scmp.eq.s32.totalorder %s22, 1
      %p87 = por %p85, %p86
      %p89 = scmp.ne.s32.totalorder %s74, %s88
      %p90 = scmp.eq.s32.totalorder %s22, 0
      %p91 = por %p89, %p90
      %s93 = sadd.s32 %s92, 1
      %p96 = scmp.eq.s32.totalorder %s16, 1
      %p97 = scmp.ne.s32.totalorder %s92, %s94
      %p98 = scmp.eq.s32.totalorder %s16, 0
      %p99 = por %p97, %p98
      %p100 = scmp.ne.s32.totalorder %s92, %s94
      %p101 = scmp.eq.s32.totalorder %s21, 1
      %p102 = por %p100, %p101
      %p103 = scmp.ne.s32.totalorder %s94, %s95
      %p104 = scmp.eq.s32.totalorder %s21, 0
      %p105 = por %p103, %p104
      %p106 = scmp.ne.s32.totalorder %s94, %s95
      %p107 = scmp.eq.s32.totalorder %s22, 1
      %p108 = por %p106, %p107
      %p110 = scmp.ne.s32.totalorder %s95, %s109
      %p111 = scmp.eq.s32.totalorder %s22, 0
      %p112 = por %p110, %p111
      %s114 = sadd.s32 %s113, 1
      %p117 = scmp.eq.s32.totalorder %s16, 1
      %p118 = scmp.ne.s32.totalorder %s113, %s115
      %p119 = scmp.eq.s32.totalorder %s16, 0
      %p120 = por %p118, %p119
      %p121 = scmp.ne.s32.totalorder %s113, %s115
      %p122 = scmp.eq.s32.totalorder %s21, 1
      %p123 = por %p121, %p122
      %p124 = scmp.ne.s32.totalorder %s115, %s116
      %p125 = scmp.eq.s32.totalorder %s21, 0
      %p126 = por %p124, %p125
      %p127 = scmp.ne.s32.totalorder %s115, %s116
      %p128 = scmp.eq.s32.totalorder %s22, 1
      %p129 = por %p127, %p128
      %p131 = scmp.ne.s32.totalorder %s116, %s130
      %p132 = scmp.eq.s32.totalorder %s22, 0
      %p133 = por %p131, %p132
      %s135 = sadd.s32 %s134, 1
      %p138 = scmp.eq.s32.totalorder %s16, 1
      %p139 = scmp.ne.s32.totalorder %s134, %s136
      %p140 = scmp.eq.s32.totalorder %s16, 0
      %p141 = por %p139, %p140
      %p142 = scmp.ne.s32.totalorder %s134, %s136
      %p143 = scmp.eq.s32.totalorder %s21, 1
      %p144 = por %p142, %p143
      %p145 = scmp.ne.s32.totalorder %s136, %s137
      %p146 = scmp.eq.s32.totalorder %s21, 0
      %p147 = por %p145, %p146
      %p148 = scmp.ne.s32.totalorder %s136, %s137
      %p149 = scmp.eq.s32.totalorder %s22, 1
      %p150 = por %p148, %p149
      %p152 = scmp.ne.s32.totalorder %s137, %s151
      %p153 = scmp.eq.s32.totalorder %s22, 0
      %p154 = por %p152, %p153
      %s156 = sadd.s32 %s155, 1
      %p159 = scmp.eq.s32.totalorder %s16, 1
      %p160 = scmp.ne.s32.totalorder %s155, %s157
      %p161 = scmp.eq.s32.totalorder %s16, 0
      %p162 = por %p160, %p161
      %p163 = scmp.ne.s32.totalorder %s155, %s157
      %p164 = scmp.eq.s32.totalorder %s21, 1
      %p165 = por %p163, %p164
      %p166 = scmp.ne.s32.totalorder %s157, %s158
      %p167 = scmp.eq.s32.totalorder %s21, 0
      %p168 = por %p166, %p167
      %p169 = scmp.ne.s32.totalorder %s157, %s158
      %p170 = scmp.eq.s32.totalorder %s22, 1
      %p171 = por %p169, %p170
      %p173 = scmp.ne.s32.totalorder %s158, %s172
      %p174 = scmp.eq.s32.totalorder %s22, 0
      %p175 = por %p173, %p174
      %s176 = ssub.s32 %s16, %s23
      %p177 = scmp.eq.s32.totalorder %s176, 0
      %s179 = sadd.s32 %s178, 1
      %s180 = scalar_select %p177, %s178, %s179
      %p183 = pneg %p177
      %p184 = scmp.eq.s32.totalorder %s16, 1
      %p185 = por %p183, %p184
      %p186 = scmp.ne.s32.totalorder %s178, %s181
      %p187 = scmp.eq.s32.totalorder %s16, 0
      %p188 = por %p186, %p187
      %p189 = scmp.ne.s32.totalorder %s178, %s181
      %p190 = scmp.eq.s32.totalorder %s21, 1
      %p191 = por %p189, %p190
      %p192 = scmp.ne.s32.totalorder %s181, %s182
      %p193 = scmp.eq.s32.totalorder %s21, 0
      %p194 = por %p192, %p193
      %p195 = scmp.ne.s32.totalorder %s181, %s182
      %p196 = scmp.eq.s32.totalorder %s22, 1
      %p197 = por %p195, %p196
      %p199 = scmp.ne.s32.totalorder %s182, %s198
      %p200 = scmp.eq.s32.totalorder %s22, 0
      %p201 = por %p199, %p200
      %p202 = scmp.le.s32.totalorder 1, %s16
      %p203 = scmp.lt.s32.totalorder %s16, 3
      %p204 = pnand %p202, %p203
      %p205 = pneg %p204
      // Predicated region
      $region9: #{tpu_custom_call.1} parent=5 // pred_check
        _
      $region10: #{tpu_custom_call.1} parent=5 // pred_check_branch
        %207 = sbr.rel (%p204) target = $region12
      $region11: #{tpu_custom_call.1} parent=5 // pred_region
        %s208 = ssub.s32 %s16, 1
        // Predicated region
        $region13: #{tpu_custom_call.1} parent=11 // pred_check
          %p209 = pneg %p63
        $region14: #{tpu_custom_call.1} parent=11 // pred_check_branch
          %211 = sbr.rel (%p209) target = $region16
        $region15: #{tpu_custom_call.1} parent=11 // pred_region
          _
        $region16: #{tpu_custom_call.1} parent=11 // pred_fallthru
          _
        // Predicated region
        $region17: #{tpu_custom_call.1} parent=11 // pred_check
          %p212 = pneg %p84
        $region18: #{tpu_custom_call.1} parent=11 // pred_check_branch
          %214 = sbr.rel (%p212) target = $region20
        $region19: #{tpu_custom_call.1} parent=11 // pred_region
          _
        $region20: #{tpu_custom_call.1} parent=11 // pred_fallthru
          _
        // Predicated region
        $region21: #{tpu_custom_call.1} parent=11 // pred_check
          %p215 = pneg %p105
        $region22: #{tpu_custom_call.1} parent=11 // pred_check_branch
          %217 = sbr.rel (%p215) target = $region24
        $region23: #{tpu_custom_call.1} parent=11 // pred_region
          _
        $region24: #{tpu_custom_call.1} parent=11 // pred_fallthru
          _
        // Predicated region
        $region25: #{tpu_custom_call.1} parent=11 // pred_check
          %p218 = pneg %p126
        $region26: #{tpu_custom_call.1} parent=11 // pred_check_branch
          %220 = sbr.rel (%p218) target = $region28
        $region27: #{tpu_custom_call.1} parent=11 // pred_region
          _
        $region28: #{tpu_custom_call.1} parent=11 // pred_fallthru
          _
        // Predicated region
        $region29: #{tpu_custom_call.1} parent=11 // pred_check
          %p221 = pneg %p147
        $region30: #{tpu_custom_call.1} parent=11 // pred_check_branch
          %223 = sbr.rel (%p221) target = $region32
        $region31: #{tpu_custom_call.1} parent=11 // pred_region
          _
        $region32: #{tpu_custom_call.1} parent=11 // pred_fallthru
          _
        // Predicated region
        $region33: #{tpu_custom_call.1} parent=11 // pred_check
          %p224 = pneg %p168
        $region34: #{tpu_custom_call.1} parent=11 // pred_check_branch
          %226 = sbr.rel (%p224) target = $region36
        $region35: #{tpu_custom_call.1} parent=11 // pred_region
          _
        $region36: #{tpu_custom_call.1} parent=11 // pred_fallthru
          _
      $region12: #{tpu_custom_call.1} parent=5 // pred_fallthru
        _
      %p227 = scmp.lt.s32.totalorder %s16, 2
      // Predicated region
      $region37: #{tpu_custom_call.1} parent=5 // pred_check
        %p228 = pneg %p227
      $region38: #{tpu_custom_call.1} parent=5 // pred_check_branch
        %230 = sbr.rel (%p228) target = $region40
      $region39: #{tpu_custom_call.1} parent=5 // pred_region
        // Predicated region
        $region41: #{tpu_custom_call.1} parent=39 // pred_check
          %p231 = pneg %p36
        $region42: #{tpu_custom_call.1} parent=39 // pred_check_branch
          %233 = sbr.rel (%p231) target = $region44
        $region43: #{tpu_custom_call.1} parent=39 // pred_region
          %p234 = scmp.lt.s32.totalorder %s16, 1
          %s235 = scalar_select %p234, %s16, 1
          %s236 = smul.addr %s235, 32
          %s237 = smul.addr %s236, 8
          %s238 = scalar_lea.vmem %s0, %s237
        $region44: #{tpu_custom_call.1} parent=39 // pred_fallthru
          _
      $region40: #{tpu_custom_call.1} parent=5 // pred_fallthru
        _
      %p239 = scmp.le.s32.totalorder 1, %s16
      %p240 = scmp.lt.s32.totalorder %s16, 3
      %p241 = pnand %p239, %p240
      %p242 = pneg %p241
      // Predicated region
      $region45: #{tpu_custom_call.1} parent=5 // pred_check
        _
      $region46: #{tpu_custom_call.1} parent=5 // pred_check_branch
        %244 = sbr.rel (%p241) target = $region48
      $region47: #{tpu_custom_call.1} parent=5 // pred_region
        %s245 = ssub.s32 %s16, 1
        %p246 = scmp.lt.s32.totalorder %s21, 1
        %s247 = scalar_select %p246, %s21, 1
        %s248 = smul.addr %s247, 32
        %s249 = smul.addr %s248, 8
        %s250 = scalar_lea.vmem %s0, %s249
        %p251 = pneg %p42
        %p252 = pneg %p39
        %p253 = pneg %p63
        %p254 = pneg %p60
        %p255 = pneg %p84
        %p256 = pneg %p81
        %p257 = pneg %p105
        %p258 = pneg %p102
        %p259 = pneg %p126
        %p260 = pneg %p123
        %p261 = pneg %p147
        %p262 = pneg %p144
        %p263 = pneg %p168
        %p264 = pneg %p165
        %p265 = pneg %p194
        %p266 = pneg %p191
        %s267 = sand.u32 %s181, 1
        %s268 = scalar_lea.sflag [#allocation5], %s267
        %s269 = sand.u32 %s181, 1
        %s270 = smul.addr %s269, 64
        %s271 = scalar_lea.vmem [#allocation4], %s270
        %p272 = scmp.lt.s32.totalorder %s21, 1
        %s273 = scalar_select %p272, %s21, 1
        %s274 = smul.addr %s273, 32
        %s275 = smul.addr %s274, 8
        %s276 = scalar_lea.vmem %s0, %s275
        %vm277 = vcmask 31744
        %278 = vst.msk [vmem:[#allocation2] sm:$0xff] %vm277, 0.0
        %279 = vst.msk [vmem:[#allocation2 + $0x8] sm:$0xff] %vm277, 0.0
        %vm280 = vcmask 25600
        %281 = vst.msk [vmem:[#allocation2 + $0x10] sm:$0x3] %vm280, 0.0
        %282 = vst.msk [vmem:[#allocation2 + $0x18] sm:$0xff] %vm277, 0.0
        %283 = vst.msk [vmem:[#allocation2 + $0x20] sm:$0xff] %vm277, 0.0
        %284 = vst.msk [vmem:[#allocation2 + $0x28] sm:$0x3] %vm280, 0.0
        %285 = vst.msk [vmem:[#allocation2 + $0x30] sm:$0xff] %vm277, 0.0
        %286 = vst.msk [vmem:[#allocation2 + $0x38] sm:$0xff] %vm277, 0.0
        %287 = vst.msk [vmem:[#allocation2 + $0x40] sm:$0x3] %vm280, 0.0
        %288 = vst.msk [vmem:[#allocation2 + $0x48] sm:$0xff] %vm277, 0.0
        %289 = vst.msk [vmem:[#allocation2 + $0x50] sm:$0xff] %vm277, 0.0
        %290 = vst.msk [vmem:[#allocation2 + $0x58] sm:$0x3] %vm280, 0.0
        %291 = vst.msk [vmem:[#allocation2 + $0x60] sm:$0xff] %vm277, 0.0
        %292 = vst.msk [vmem:[#allocation2 + $0x68] sm:$0xff] %vm277, 0.0
        %293 = vst.msk [vmem:[#allocation2 + $0x70] sm:$0x3] %vm280, 0.0
        %294 = vst.msk [vmem:[#allocation2 + $0x78] sm:$0xff] %vm277, 0.0
        %295 = vst.msk [vmem:[#allocation2 + $0x80] sm:$0xff] %vm277, 0.0
        %296 = vst.msk [vmem:[#allocation2 + $0x88] sm:$0x3] %vm280, 0.0
        %297 = vst.msk [vmem:[#allocation2 + $0x90] sm:$0xff] %vm277, 0.0
        %298 = vst.msk [vmem:[#allocation2 + $0x98] sm:$0xff] %vm277, 0.0
        %299 = vst.msk [vmem:[#allocation2 + $0xa0] sm:$0x3] %vm280, 0.0
        %300 = vst.msk [vmem:[#allocation2 + $0xa8] sm:$0xff] %vm277, 0.0
        %301 = vst.msk [vmem:[#allocation2 + $0xb0] sm:$0xff] %vm277, 0.0
        %302 = vst.msk [vmem:[#allocation2 + $0xb8] sm:$0x3] %vm280, 0.0
        %303 = vst.msk [vmem:[#allocation2 + $0xc0] sm:$0xff] %vm277, 0.0
        %304 = vst.msk [vmem:[#allocation2 + $0xc8] sm:$0xff] %vm277, 0.0
        %305 = vst.msk [vmem:[#allocation2 + $0xd0] sm:$0x3] %vm280, 0.0
        %306 = vst.msk [vmem:[#allocation2 + $0xd8] sm:$0xff] %vm277, 0.0
        %307 = vst.msk [vmem:[#allocation2 + $0xe0] sm:$0xff] %vm277, 0.0
        %308 = vst.msk [vmem:[#allocation2 + $0xe8] sm:$0x3] %vm280, 0.0
        %309 = vst.msk [vmem:[#allocation2 + $0xf0] sm:$0xff] %vm277, 0.0
        %310 = vst.msk [vmem:[#allocation2 + $0xf8] sm:$0xff] %vm277, 0.0
        %311 = vst.msk [vmem:[#allocation2 + $0x100] sm:$0x3] %vm280, 0.0
        %312 = vst.msk [vmem:[#allocation2 + $0x108] sm:$0xff] %vm277, 0.0
        %313 = vst.msk [vmem:[#allocation2 + $0x110] sm:$0xff] %vm277, 0.0
        %314 = vst.msk [vmem:[#allocation2 + $0x118] sm:$0x3] %vm280, 0.0
        %315 = vst.msk [vmem:[#allocation2 + $0x120] sm:$0xff] %vm277, 0.0
        %316 = vst.msk [vmem:[#allocation2 + $0x128] sm:$0xff] %vm277, 0.0
        %317 = vst.msk [vmem:[#allocation2 + $0x130] sm:$0x3] %vm280, 0.0
        %318 = vst.msk [vmem:[#allocation2 + $0x138] sm:$0xff] %vm277, 0.0
        %319 = vst.msk [vmem:[#allocation2 + $0x140] sm:$0xff] %vm277, 0.0
        %320 = vst.msk [vmem:[#allocation2 + $0x148] sm:$0x3] %vm280, 0.0
        %321 = vst.msk [vmem:[#allocation2 + $0x150] sm:$0xff] %vm277, 0.0
        %322 = vst.msk [vmem:[#allocation2 + $0x158] sm:$0xff] %vm277, 0.0
        %323 = vst.msk [vmem:[#allocation2 + $0x160] sm:$0x3] %vm280, 0.0
        %324 = vst.msk [vmem:[#allocation2 + $0x168] sm:$0xff] %vm277, 0.0
        %325 = vst.msk [vmem:[#allocation2 + $0x170] sm:$0xff] %vm277, 0.0
        %326 = vst.msk [vmem:[#allocation2 + $0x178] sm:$0x3] %vm280, 0.0
        %327 = vst.msk [vmem:[#allocation2 + $0x180] sm:$0xff] %vm277, 0.0
        %328 = vst.msk [vmem:[#allocation2 + $0x188] sm:$0xff] %vm277, 0.0
        %329 = vst.msk [vmem:[#allocation2 + $0x190] sm:$0x3] %vm280, 0.0
        %330 = vst.msk [vmem:[#allocation2 + $0x198] sm:$0xff] %vm277, 0.0
        %331 = vst.msk [vmem:[#allocation2 + $0x1a0] sm:$0xff] %vm277, 0.0
        %332 = vst.msk [vmem:[#allocation2 + $0x1a8] sm:$0x3] %vm280, 0.0
        %v333 = vld [vmem:[%s276] sm:$0xff]
        %v334 = vld [vmem:[%s276 + $0x8] sm:$0xff]
        %v335 = vld [vmem:[%s276 + $0x10] sm:$0xff]
        %v336 = vld [vmem:[%s276 + $0x18] sm:$0xff]
        %v337 = vld [vmem:[%s276 + $0x20] sm:$0xff]
        %v338 = vld [vmem:[%s276 + $0x28] sm:$0xff]
        %v339 = vld [vmem:[%s276 + $0x30] sm:$0xff]
        %v340 = vld [vmem:[%s276 + $0x38] sm:$0xff]
        %v341 = vld [vmem:[%s276 + $0x40] sm:$0xff]
        %v342 = vld [vmem:[%s276 + $0x48] sm:$0xff]
        %v343 = vld [vmem:[%s276 + $0x50] sm:$0xff]
        %v344 = vld [vmem:[%s276 + $0x58] sm:$0xff]
        %v345 = vld [vmem:[%s276 + $0x60] sm:$0xff]
        %v346 = vld [vmem:[%s276 + $0x68] sm:$0xff]
        %v347 = vld [vmem:[%s276 + $0x70] sm:$0xff]
        %v348 = vld [vmem:[%s276 + $0x78] sm:$0xff]
        %v349 = vld [vmem:[%s276 + $0x80] sm:$0xff]
        %v350 = vld [vmem:[%s276 + $0x88] sm:$0xff]
        %v351 = vld [vmem:[%s276 + $0x90] sm:$0xff]
        %v352 = vld [vmem:[%s276 + $0x98] sm:$0xff]
        %v353 = vld [vmem:[%s276 + $0xa0] sm:$0xff]
        %v354 = vld [vmem:[%s276 + $0xa8] sm:$0xff]
        %v355 = vld [vmem:[%s276 + $0xb0] sm:$0xff]
        %v356 = vld [vmem:[%s276 + $0xb8] sm:$0xff]
        %v357 = vld [vmem:[%s276 + $0xc0] sm:$0xff]
        %v358 = vld [vmem:[%s276 + $0xc8] sm:$0xff]
        %v359 = vld [vmem:[%s276 + $0xd0] sm:$0xff]
        %v360 = vld [vmem:[%s276 + $0xd8] sm:$0xff]
        %v361 = vld [vmem:[%s276 + $0xe0] sm:$0xff]
        %v362 = vld [vmem:[%s276 + $0xe8] sm:$0xff]
        %v363 = vld [vmem:[%s276 + $0xf0] sm:$0xff]
        %v364 = vld [vmem:[%s276 + $0xf8] sm:$0xff]
        %s365 = scalar_lea.vmem [#allocation2], 24
        %366 = vst.msk [vmem:[%s365 + $0x1] sm:$0xff] %vm277, %v333
        %367 = vst.msk [vmem:[%s365 + $0x9] sm:$0xff] %vm277, %v334
        %368 = vst.msk [vmem:[%s365 + $0x19] sm:$0xff] %vm277, %v335
        %369 = vst.msk [vmem:[%s365 + $0x21] sm:$0xff] %vm277, %v336
        %370 = vst.msk [vmem:[%s365 + $0x31] sm:$0xff] %vm277, %v337
        %371 = vst.msk [vmem:[%s365 + $0x39] sm:$0xff] %vm277, %v338
        %372 = vst.msk [vmem:[%s365 + $0x49] sm:$0xff] %vm277, %v339
        %373 = vst.msk [vmem:[%s365 + $0x51] sm:$0xff] %vm277, %v340
        %374 = vst.msk [vmem:[%s365 + $0x61] sm:$0xff] %vm277, %v341
        %375 = vst.msk [vmem:[%s365 + $0x69] sm:$0xff] %vm277, %v342
        %376 = vst.msk [vmem:[%s365 + $0x79] sm:$0xff] %vm277, %v343
        %377 = vst.msk [vmem:[%s365 + $0x81] sm:$0xff] %vm277, %v344
        %378 = vst.msk [vmem:[%s365 + $0x91] sm:$0xff] %vm277, %v345
        %379 = vst.msk [vmem:[%s365 + $0x99] sm:$0xff] %vm277, %v346
        %380 = vst.msk [vmem:[%s365 + $0xa9] sm:$0xff] %vm277, %v347
        %381 = vst.msk [vmem:[%s365 + $0xb1] sm:$0xff] %vm277, %v348
        %382 = vst.msk [vmem:[%s365 + $0xc1] sm:$0xff] %vm277, %v349
        %383 = vst.msk [vmem:[%s365 + $0xc9] sm:$0xff] %vm277, %v350
        %384 = vst.msk [vmem:[%s365 + $0xd9] sm:$0xff] %vm277, %v351
        %385 = vst.msk [vmem:[%s365 + $0xe1] sm:$0xff] %vm277, %v352
        %386 = vst.msk [vmem:[%s365 + $0xf1] sm:$0xff] %vm277, %v353
        %387 = vst.msk [vmem:[%s365 + $0xf9] sm:$0xff] %vm277, %v354
        %388 = vst.msk [vmem:[%s365 + $0x109] sm:$0xff] %vm277, %v355
        %389 = vst.msk [vmem:[%s365 + $0x111] sm:$0xff] %vm277, %v356
        %390 = vst.msk [vmem:[%s365 + $0x121] sm:$0xff] %vm277, %v357
        %391 = vst.msk [vmem:[%s365 + $0x129] sm:$0xff] %vm277, %v358
        %392 = vst.msk [vmem:[%s365 + $0x139] sm:$0xff] %vm277, %v359
        %393 = vst.msk [vmem:[%s365 + $0x141] sm:$0xff] %vm277, %v360
        %394 = vst.msk [vmem:[%s365 + $0x151] sm:$0xff] %vm277, %v361
        %395 = vst.msk [vmem:[%s365 + $0x159] sm:$0xff] %vm277, %v362
        %396 = vst.msk [vmem:[%s365 + $0x169] sm:$0xff] %vm277, %v363
        %397 = vst.msk [vmem:[%s365 + $0x171] sm:$0xff] %vm277, %v364
        %vm398 = vcmask 64512
        %399 = vst.msk [vmem:[#allocation3] sm:$0xff] %vm398, 0.0
        %400 = vst.msk [vmem:[#allocation3 + $0x8] sm:$0xff] %vm398, 0.0
        %vm401 = vcmask 58368
        %402 = vst.msk [vmem:[#allocation3 + $0x10] sm:$0x3] %vm401, 0.0
        %403 = vst.msk [vmem:[#allocation3 + $0x18] sm:$0xff] %vm398, 0.0
        %404 = vst.msk [vmem:[#allocation3 + $0x20] sm:$0xff] %vm398, 0.0
        %405 = vst.msk [vmem:[#allocation3 + $0x28] sm:$0x3] %vm401, 0.0
        %406 = vst.msk [vmem:[#allocation3 + $0x30] sm:$0xff] %vm398, 0.0
        %407 = vst.msk [vmem:[#allocation3 + $0x38] sm:$0xff] %vm398, 0.0
        %408 = vst.msk [vmem:[#allocation3 + $0x40] sm:$0x3] %vm401, 0.0
        %409 = vst.msk [vmem:[#allocation3 + $0x48] sm:$0xff] %vm398, 0.0
        %410 = vst.msk [vmem:[#allocation3 + $0x50] sm:$0xff] %vm398, 0.0
        %411 = vst.msk [vmem:[#allocation3 + $0x58] sm:$0x3] %vm401, 0.0
        %412 = vst.msk [vmem:[#allocation3 + $0x60] sm:$0xff] %vm398, 0.0
        %413 = vst.msk [vmem:[#allocation3 + $0x68] sm:$0xff] %vm398, 0.0
        %414 = vst.msk [vmem:[#allocation3 + $0x70] sm:$0x3] %vm401, 0.0
        %415 = vst.msk [vmem:[#allocation3 + $0x78] sm:$0xff] %vm398, 0.0
        %416 = vst.msk [vmem:[#allocation3 + $0x80] sm:$0xff] %vm398, 0.0
        %417 = vst.msk [vmem:[#allocation3 + $0x88] sm:$0x3] %vm401, 0.0
        %418 = vst.msk [vmem:[#allocation3 + $0x90] sm:$0xff] %vm398, 0.0
        %419 = vst.msk [vmem:[#allocation3 + $0x98] sm:$0xff] %vm398, 0.0
        %420 = vst.msk [vmem:[#allocation3 + $0xa0] sm:$0x3] %vm401, 0.0
        %421 = vst.msk [vmem:[#allocation3 + $0xa8] sm:$0xff] %vm398, 0.0
        %422 = vst.msk [vmem:[#allocation3 + $0xb0] sm:$0xff] %vm398, 0.0
        %423 = vst.msk [vmem:[#allocation3 + $0xb8] sm:$0x3] %vm401, 0.0
        %424 = vst.msk [vmem:[#allocation3 + $0xc0] sm:$0xff] %vm398, 0.0
        %425 = vst.msk [vmem:[#allocation3 + $0xc8] sm:$0xff] %vm398, 0.0
        %426 = vst.msk [vmem:[#allocation3 + $0xd0] sm:$0x3] %vm401, 0.0
        %427 = vst.msk [vmem:[#allocation3 + $0xd8] sm:$0xff] %vm398, 0.0
        %428 = vst.msk [vmem:[#allocation3 + $0xe0] sm:$0xff] %vm398, 0.0
        %429 = vst.msk [vmem:[#allocation3 + $0xe8] sm:$0x3] %vm401, 0.0
        %430 = vst.msk [vmem:[#allocation3 + $0xf0] sm:$0xff] %vm398, 0.0
        %431 = vst.msk [vmem:[#allocation3 + $0xf8] sm:$0xff] %vm398, 0.0
        %432 = vst.msk [vmem:[#allocation3 + $0x100] sm:$0x3] %vm401, 0.0
        %433 = vst.msk [vmem:[#allocation3 + $0x108] sm:$0xff] %vm398, 0.0
        %434 = vst.msk [vmem:[#allocation3 + $0x110] sm:$0xff] %vm398, 0.0
        %435 = vst.msk [vmem:[#allocation3 + $0x118] sm:$0x3] %vm401, 0.0
        %436 = vst.msk [vmem:[#allocation3 + $0x120] sm:$0xff] %vm398, 0.0
        %437 = vst.msk [vmem:[#allocation3 + $0x128] sm:$0xff] %vm398, 0.0
        %438 = vst.msk [vmem:[#allocation3 + $0x130] sm:$0x3] %vm401, 0.0
        %439 = vst.msk [vmem:[#allocation3 + $0x138] sm:$0xff] %vm398, 0.0
        %440 = vst.msk [vmem:[#allocation3 + $0x140] sm:$0xff] %vm398, 0.0
        %441 = vst.msk [vmem:[#allocation3 + $0x148] sm:$0x3] %vm401, 0.0
        %442 = vst.msk [vmem:[#allocation3 + $0x150] sm:$0xff] %vm398, 0.0
        %443 = vst.msk [vmem:[#allocation3 + $0x158] sm:$0xff] %vm398, 0.0
        %444 = vst.msk [vmem:[#allocation3 + $0x160] sm:$0x3] %vm401, 0.0
        %445 = vst.msk [vmem:[#allocation3 + $0x168] sm:$0xff] %vm398, 0.0
        %446 = vst.msk [vmem:[#allocation3 + $0x170] sm:$0xff] %vm398, 0.0
        %447 = vst.msk [vmem:[#allocation3 + $0x178] sm:$0x3] %vm401, 0.0
        %448 = vst.msk [vmem:[#allocation3 + $0x180] sm:$0xff] %vm398, 0.0
        %449 = vst.msk [vmem:[#allocation3 + $0x188] sm:$0xff] %vm398, 0.0
        %450 = vst.msk [vmem:[#allocation3 + $0x190] sm:$0x3] %vm401, 0.0
        %451 = vst.msk [vmem:[#allocation3 + $0x198] sm:$0xff] %vm398, 0.0
        %452 = vst.msk [vmem:[#allocation3 + $0x1a0] sm:$0xff] %vm398, 0.0
        %453 = vst.msk [vmem:[#allocation3 + $0x1a8] sm:$0x3] %vm401, 0.0
        %v454 = vld [vmem:[#allocation2] sm:$0xff]
        %v455 = vld [vmem:[#allocation2 + $0x8] sm:$0xff]
        %v456 = vld [vmem:[#allocation2 + $0x18] sm:$0xff]
        %v457 = vld [vmem:[#allocation2 + $0x20] sm:$0xff]
        %v458 = vld [vmem:[#allocation2 + $0x30] sm:$0xff]
        %v459 = vld [vmem:[#allocation2 + $0x38] sm:$0xff]
        %v460 = vld [vmem:[#allocation2 + $0x48] sm:$0xff]
        %v461 = vld [vmem:[#allocation2 + $0x50] sm:$0xff]
        %v462 = vld [vmem:[#allocation2 + $0x60] sm:$0xff]
        %v463 = vld [vmem:[#allocation2 + $0x68] sm:$0xff]
        %v464 = vld [vmem:[#allocation2 + $0x78] sm:$0xff]
        %v465 = vld [vmem:[#allocation2 + $0x80] sm:$0xff]
        %v466 = vld [vmem:[#allocation2 + $0x90] sm:$0xff]
        %v467 = vld [vmem:[#allocation2 + $0x98] sm:$0xff]
        %v468 = vld [vmem:[#allocation2 + $0xa8] sm:$0xff]
        %v469 = vld [vmem:[#allocation2 + $0xb0] sm:$0xff]
        %v470 = vld [vmem:[#allocation2 + $0xc0] sm:$0xff]
        %v471 = vld [vmem:[#allocation2 + $0xc8] sm:$0xff]
        %v472 = vld [vmem:[#allocation2 + $0xd8] sm:$0xff]
        %v473 = vld [vmem:[#allocation2 + $0xe0] sm:$0xff]
        %v474 = vld [vmem:[#allocation2 + $0xf0] sm:$0xff]
        %v475 = vld [vmem:[#allocation2 + $0xf8] sm:$0xff]
        %v476 = vld [vmem:[#allocation2 + $0x108] sm:$0xff]
        %v477 = vld [vmem:[#allocation2 + $0x110] sm:$0xff]
        %v478 = vld [vmem:[#allocation2 + $0x120] sm:$0xff]
        %v479 = vld [vmem:[#allocation2 + $0x128] sm:$0xff]
        %v480 = vld [vmem:[#allocation2 + $0x138] sm:$0xff]
        %v481 = vld [vmem:[#allocation2 + $0x140] sm:$0xff]
        %v482 = vld [vmem:[#allocation2 + $0x150] sm:$0xff]
        %v483 = vld [vmem:[#allocation2 + $0x158] sm:$0xff]
        %v484 = vld [vmem:[#allocation2 + $0x168] sm:$0xff]
        %v485 = vld [vmem:[#allocation2 + $0x170] sm:$0xff]
        %v486 = vld [vmem:[#allocation2 + $0x1] sm:$0xff]
        %v487 = vld [vmem:[#allocation2 + $0x9] sm:$0xff]
        %v488 = vld [vmem:[#allocation2 + $0x19] sm:$0xff]
        %v489 = vld [vmem:[#allocation2 + $0x21] sm:$0xff]
        %v490 = vld [vmem:[#allocation2 + $0x31] sm:$0xff]
        %v491 = vld [vmem:[#allocation2 + $0x39] sm:$0xff]
        %v492 = vld [vmem:[#allocation2 + $0x49] sm:$0xff]
        %v493 = vld [vmem:[#allocation2 + $0x51] sm:$0xff]
        %v494 = vld [vmem:[#allocation2 + $0x61] sm:$0xff]
        %v495 = vld [vmem:[#allocation2 + $0x69] sm:$0xff]
        %v496 = vld [vmem:[#allocation2 + $0x79] sm:$0xff]
        %v497 = vld [vmem:[#allocation2 + $0x81] sm:$0xff]
        %v498 = vld [vmem:[#allocation2 + $0x91] sm:$0xff]
        %v499 = vld [vmem:[#allocation2 + $0x99] sm:$0xff]
        %v500 = vld [vmem:[#allocation2 + $0xa9] sm:$0xff]
        %v501 = vld [vmem:[#allocation2 + $0xb1] sm:$0xff]
        %v502 = vld [vmem:[#allocation2 + $0xc1] sm:$0xff]
        %v503 = vld [vmem:[#allocation2 + $0xc9] sm:$0xff]
        %v504 = vld [vmem:[#allocation2 + $0xd9] sm:$0xff]
        %v505 = vld [vmem:[#allocation2 + $0xe1] sm:$0xff]
        %v506 = vld [vmem:[#allocation2 + $0xf1] sm:$0xff]
        %v507 = vld [vmem:[#allocation2 + $0xf9] sm:$0xff]
        %v508 = vld [vmem:[#allocation2 + $0x109] sm:$0xff]
        %v509 = vld [vmem:[#allocation2 + $0x111] sm:$0xff]
        %v510 = vld [vmem:[#allocation2 + $0x121] sm:$0xff]
        %v511 = vld [vmem:[#allocation2 + $0x129] sm:$0xff]
        %v512 = vld [vmem:[#allocation2 + $0x139] sm:$0xff]
        %v513 = vld [vmem:[#allocation2 + $0x141] sm:$0xff]
        %v514 = vld [vmem:[#allocation2 + $0x151] sm:$0xff]
        %v515 = vld [vmem:[#allocation2 + $0x159] sm:$0xff]
        %v516 = vld [vmem:[#allocation2 + $0x169] sm:$0xff]
        %v517 = vld [vmem:[#allocation2 + $0x171] sm:$0xff]
        %v518 = vld [vmem:[#allocation2 + $0x2] sm:$0xff]
        %v519 = vld [vmem:[#allocation2 + $0xa] sm:$0xff]
        %v520 = vld [vmem:[#allocation2 + $0x1a] sm:$0xff]
        %v521 = vld [vmem:[#allocation2 + $0x22] sm:$0xff]
        %v522 = vld [vmem:[#allocation2 + $0x32] sm:$0xff]
        %v523 = vld [vmem:[#allocation2 + $0x3a] sm:$0xff]
        %v524 = vld [vmem:[#allocation2 + $0x4a] sm:$0xff]
        %v525 = vld [vmem:[#allocation2 + $0x52] sm:$0xff]
        %v526 = vld [vmem:[#allocation2 + $0x62] sm:$0xff]
        %v527 = vld [vmem:[#allocation2 + $0x6a] sm:$0xff]
        %v528 = vld [vmem:[#allocation2 + $0x7a] sm:$0xff]
        %v529 = vld [vmem:[#allocation2 + $0x82] sm:$0xff]
        %v530 = vld [vmem:[#allocation2 + $0x92] sm:$0xff]
        %v531 = vld [vmem:[#allocation2 + $0x9a] sm:$0xff]
        %v532 = vld [vmem:[#allocation2 + $0xaa] sm:$0xff]
        %v533 = vld [vmem:[#allocation2 + $0xb2] sm:$0xff]
        %v534 = vld [vmem:[#allocation2 + $0xc2] sm:$0xff]
        %v535 = vld [vmem:[#allocation2 + $0xca] sm:$0xff]
        %v536 = vld [vmem:[#allocation2 + $0xda] sm:$0xff]
        %v537 = vld [vmem:[#allocation2 + $0xe2] sm:$0xff]
        %v538 = vld [vmem:[#allocation2 + $0xf2] sm:$0xff]
        %v539 = vld [vmem:[#allocation2 + $0xfa] sm:$0xff]
        %v540 = vld [vmem:[#allocation2 + $0x10a] sm:$0xff]
        %v541 = vld [vmem:[#allocation2 + $0x112] sm:$0xff]
        %v542 = vld [vmem:[#allocation2 + $0x122] sm:$0xff]
        %v543 = vld [vmem:[#allocation2 + $0x12a] sm:$0xff]
        %v544 = vld [vmem:[#allocation2 + $0x13a] sm:$0xff]
        %v545 = vld [vmem:[#allocation2 + $0x142] sm:$0xff]
        %v546 = vld [vmem:[#allocation2 + $0x152] sm:$0xff]
        %v547 = vld [vmem:[#allocation2 + $0x15a] sm:$0xff]
        %v548 = vld [vmem:[#allocation2 + $0x16a] sm:$0xff]
        %v549 = vld [vmem:[#allocation2 + $0x172] sm:$0xff]
        %v550 = vld [vmem:[%s365] sm:$0xff]
        %v551 = vld [vmem:[%s365 + $0x8] sm:$0xff]
        %v552 = vld [vmem:[%s365 + $0x18] sm:$0xff]
        %v553 = vld [vmem:[%s365 + $0x20] sm:$0xff]
        %v554 = vld [vmem:[%s365 + $0x30] sm:$0xff]
        %v555 = vld [vmem:[%s365 + $0x38] sm:$0xff]
        %v556 = vld [vmem:[%s365 + $0x48] sm:$0xff]
        %v557 = vld [vmem:[%s365 + $0x50] sm:$0xff]
        %v558 = vld [vmem:[%s365 + $0x60] sm:$0xff]
        %v559 = vld [vmem:[%s365 + $0x68] sm:$0xff]
        %v560 = vld [vmem:[%s365 + $0x78] sm:$0xff]
        %v561 = vld [vmem:[%s365 + $0x80] sm:$0xff]
        %v562 = vld [vmem:[%s365 + $0x90] sm:$0xff]
        %v563 = vld [vmem:[%s365 + $0x98] sm:$0xff]
        %v564 = vld [vmem:[%s365 + $0xa8] sm:$0xff]
        %v565 = vld [vmem:[%s365 + $0xb0] sm:$0xff]
        %v566 = vld [vmem:[%s365 + $0xc0] sm:$0xff]
        %v567 = vld [vmem:[%s365 + $0xc8] sm:$0xff]
        %v568 = vld [vmem:[%s365 + $0xd8] sm:$0xff]
        %v569 = vld [vmem:[%s365 + $0xe0] sm:$0xff]
        %v570 = vld [vmem:[%s365 + $0xf0] sm:$0xff]
        %v571 = vld [vmem:[%s365 + $0xf8] sm:$0xff]
        %v572 = vld [vmem:[%s365 + $0x108] sm:$0xff]
        %v573 = vld [vmem:[%s365 + $0x110] sm:$0xff]
        %v574 = vld [vmem:[%s365 + $0x120] sm:$0xff]
        %v575 = vld [vmem:[%s365 + $0x128] sm:$0xff]
        %v576 = vld [vmem:[%s365 + $0x138] sm:$0xff]
        %v577 = vld [vmem:[%s365 + $0x140] sm:$0xff]
        %v578 = vld [vmem:[%s365 + $0x150] sm:$0xff]
        %v579 = vld [vmem:[%s365 + $0x158] sm:$0xff]
        %v580 = vld [vmem:[%s365 + $0x168] sm:$0xff]
        %v581 = vld [vmem:[%s365 + $0x170] sm:$0xff]
        %v582 = vld [vmem:[%s365 + $0x1] sm:$0xff]
        %v583 = vld [vmem:[%s365 + $0x9] sm:$0xff]
        %v584 = vld [vmem:[%s365 + $0x19] sm:$0xff]
        %v585 = vld [vmem:[%s365 + $0x21] sm:$0xff]
        %v586 = vld [vmem:[%s365 + $0x31] sm:$0xff]
        %v587 = vld [vmem:[%s365 + $0x39] sm:$0xff]
        %v588 = vld [vmem:[%s365 + $0x49] sm:$0xff]
        %v589 = vld [vmem:[%s365 + $0x51] sm:$0xff]
        %v590 = vld [vmem:[%s365 + $0x61] sm:$0xff]
        %v591 = vld [vmem:[%s365 + $0x69] sm:$0xff]
        %v592 = vld [vmem:[%s365 + $0x79] sm:$0xff]
        %v593 = vld [vmem:[%s365 + $0x81] sm:$0xff]
        %v594 = vld [vmem:[%s365 + $0x91] sm:$0xff]
        %v595 = vld [vmem:[%s365 + $0x99] sm:$0xff]
        %v596 = vld [vmem:[%s365 + $0xa9] sm:$0xff]
        %v597 = vld [vmem:[%s365 + $0xb1] sm:$0xff]
        %v598 = vld [vmem:[%s365 + $0xc1] sm:$0xff]
        %v599 = vld [vmem:[%s365 + $0xc9] sm:$0xff]
        %v600 = vld [vmem:[%s365 + $0xd9] sm:$0xff]
        %v601 = vld [vmem:[%s365 + $0xe1] sm:$0xff]
        %v602 = vld [vmem:[%s365 + $0xf1] sm:$0xff]
        %v603 = vld [vmem:[%s365 + $0xf9] sm:$0xff]
        %v604 = vld [vmem:[%s365 + $0x109] sm:$0xff]
        %v605 = vld [vmem:[%s365 + $0x111] sm:$0xff]
        %v606 = vld [vmem:[%s365 + $0x121] sm:$0xff]
        %v607 = vld [vmem:[%s365 + $0x129] sm:$0xff]
        %v608 = vld [vmem:[%s365 + $0x139] sm:$0xff]
        %v609 = vld [vmem:[%s365 + $0x141] sm:$0xff]
        %v610 = vld [vmem:[%s365 + $0x151] sm:$0xff]
        %v611 = vld [vmem:[%s365 + $0x159] sm:$0xff]
        %v612 = vld [vmem:[%s365 + $0x169] sm:$0xff]
        %v613 = vld [vmem:[%s365 + $0x171] sm:$0xff]
        %v614 = vld [vmem:[%s365 + $0x2] sm:$0xff]
        %v615 = vld [vmem:[%s365 + $0xa] sm:$0xff]
        %v616 = vld [vmem:[%s365 + $0x1a] sm:$0xff]
        %v617 = vld [vmem:[%s365 + $0x22] sm:$0xff]
        %v618 = vld [vmem:[%s365 + $0x32] sm:$0xff]
        %v619 = vld [vmem:[%s365 + $0x3a] sm:$0xff]
        %v620 = vld [vmem:[%s365 + $0x4a] sm:$0xff]
        %v621 = vld [vmem:[%s365 + $0x52] sm:$0xff]
        %v622 = vld [vmem:[%s365 + $0x62] sm:$0xff]
        %v623 = vld [vmem:[%s365 + $0x6a] sm:$0xff]
        %v624 = vld [vmem:[%s365 + $0x7a] sm:$0xff]
        %v625 = vld [vmem:[%s365 + $0x82] sm:$0xff]
        %v626 = vld [vmem:[%s365 + $0x92] sm:$0xff]
        %v627 = vld [vmem:[%s365 + $0x9a] sm:$0xff]
        %v628 = vld [vmem:[%s365 + $0xaa] sm:$0xff]
        %v629 = vld [vmem:[%s365 + $0xb2] sm:$0xff]
        %v630 = vld [vmem:[%s365 + $0xc2] sm:$0xff]
        %v631 = vld [vmem:[%s365 + $0xca] sm:$0xff]
        %v632 = vld [vmem:[%s365 + $0xda] sm:$0xff]
        %v633 = vld [vmem:[%s365 + $0xe2] sm:$0xff]
        %v634 = vld [vmem:[%s365 + $0xf2] sm:$0xff]
        %v635 = vld [vmem:[%s365 + $0xfa] sm:$0xff]
        %v636 = vld [vmem:[%s365 + $0x10a] sm:$0xff]
        %v637 = vld [vmem:[%s365 + $0x112] sm:$0xff]
        %v638 = vld [vmem:[%s365 + $0x122] sm:$0xff]
        %v639 = vld [vmem:[%s365 + $0x12a] sm:$0xff]
        %v640 = vld [vmem:[%s365 + $0x13a] sm:$0xff]
        %v641 = vld [vmem:[%s365 + $0x142] sm:$0xff]
        %v642 = vld [vmem:[%s365 + $0x152] sm:$0xff]
        %v643 = vld [vmem:[%s365 + $0x15a] sm:$0xff]
        %v644 = vld [vmem:[%s365 + $0x16a] sm:$0xff]
        %v645 = vld [vmem:[%s365 + $0x172] sm:$0xff]
        %s646 = scalar_lea.vmem [#allocation2], 48
        %v647 = vld [vmem:[%s646] sm:$0xff]
        %v648 = vld [vmem:[%s646 + $0x8] sm:$0xff]
        %v649 = vld [vmem:[%s646 + $0x18] sm:$0xff]
        %v650 = vld [vmem:[%s646 + $0x20] sm:$0xff]
        %v651 = vld [vmem:[%s646 + $0x30] sm:$0xff]
        %v652 = vld [vmem:[%s646 + $0x38] sm:$0xff]
        %v653 = vld [vmem:[%s646 + $0x48] sm:$0xff]
        %v654 = vld [vmem:[%s646 + $0x50] sm:$0xff]
        %v655 = vld [vmem:[%s646 + $0x60] sm:$0xff]
        %v656 = vld [vmem:[%s646 + $0x68] sm:$0xff]
        %v657 = vld [vmem:[%s646 + $0x78] sm:$0xff]
        %v658 = vld [vmem:[%s646 + $0x80] sm:$0xff]
        %v659 = vld [vmem:[%s646 + $0x90] sm:$0xff]
        %v660 = vld [vmem:[%s646 + $0x98] sm:$0xff]
        %v661 = vld [vmem:[%s646 + $0xa8] sm:$0xff]
        %v662 = vld [vmem:[%s646 + $0xb0] sm:$0xff]
        %v663 = vld [vmem:[%s646 + $0xc0] sm:$0xff]
        %v664 = vld [vmem:[%s646 + $0xc8] sm:$0xff]
        %v665 = vld [vmem:[%s646 + $0xd8] sm:$0xff]
        %v666 = vld [vmem:[%s646 + $0xe0] sm:$0xff]
        %v667 = vld [vmem:[%s646 + $0xf0] sm:$0xff]
        %v668 = vld [vmem:[%s646 + $0xf8] sm:$0xff]
        %v669 = vld [vmem:[%s646 + $0x108] sm:$0xff]
        %v670 = vld [vmem:[%s646 + $0x110] sm:$0xff]
        %v671 = vld [vmem:[%s646 + $0x120] sm:$0xff]
        %v672 = vld [vmem:[%s646 + $0x128] sm:$0xff]
        %v673 = vld [vmem:[%s646 + $0x138] sm:$0xff]
        %v674 = vld [vmem:[%s646 + $0x140] sm:$0xff]
        %v675 = vld [vmem:[%s646 + $0x150] sm:$0xff]
        %v676 = vld [vmem:[%s646 + $0x158] sm:$0xff]
        %v677 = vld [vmem:[%s646 + $0x168] sm:$0xff]
        %v678 = vld [vmem:[%s646 + $0x170] sm:$0xff]
        %v679 = vld [vmem:[%s646 + $0x1] sm:$0xff]
        %v680 = vld [vmem:[%s646 + $0x9] sm:$0xff]
        %v681 = vld [vmem:[%s646 + $0x19] sm:$0xff]
        %v682 = vld [vmem:[%s646 + $0x21] sm:$0xff]
        %v683 = vld [vmem:[%s646 + $0x31] sm:$0xff]
        %v684 = vld [vmem:[%s646 + $0x39] sm:$0xff]
        %v685 = vld [vmem:[%s646 + $0x49] sm:$0xff]
        %v686 = vld [vmem:[%s646 + $0x51] sm:$0xff]
        %v687 = vld [vmem:[%s646 + $0x61] sm:$0xff]
        %v688 = vld [vmem:[%s646 + $0x69] sm:$0xff]
        %v689 = vld [vmem:[%s646 + $0x79] sm:$0xff]
        %v690 = vld [vmem:[%s646 + $0x81] sm:$0xff]
        %v691 = vld [vmem:[%s646 + $0x91] sm:$0xff]
        %v692 = vld [vmem:[%s646 + $0x99] sm:$0xff]
        %v693 = vld [vmem:[%s646 + $0xa9] sm:$0xff]
        %v694 = vld [vmem:[%s646 + $0xb1] sm:$0xff]
        %v695 = vld [vmem:[%s646 + $0xc1] sm:$0xff]
        %v696 = vld [vmem:[%s646 + $0xc9] sm:$0xff]
        %v697 = vld [vmem:[%s646 + $0xd9] sm:$0xff]
        %v698 = vld [vmem:[%s646 + $0xe1] sm:$0xff]
        %v699 = vld [vmem:[%s646 + $0xf1] sm:$0xff]
        %v700 = vld [vmem:[%s646 + $0xf9] sm:$0xff]
        %v701 = vld [vmem:[%s646 + $0x109] sm:$0xff]
        %v702 = vld [vmem:[%s646 + $0x111] sm:$0xff]
        %v703 = vld [vmem:[%s646 + $0x121] sm:$0xff]
        %v704 = vld [vmem:[%s646 + $0x129] sm:$0xff]
        %v705 = vld [vmem:[%s646 + $0x139] sm:$0xff]
        %v706 = vld [vmem:[%s646 + $0x141] sm:$0xff]
        %v707 = vld [vmem:[%s646 + $0x151] sm:$0xff]
        %v708 = vld [vmem:[%s646 + $0x159] sm:$0xff]
        %v709 = vld [vmem:[%s646 + $0x169] sm:$0xff]
        %v710 = vld [vmem:[%s646 + $0x171] sm:$0xff]
        %v711 = vld [vmem:[%s646 + $0x2] sm:$0xff]
        %v712 = vld [vmem:[%s646 + $0xa] sm:$0xff]
        %v713 = vld [vmem:[%s646 + $0x1a] sm:$0xff]
        %v714 = vld [vmem:[%s646 + $0x22] sm:$0xff]
        %v715 = vld [vmem:[%s646 + $0x32] sm:$0xff]
        %v716 = vld [vmem:[%s646 + $0x3a] sm:$0xff]
        %v717 = vld [vmem:[%s646 + $0x4a] sm:$0xff]
        %v718 = vld [vmem:[%s646 + $0x52] sm:$0xff]
        %v719 = vld [vmem:[%s646 + $0x62] sm:$0xff]
        %v720 = vld [vmem:[%s646 + $0x6a] sm:$0xff]
        %v721 = vld [vmem:[%s646 + $0x7a] sm:$0xff]
        %v722 = vld [vmem:[%s646 + $0x82] sm:$0xff]
        %v723 = vld [vmem:[%s646 + $0x92] sm:$0xff]
        %v724 = vld [vmem:[%s646 + $0x9a] sm:$0xff]
        %v725 = vld [vmem:[%s646 + $0xaa] sm:$0xff]
        %v726 = vld [vmem:[%s646 + $0xb2] sm:$0xff]
        %v727 = vld [vmem:[%s646 + $0xc2] sm:$0xff]
        %v728 = vld [vmem:[%s646 + $0xca] sm:$0xff]
        %v729 = vld [vmem:[%s646 + $0xda] sm:$0xff]
        %v730 = vld [vmem:[%s646 + $0xe2] sm:$0xff]
        %v731 = vld [vmem:[%s646 + $0xf2] sm:$0xff]
        %v732 = vld [vmem:[%s646 + $0xfa] sm:$0xff]
        %v733 = vld [vmem:[%s646 + $0x10a] sm:$0xff]
        %v734 = vld [vmem:[%s646 + $0x112] sm:$0xff]
        %v735 = vld [vmem:[%s646 + $0x122] sm:$0xff]
        %v736 = vld [vmem:[%s646 + $0x12a] sm:$0xff]
        %v737 = vld [vmem:[%s646 + $0x13a] sm:$0xff]
        %v738 = vld [vmem:[%s646 + $0x142] sm:$0xff]
        %v739 = vld [vmem:[%s646 + $0x152] sm:$0xff]
        %v740 = vld [vmem:[%s646 + $0x15a] sm:$0xff]
        %v741 = vld [vmem:[%s646 + $0x16a] sm:$0xff]
        %v742 = vld [vmem:[%s646 + $0x172] sm:$0xff]
        %775 = vrot.lane.b32.xlu0 %v486, 4
        %v776 = vpop.permute.xlu0 %775
        %777 = vrot.lane.b32.xlu0 %v487, 4
        %v778 = vpop.permute.xlu0 %777
        %779 = vrot.lane.b32.xlu0 %v488, 4
        %v780 = vpop.permute.xlu0 %779
        %781 = vrot.lane.b32.xlu0 %v489, 4
        %v782 = vpop.permute.xlu0 %781
        %783 = vrot.lane.b32.xlu0 %v490, 4
        %v784 = vpop.permute.xlu0 %783
        %785 = vrot.lane.b32.xlu0 %v491, 4
        %v786 = vpop.permute.xlu0 %785
        %787 = vrot.lane.b32.xlu0 %v492, 4
        %v788 = vpop.permute.xlu0 %787
        %789 = vrot.lane.b32.xlu0 %v493, 4
        %v790 = vpop.permute.xlu0 %789
        %791 = vrot.lane.b32.xlu0 %v494, 4
        %v792 = vpop.permute.xlu0 %791
        %793 = vrot.lane.b32.xlu0 %v495, 4
        %v794 = vpop.permute.xlu0 %793
        %795 = vrot.lane.b32.xlu0 %v496, 4
        %v796 = vpop.permute.xlu0 %795
        %797 = vrot.lane.b32.xlu0 %v497, 4
        %v798 = vpop.permute.xlu0 %797
        %799 = vrot.lane.b32.xlu0 %v498, 4
        %v800 = vpop.permute.xlu0 %799
        %801 = vrot.lane.b32.xlu0 %v499, 4
        %v802 = vpop.permute.xlu0 %801
        %803 = vrot.lane.b32.xlu0 %v500, 4
        %v804 = vpop.permute.xlu0 %803
        %805 = vrot.lane.b32.xlu0 %v501, 4
        %v806 = vpop.permute.xlu0 %805
        %807 = vrot.lane.b32.xlu0 %v502, 4
        %v808 = vpop.permute.xlu0 %807
        %809 = vrot.lane.b32.xlu0 %v503, 4
        %v810 = vpop.permute.xlu0 %809
        %811 = vrot.lane.b32.xlu0 %v504, 4
        %v812 = vpop.permute.xlu0 %811
        %813 = vrot.lane.b32.xlu0 %v505, 4
        %v814 = vpop.permute.xlu0 %813
        %815 = vrot.lane.b32.xlu0 %v506, 4
        %v816 = vpop.permute.xlu0 %815
        %817 = vrot.lane.b32.xlu0 %v507, 4
        %v818 = vpop.permute.xlu0 %817
        %819 = vrot.lane.b32.xlu0 %v508, 4
        %v820 = vpop.permute.xlu0 %819
        %821 = vrot.lane.b32.xlu0 %v509, 4
        %v822 = vpop.permute.xlu0 %821
        %823 = vrot.lane.b32.xlu0 %v510, 4
        %v824 = vpop.permute.xlu0 %823
        %825 = vrot.lane.b32.xlu0 %v511, 4
        %v826 = vpop.permute.xlu0 %825
        %827 = vrot.lane.b32.xlu0 %v512, 4
        %v828 = vpop.permute.xlu0 %827
        %829 = vrot.lane.b32.xlu0 %v513, 4
        %v830 = vpop.permute.xlu0 %829
        %831 = vrot.lane.b32.xlu0 %v514, 4
        %v832 = vpop.permute.xlu0 %831
        %833 = vrot.lane.b32.xlu0 %v515, 4
        %v834 = vpop.permute.xlu0 %833
        %835 = vrot.lane.b32.xlu0 %v516, 4
        %v836 = vpop.permute.xlu0 %835
        %837 = vrot.lane.b32.xlu0 %v517, 4
        %v838 = vpop.permute.xlu0 %837
        %903 = vrot.lane.b32.xlu0 %v518, 8
        %v904 = vpop.permute.xlu0 %903
        %905 = vrot.lane.b32.xlu0 %v519, 8
        %v906 = vpop.permute.xlu0 %905
        %907 = vrot.lane.b32.xlu0 %v520, 8
        %v908 = vpop.permute.xlu0 %907
        %909 = vrot.lane.b32.xlu0 %v521, 8
        %v910 = vpop.permute.xlu0 %909
        %911 = vrot.lane.b32.xlu0 %v522, 8
        %v912 = vpop.permute.xlu0 %911
        %913 = vrot.lane.b32.xlu0 %v523, 8
        %v914 = vpop.permute.xlu0 %913
        %915 = vrot.lane.b32.xlu0 %v524, 8
        %v916 = vpop.permute.xlu0 %915
        %917 = vrot.lane.b32.xlu0 %v525, 8
        %v918 = vpop.permute.xlu0 %917
        %919 = vrot.lane.b32.xlu0 %v526, 8
        %v920 = vpop.permute.xlu0 %919
        %921 = vrot.lane.b32.xlu0 %v527, 8
        %v922 = vpop.permute.xlu0 %921
        %923 = vrot.lane.b32.xlu0 %v528, 8
        %v924 = vpop.permute.xlu0 %923
        %925 = vrot.lane.b32.xlu0 %v529, 8
        %v926 = vpop.permute.xlu0 %925
        %927 = vrot.lane.b32.xlu0 %v530, 8
        %v928 = vpop.permute.xlu0 %927
        %929 = vrot.lane.b32.xlu0 %v531, 8
        %v930 = vpop.permute.xlu0 %929
        %931 = vrot.lane.b32.xlu0 %v532, 8
        %v932 = vpop.permute.xlu0 %931
        %933 = vrot.lane.b32.xlu0 %v533, 8
        %v934 = vpop.permute.xlu0 %933
        %935 = vrot.lane.b32.xlu0 %v534, 8
        %v936 = vpop.permute.xlu0 %935
        %937 = vrot.lane.b32.xlu0 %v535, 8
        %v938 = vpop.permute.xlu0 %937
        %939 = vrot.lane.b32.xlu0 %v536, 8
        %v940 = vpop.permute.xlu0 %939
        %941 = vrot.lane.b32.xlu0 %v537, 8
        %v942 = vpop.permute.xlu0 %941
        %943 = vrot.lane.b32.xlu0 %v538, 8
        %v944 = vpop.permute.xlu0 %943
        %945 = vrot.lane.b32.xlu0 %v539, 8
        %v946 = vpop.permute.xlu0 %945
        %947 = vrot.lane.b32.xlu0 %v540, 8
        %v948 = vpop.permute.xlu0 %947
        %949 = vrot.lane.b32.xlu0 %v541, 8
        %v950 = vpop.permute.xlu0 %949
        %951 = vrot.lane.b32.xlu0 %v542, 8
        %v952 = vpop.permute.xlu0 %951
        %953 = vrot.lane.b32.xlu0 %v543, 8
        %v954 = vpop.permute.xlu0 %953
        %955 = vrot.lane.b32.xlu0 %v544, 8
        %v956 = vpop.permute.xlu0 %955
        %957 = vrot.lane.b32.xlu0 %v545, 8
        %v958 = vpop.permute.xlu0 %957
        %959 = vrot.lane.b32.xlu0 %v546, 8
        %v960 = vpop.permute.xlu0 %959
        %961 = vrot.lane.b32.xlu0 %v547, 8
        %v962 = vpop.permute.xlu0 %961
        %963 = vrot.lane.b32.xlu0 %v548, 8
        %v964 = vpop.permute.xlu0 %963
        %965 = vrot.lane.b32.xlu0 %v549, 8
        %v966 = vpop.permute.xlu0 %965
        %1031 = vrot.lane.b32.xlu0 %v550, 12
        %v1032 = vpop.permute.xlu0 %1031
        %1033 = vrot.lane.b32.xlu0 %v551, 12
        %v1034 = vpop.permute.xlu0 %1033
        %1035 = vrot.lane.b32.xlu0 %v552, 12
        %v1036 = vpop.permute.xlu0 %1035
        %1037 = vrot.lane.b32.xlu0 %v553, 12
        %v1038 = vpop.permute.xlu0 %1037
        %1039 = vrot.lane.b32.xlu0 %v554, 12
        %v1040 = vpop.permute.xlu0 %1039
        %1041 = vrot.lane.b32.xlu0 %v555, 12
        %v1042 = vpop.permute.xlu0 %1041
        %1043 = vrot.lane.b32.xlu0 %v556, 12
        %v1044 = vpop.permute.xlu0 %1043
        %1045 = vrot.lane.b32.xlu0 %v557, 12
        %v1046 = vpop.permute.xlu0 %1045
        %1047 = vrot.lane.b32.xlu0 %v558, 12
        %v1048 = vpop.permute.xlu0 %1047
        %1049 = vrot.lane.b32.xlu0 %v559, 12
        %v1050 = vpop.permute.xlu0 %1049
        %1051 = vrot.lane.b32.xlu0 %v560, 12
        %v1052 = vpop.permute.xlu0 %1051
        %1053 = vrot.lane.b32.xlu0 %v561, 12
        %v1054 = vpop.permute.xlu0 %1053
        %1055 = vrot.lane.b32.xlu0 %v562, 12
        %v1056 = vpop.permute.xlu0 %1055
        %1057 = vrot.lane.b32.xlu0 %v563, 12
        %v1058 = vpop.permute.xlu0 %1057
        %1059 = vrot.lane.b32.xlu0 %v564, 12
        %v1060 = vpop.permute.xlu0 %1059
        %1061 = vrot.lane.b32.xlu0 %v565, 12
        %v1062 = vpop.permute.xlu0 %1061
        %1063 = vrot.lane.b32.xlu0 %v566, 12
        %v1064 = vpop.permute.xlu0 %1063
        %1065 = vrot.lane.b32.xlu0 %v567, 12
        %v1066 = vpop.permute.xlu0 %1065
        %1067 = vrot.lane.b32.xlu0 %v568, 12
        %v1068 = vpop.permute.xlu0 %1067
        %1069 = vrot.lane.b32.xlu0 %v569, 12
        %v1070 = vpop.permute.xlu0 %1069
        %1071 = vrot.lane.b32.xlu0 %v570, 12
        %v1072 = vpop.permute.xlu0 %1071
        %1073 = vrot.lane.b32.xlu0 %v571, 12
        %v1074 = vpop.permute.xlu0 %1073
        %1075 = vrot.lane.b32.xlu0 %v572, 12
        %v1076 = vpop.permute.xlu0 %1075
        %1077 = vrot.lane.b32.xlu0 %v573, 12
        %v1078 = vpop.permute.xlu0 %1077
        %1079 = vrot.lane.b32.xlu0 %v574, 12
        %v1080 = vpop.permute.xlu0 %1079
        %1081 = vrot.lane.b32.xlu0 %v575, 12
        %v1082 = vpop.permute.xlu0 %1081
        %1083 = vrot.lane.b32.xlu0 %v576, 12
        %v1084 = vpop.permute.xlu0 %1083
        %1085 = vrot.lane.b32.xlu0 %v577, 12
        %v1086 = vpop.permute.xlu0 %1085
        %1087 = vrot.lane.b32.xlu0 %v578, 12
        %v1088 = vpop.permute.xlu0 %1087
        %1089 = vrot.lane.b32.xlu0 %v579, 12
        %v1090 = vpop.permute.xlu0 %1089
        %1091 = vrot.lane.b32.xlu0 %v580, 12
        %v1092 = vpop.permute.xlu0 %1091
        %1093 = vrot.lane.b32.xlu0 %v581, 12
        %v1094 = vpop.permute.xlu0 %1093
        %1159 = vrot.lane.b32.xlu0 %v582, 16
        %v1160 = vpop.permute.xlu0 %1159
        %1161 = vrot.lane.b32.xlu0 %v583, 16
        %v1162 = vpop.permute.xlu0 %1161
        %1163 = vrot.lane.b32.xlu0 %v584, 16
        %v1164 = vpop.permute.xlu0 %1163
        %1165 = vrot.lane.b32.xlu0 %v585, 16
        %v1166 = vpop.permute.xlu0 %1165
        %1167 = vrot.lane.b32.xlu0 %v586, 16
        %v1168 = vpop.permute.xlu0 %1167
        %1169 = vrot.lane.b32.xlu0 %v587, 16
        %v1170 = vpop.permute.xlu0 %1169
        %1171 = vrot.lane.b32.xlu0 %v588, 16
        %v1172 = vpop.permute.xlu0 %1171
        %1173 = vrot.lane.b32.xlu0 %v589, 16
        %v1174 = vpop.permute.xlu0 %1173
        %1175 = vrot.lane.b32.xlu0 %v590, 16
        %v1176 = vpop.permute.xlu0 %1175
        %1177 = vrot.lane.b32.xlu0 %v591, 16
        %v1178 = vpop.permute.xlu0 %1177
        %1179 = vrot.lane.b32.xlu0 %v592, 16
        %v1180 = vpop.permute.xlu0 %1179
        %1181 = vrot.lane.b32.xlu0 %v593, 16
        %v1182 = vpop.permute.xlu0 %1181
        %1183 = vrot.lane.b32.xlu0 %v594, 16
        %v1184 = vpop.permute.xlu0 %1183
        %1185 = vrot.lane.b32.xlu0 %v595, 16
        %v1186 = vpop.permute.xlu0 %1185
        %1187 = vrot.lane.b32.xlu0 %v596, 16
        %v1188 = vpop.permute.xlu0 %1187
        %1189 = vrot.lane.b32.xlu0 %v597, 16
        %v1190 = vpop.permute.xlu0 %1189
        %1191 = vrot.lane.b32.xlu0 %v598, 16
        %v1192 = vpop.permute.xlu0 %1191
        %1193 = vrot.lane.b32.xlu0 %v599, 16
        %v1194 = vpop.permute.xlu0 %1193
        %1195 = vrot.lane.b32.xlu0 %v600, 16
        %v1196 = vpop.permute.xlu0 %1195
        %1197 = vrot.lane.b32.xlu0 %v601, 16
        %v1198 = vpop.permute.xlu0 %1197
        %1199 = vrot.lane.b32.xlu0 %v602, 16
        %v1200 = vpop.permute.xlu0 %1199
        %1201 = vrot.lane.b32.xlu0 %v603, 16
        %v1202 = vpop.permute.xlu0 %1201
        %1203 = vrot.lane.b32.xlu0 %v604, 16
        %v1204 = vpop.permute.xlu0 %1203
        %1205 = vrot.lane.b32.xlu0 %v605, 16
        %v1206 = vpop.permute.xlu0 %1205
        %1207 = vrot.lane.b32.xlu0 %v606, 16
        %v1208 = vpop.permute.xlu0 %1207
        %1209 = vrot.lane.b32.xlu0 %v607, 16
        %v1210 = vpop.permute.xlu0 %1209
        %1211 = vrot.lane.b32.xlu0 %v608, 16
        %v1212 = vpop.permute.xlu0 %1211
        %1213 = vrot.lane.b32.xlu0 %v609, 16
        %v1214 = vpop.permute.xlu0 %1213
        %1215 = vrot.lane.b32.xlu0 %v610, 16
        %v1216 = vpop.permute.xlu0 %1215
        %1217 = vrot.lane.b32.xlu0 %v611, 16
        %v1218 = vpop.permute.xlu0 %1217
        %1219 = vrot.lane.b32.xlu0 %v612, 16
        %v1220 = vpop.permute.xlu0 %1219
        %1221 = vrot.lane.b32.xlu0 %v613, 16
        %v1222 = vpop.permute.xlu0 %1221
        %1287 = vrot.lane.b32.xlu0 %v614, 20
        %v1288 = vpop.permute.xlu0 %1287
        %1289 = vrot.lane.b32.xlu0 %v615, 20
        %v1290 = vpop.permute.xlu0 %1289
        %1291 = vrot.lane.b32.xlu0 %v616, 20
        %v1292 = vpop.permute.xlu0 %1291
        %1293 = vrot.lane.b32.xlu0 %v617, 20
        %v1294 = vpop.permute.xlu0 %1293
        %1295 = vrot.lane.b32.xlu0 %v618, 20
        %v1296 = vpop.permute.xlu0 %1295
        %1297 = vrot.lane.b32.xlu0 %v619, 20
        %v1298 = vpop.permute.xlu0 %1297
        %1299 = vrot.lane.b32.xlu0 %v620, 20
        %v1300 = vpop.permute.xlu0 %1299
        %1301 = vrot.lane.b32.xlu0 %v621, 20
        %v1302 = vpop.permute.xlu0 %1301
        %1303 = vrot.lane.b32.xlu0 %v622, 20
        %v1304 = vpop.permute.xlu0 %1303
        %1305 = vrot.lane.b32.xlu0 %v623, 20
        %v1306 = vpop.permute.xlu0 %1305
        %1307 = vrot.lane.b32.xlu0 %v624, 20
        %v1308 = vpop.permute.xlu0 %1307
        %1309 = vrot.lane.b32.xlu0 %v625, 20
        %v1310 = vpop.permute.xlu0 %1309
        %1311 = vrot.lane.b32.xlu0 %v626, 20
        %v1312 = vpop.permute.xlu0 %1311
        %1313 = vrot.lane.b32.xlu0 %v627, 20
        %v1314 = vpop.permute.xlu0 %1313
        %1315 = vrot.lane.b32.xlu0 %v628, 20
        %v1316 = vpop.permute.xlu0 %1315
        %1317 = vrot.lane.b32.xlu0 %v629, 20
        %v1318 = vpop.permute.xlu0 %1317
        %1319 = vrot.lane.b32.xlu0 %v630, 20
        %v1320 = vpop.permute.xlu0 %1319
        %1321 = vrot.lane.b32.xlu0 %v631, 20
        %v1322 = vpop.permute.xlu0 %1321
        %1323 = vrot.lane.b32.xlu0 %v632, 20
        %v1324 = vpop.permute.xlu0 %1323
        %1325 = vrot.lane.b32.xlu0 %v633, 20
        %v1326 = vpop.permute.xlu0 %1325
        %1327 = vrot.lane.b32.xlu0 %v634, 20
        %v1328 = vpop.permute.xlu0 %1327
        %1329 = vrot.lane.b32.xlu0 %v635, 20
        %v1330 = vpop.permute.xlu0 %1329
        %1331 = vrot.lane.b32.xlu0 %v636, 20
        %v1332 = vpop.permute.xlu0 %1331
        %1333 = vrot.lane.b32.xlu0 %v637, 20
        %v1334 = vpop.permute.xlu0 %1333
        %1335 = vrot.lane.b32.xlu0 %v638, 20
        %v1336 = vpop.permute.xlu0 %1335
        %1337 = vrot.lane.b32.xlu0 %v639, 20
        %v1338 = vpop.permute.xlu0 %1337
        %1339 = vrot.lane.b32.xlu0 %v640, 20
        %v1340 = vpop.permute.xlu0 %1339
        %1341 = vrot.lane.b32.xlu0 %v641, 20
        %v1342 = vpop.permute.xlu0 %1341
        %1343 = vrot.lane.b32.xlu0 %v642, 20
        %v1344 = vpop.permute.xlu0 %1343
        %1345 = vrot.lane.b32.xlu0 %v643, 20
        %v1346 = vpop.permute.xlu0 %1345
        %1347 = vrot.lane.b32.xlu0 %v644, 20
        %v1348 = vpop.permute.xlu0 %1347
        %1349 = vrot.lane.b32.xlu0 %v645, 20
        %v1350 = vpop.permute.xlu0 %1349
        %1415 = vrot.lane.b32.xlu0 %v647, 24
        %v1416 = vpop.permute.xlu0 %1415
        %1417 = vrot.lane.b32.xlu0 %v648, 24
        %v1418 = vpop.permute.xlu0 %1417
        %1419 = vrot.lane.b32.xlu0 %v649, 24
        %v1420 = vpop.permute.xlu0 %1419
        %1421 = vrot.lane.b32.xlu0 %v650, 24
        %v1422 = vpop.permute.xlu0 %1421
        %1423 = vrot.lane.b32.xlu0 %v651, 24
        %v1424 = vpop.permute.xlu0 %1423
        %1425 = vrot.lane.b32.xlu0 %v652, 24
        %v1426 = vpop.permute.xlu0 %1425
        %1427 = vrot.lane.b32.xlu0 %v653, 24
        %v1428 = vpop.permute.xlu0 %1427
        %1429 = vrot.lane.b32.xlu0 %v654, 24
        %v1430 = vpop.permute.xlu0 %1429
        %1431 = vrot.lane.b32.xlu0 %v655, 24
        %v1432 = vpop.permute.xlu0 %1431
        %1433 = vrot.lane.b32.xlu0 %v656, 24
        %v1434 = vpop.permute.xlu0 %1433
        %1435 = vrot.lane.b32.xlu0 %v657, 24
        %v1436 = vpop.permute.xlu0 %1435
        %1437 = vrot.lane.b32.xlu0 %v658, 24
        %v1438 = vpop.permute.xlu0 %1437
        %1439 = vrot.lane.b32.xlu0 %v659, 24
        %v1440 = vpop.permute.xlu0 %1439
        %1441 = vrot.lane.b32.xlu0 %v660, 24
        %v1442 = vpop.permute.xlu0 %1441
        %1443 = vrot.lane.b32.xlu0 %v661, 24
        %v1444 = vpop.permute.xlu0 %1443
        %1445 = vrot.lane.b32.xlu0 %v662, 24
        %v1446 = vpop.permute.xlu0 %1445
        %1447 = vrot.lane.b32.xlu0 %v663, 24
        %v1448 = vpop.permute.xlu0 %1447
        %1449 = vrot.lane.b32.xlu0 %v664, 24
        %v1450 = vpop.permute.xlu0 %1449
        %1451 = vrot.lane.b32.xlu0 %v665, 24
        %v1452 = vpop.permute.xlu0 %1451
        %1453 = vrot.lane.b32.xlu0 %v666, 24
        %v1454 = vpop.permute.xlu0 %1453
        %1455 = vrot.lane.b32.xlu0 %v667, 24
        %v1456 = vpop.permute.xlu0 %1455
        %1457 = vrot.lane.b32.xlu0 %v668, 24
        %v1458 = vpop.permute.xlu0 %1457
        %1459 = vrot.lane.b32.xlu0 %v669, 24
        %v1460 = vpop.permute.xlu0 %1459
        %1461 = vrot.lane.b32.xlu0 %v670, 24
        %v1462 = vpop.permute.xlu0 %1461
        %1463 = vrot.lane.b32.xlu0 %v671, 24
        %v1464 = vpop.permute.xlu0 %1463
        %1465 = vrot.lane.b32.xlu0 %v672, 24
        %v1466 = vpop.permute.xlu0 %1465
        %1467 = vrot.lane.b32.xlu0 %v673, 24
        %v1468 = vpop.permute.xlu0 %1467
        %1469 = vrot.lane.b32.xlu0 %v674, 24
        %v1470 = vpop.permute.xlu0 %1469
        %1471 = vrot.lane.b32.xlu0 %v675, 24
        %v1472 = vpop.permute.xlu0 %1471
        %1473 = vrot.lane.b32.xlu0 %v676, 24
        %v1474 = vpop.permute.xlu0 %1473
        %1475 = vrot.lane.b32.xlu0 %v677, 24
        %v1476 = vpop.permute.xlu0 %1475
        %1477 = vrot.lane.b32.xlu0 %v678, 24
        %v1478 = vpop.permute.xlu0 %1477
        %1543 = vrot.lane.b32.xlu0 %v679, 28
        %v1544 = vpop.permute.xlu0 %1543
        %1545 = vrot.lane.b32.xlu0 %v680, 28
        %v1546 = vpop.permute.xlu0 %1545
        %1547 = vrot.lane.b32.xlu0 %v681, 28
        %v1548 = vpop.permute.xlu0 %1547
        %1549 = vrot.lane.b32.xlu0 %v682, 28
        %v1550 = vpop.permute.xlu0 %1549
        %1551 = vrot.lane.b32.xlu0 %v683, 28
        %v1552 = vpop.permute.xlu0 %1551
        %1553 = vrot.lane.b32.xlu0 %v684, 28
        %v1554 = vpop.permute.xlu0 %1553
        %1555 = vrot.lane.b32.xlu0 %v685, 28
        %v1556 = vpop.permute.xlu0 %1555
        %1557 = vrot.lane.b32.xlu0 %v686, 28
        %v1558 = vpop.permute.xlu0 %1557
        %1559 = vrot.lane.b32.xlu0 %v687, 28
        %v1560 = vpop.permute.xlu0 %1559
        %1561 = vrot.lane.b32.xlu0 %v688, 28
        %v1562 = vpop.permute.xlu0 %1561
        %1563 = vrot.lane.b32.xlu0 %v689, 28
        %v1564 = vpop.permute.xlu0 %1563
        %1565 = vrot.lane.b32.xlu0 %v690, 28
        %v1566 = vpop.permute.xlu0 %1565
        %1567 = vrot.lane.b32.xlu0 %v691, 28
        %v1568 = vpop.permute.xlu0 %1567
        %1569 = vrot.lane.b32.xlu0 %v692, 28
        %v1570 = vpop.permute.xlu0 %1569
        %1571 = vrot.lane.b32.xlu0 %v693, 28
        %v1572 = vpop.permute.xlu0 %1571
        %1573 = vrot.lane.b32.xlu0 %v694, 28
        %v1574 = vpop.permute.xlu0 %1573
        %1575 = vrot.lane.b32.xlu0 %v695, 28
        %v1576 = vpop.permute.xlu0 %1575
        %1577 = vrot.lane.b32.xlu0 %v696, 28
        %v1578 = vpop.permute.xlu0 %1577
        %1579 = vrot.lane.b32.xlu0 %v697, 28
        %v1580 = vpop.permute.xlu0 %1579
        %1581 = vrot.lane.b32.xlu0 %v698, 28
        %v1582 = vpop.permute.xlu0 %1581
        %1583 = vrot.lane.b32.xlu0 %v699, 28
        %v1584 = vpop.permute.xlu0 %1583
        %1585 = vrot.lane.b32.xlu0 %v700, 28
        %v1586 = vpop.permute.xlu0 %1585
        %1587 = vrot.lane.b32.xlu0 %v701, 28
        %v1588 = vpop.permute.xlu0 %1587
        %1589 = vrot.lane.b32.xlu0 %v702, 28
        %v1590 = vpop.permute.xlu0 %1589
        %1591 = vrot.lane.b32.xlu0 %v703, 28
        %v1592 = vpop.permute.xlu0 %1591
        %1593 = vrot.lane.b32.xlu0 %v704, 28
        %v1594 = vpop.permute.xlu0 %1593
        %1595 = vrot.lane.b32.xlu0 %v705, 28
        %v1596 = vpop.permute.xlu0 %1595
        %1597 = vrot.lane.b32.xlu0 %v706, 28
        %v1598 = vpop.permute.xlu0 %1597
        %1599 = vrot.lane.b32.xlu0 %v707, 28
        %v1600 = vpop.permute.xlu0 %1599
        %1601 = vrot.lane.b32.xlu0 %v708, 28
        %v1602 = vpop.permute.xlu0 %1601
        %1603 = vrot.lane.b32.xlu0 %v709, 28
        %v1604 = vpop.permute.xlu0 %1603
        %1605 = vrot.lane.b32.xlu0 %v710, 28
        %v1606 = vpop.permute.xlu0 %1605
        %1671 = vrot.lane.b32.xlu0 %v711, 32
        %v1672 = vpop.permute.xlu0 %1671
        %1673 = vrot.lane.b32.xlu0 %v712, 32
        %v1674 = vpop.permute.xlu0 %1673
        %1675 = vrot.lane.b32.xlu0 %v713, 32
        %v1676 = vpop.permute.xlu0 %1675
        %1677 = vrot.lane.b32.xlu0 %v714, 32
        %v1678 = vpop.permute.xlu0 %1677
        %1679 = vrot.lane.b32.xlu0 %v715, 32
        %v1680 = vpop.permute.xlu0 %1679
        %1681 = vrot.lane.b32.xlu0 %v716, 32
        %v1682 = vpop.permute.xlu0 %1681
        %1683 = vrot.lane.b32.xlu0 %v717, 32
        %v1684 = vpop.permute.xlu0 %1683
        %1685 = vrot.lane.b32.xlu0 %v718, 32
        %v1686 = vpop.permute.xlu0 %1685
        %1687 = vrot.lane.b32.xlu0 %v719, 32
        %v1688 = vpop.permute.xlu0 %1687
        %1689 = vrot.lane.b32.xlu0 %v720, 32
        %v1690 = vpop.permute.xlu0 %1689
        %1691 = vrot.lane.b32.xlu0 %v721, 32
        %v1692 = vpop.permute.xlu0 %1691
        %1693 = vrot.lane.b32.xlu0 %v722, 32
        %v1694 = vpop.permute.xlu0 %1693
        %1695 = vrot.lane.b32.xlu0 %v723, 32
        %v1696 = vpop.permute.xlu0 %1695
        %1697 = vrot.lane.b32.xlu0 %v724, 32
        %v1698 = vpop.permute.xlu0 %1697
        %1699 = vrot.lane.b32.xlu0 %v725, 32
        %v1700 = vpop.permute.xlu0 %1699
        %1701 = vrot.lane.b32.xlu0 %v726, 32
        %v1702 = vpop.permute.xlu0 %1701
        %1703 = vrot.lane.b32.xlu0 %v727, 32
        %v1704 = vpop.permute.xlu0 %1703
        %1705 = vrot.lane.b32.xlu0 %v728, 32
        %v1706 = vpop.permute.xlu0 %1705
        %1707 = vrot.lane.b32.xlu0 %v729, 32
        %v1708 = vpop.permute.xlu0 %1707
        %1709 = vrot.lane.b32.xlu0 %v730, 32
        %v1710 = vpop.permute.xlu0 %1709
        %1711 = vrot.lane.b32.xlu0 %v731, 32
        %v1712 = vpop.permute.xlu0 %1711
        %1713 = vrot.lane.b32.xlu0 %v732, 32
        %v1714 = vpop.permute.xlu0 %1713
        %1715 = vrot.lane.b32.xlu0 %v733, 32
        %v1716 = vpop.permute.xlu0 %1715
        %1717 = vrot.lane.b32.xlu0 %v734, 32
        %v1718 = vpop.permute.xlu0 %1717
        %1719 = vrot.lane.b32.xlu0 %v735, 32
        %v1720 = vpop.permute.xlu0 %1719
        %1721 = vrot.lane.b32.xlu0 %v736, 32
        %v1722 = vpop.permute.xlu0 %1721
        %1723 = vrot.lane.b32.xlu0 %v737, 32
        %v1724 = vpop.permute.xlu0 %1723
        %1725 = vrot.lane.b32.xlu0 %v738, 32
        %v1726 = vpop.permute.xlu0 %1725
        %1727 = vrot.lane.b32.xlu0 %v739, 32
        %v1728 = vpop.permute.xlu0 %1727
        %1729 = vrot.lane.b32.xlu0 %v740, 32
        %v1730 = vpop.permute.xlu0 %1729
        %1731 = vrot.lane.b32.xlu0 %v741, 32
        %v1732 = vpop.permute.xlu0 %1731
        %1733 = vrot.lane.b32.xlu0 %v742, 32
        %v1734 = vpop.permute.xlu0 %1733
        %v1767 = vsel %vm277, %v454, %v776
        %v1768 = vsel %vm277, %v455, %v778
        %v1769 = vsel %vm277, %v456, %v780
        %v1770 = vsel %vm277, %v457, %v782
        %v1771 = vsel %vm277, %v458, %v784
        %v1772 = vsel %vm277, %v459, %v786
        %v1773 = vsel %vm277, %v460, %v788
        %v1774 = vsel %vm277, %v461, %v790
        %v1775 = vsel %vm277, %v462, %v792
        %v1776 = vsel %vm277, %v463, %v794
        %v1777 = vsel %vm277, %v464, %v796
        %v1778 = vsel %vm277, %v465, %v798
        %v1779 = vsel %vm277, %v466, %v800
        %v1780 = vsel %vm277, %v467, %v802
        %v1781 = vsel %vm277, %v468, %v804
        %v1782 = vsel %vm277, %v469, %v806
        %v1783 = vsel %vm277, %v470, %v808
        %v1784 = vsel %vm277, %v471, %v810
        %v1785 = vsel %vm277, %v472, %v812
        %v1786 = vsel %vm277, %v473, %v814
        %v1787 = vsel %vm277, %v474, %v816
        %v1788 = vsel %vm277, %v475, %v818
        %v1789 = vsel %vm277, %v476, %v820
        %v1790 = vsel %vm277, %v477, %v822
        %v1791 = vsel %vm277, %v478, %v824
        %v1792 = vsel %vm277, %v479, %v826
        %v1793 = vsel %vm277, %v480, %v828
        %v1794 = vsel %vm277, %v481, %v830
        %v1795 = vsel %vm277, %v482, %v832
        %v1796 = vsel %vm277, %v483, %v834
        %v1797 = vsel %vm277, %v484, %v836
        %v1798 = vsel %vm277, %v485, %v838
        %v1799 = vsel %vm398, %v1767, %v904
        %v1800 = vsel %vm398, %v1768, %v906
        %v1801 = vsel %vm398, %v1769, %v908
        %v1802 = vsel %vm398, %v1770, %v910
        %v1803 = vsel %vm398, %v1771, %v912
        %v1804 = vsel %vm398, %v1772, %v914
        %v1805 = vsel %vm398, %v1773, %v916
        %v1806 = vsel %vm398, %v1774, %v918
        %v1807 = vsel %vm398, %v1775, %v920
        %v1808 = vsel %vm398, %v1776, %v922
        %v1809 = vsel %vm398, %v1777, %v924
        %v1810 = vsel %vm398, %v1778, %v926
        %v1811 = vsel %vm398, %v1779, %v928
        %v1812 = vsel %vm398, %v1780, %v930
        %v1813 = vsel %vm398, %v1781, %v932
        %v1814 = vsel %vm398, %v1782, %v934
        %v1815 = vsel %vm398, %v1783, %v936
        %v1816 = vsel %vm398, %v1784, %v938
        %v1817 = vsel %vm398, %v1785, %v940
        %v1818 = vsel %vm398, %v1786, %v942
        %v1819 = vsel %vm398, %v1787, %v944
        %v1820 = vsel %vm398, %v1788, %v946
        %v1821 = vsel %vm398, %v1789, %v948
        %v1822 = vsel %vm398, %v1790, %v950
        %v1823 = vsel %vm398, %v1791, %v952
        %v1824 = vsel %vm398, %v1792, %v954
        %v1825 = vsel %vm398, %v1793, %v956
        %v1826 = vsel %vm398, %v1794, %v958
        %v1827 = vsel %vm398, %v1795, %v960
        %v1828 = vsel %vm398, %v1796, %v962
        %v1829 = vsel %vm398, %v1797, %v964
        %v1830 = vsel %vm398, %v1798, %v966
        %vm1831 = vcmask 97280
        %v1832 = vsel %vm1831, %v1799, %v1032
        %v1833 = vsel %vm1831, %v1800, %v1034
        %v1834 = vsel %vm1831, %v1801, %v1036
        %v1835 = vsel %vm1831, %v1802, %v1038
        %v1836 = vsel %vm1831, %v1803, %v1040
        %v1837 = vsel %vm1831, %v1804, %v1042
        %v1838 = vsel %vm1831, %v1805, %v1044
        %v1839 = vsel %vm1831, %v1806, %v1046
        %v1840 = vsel %vm1831, %v1807, %v1048
        %v1841 = vsel %vm1831, %v1808, %v1050
        %v1842 = vsel %vm1831, %v1809, %v1052
        %v1843 = vsel %vm1831, %v1810, %v1054
        %v1844 = vsel %vm1831, %v1811, %v1056
        %v1845 = vsel %vm1831, %v1812, %v1058
        %v1846 = vsel %vm1831, %v1813, %v1060
        %v1847 = vsel %vm1831, %v1814, %v1062
        %v1848 = vsel %vm1831, %v1815, %v1064
        %v1849 = vsel %vm1831, %v1816, %v1066
        %v1850 = vsel %vm1831, %v1817, %v1068
        %v1851 = vsel %vm1831, %v1818, %v1070
        %v1852 = vsel %vm1831, %v1819, %v1072
        %v1853 = vsel %vm1831, %v1820, %v1074
        %v1854 = vsel %vm1831, %v1821, %v1076
        %v1855 = vsel %vm1831, %v1822, %v1078
        %v1856 = vsel %vm1831, %v1823, %v1080
        %v1857 = vsel %vm1831, %v1824, %v1082
        %v1858 = vsel %vm1831, %v1825, %v1084
        %v1859 = vsel %vm1831, %v1826, %v1086
        %v1860 = vsel %vm1831, %v1827, %v1088
        %v1861 = vsel %vm1831, %v1828, %v1090
        %v1862 = vsel %vm1831, %v1829, %v1092
        %v1863 = vsel %vm1831, %v1830, %v1094
        %vm1864 = vcmask 130048
        %v1865 = vsel %vm1864, %v1832, %v1160
        %v1866 = vsel %vm1864, %v1833, %v1162
        %v1867 = vsel %vm1864, %v1834, %v1164
        %v1868 = vsel %vm1864, %v1835, %v1166
        %v1869 = vsel %vm1864, %v1836, %v1168
        %v1870 = vsel %vm1864, %v1837, %v1170
        %v1871 = vsel %vm1864, %v1838, %v1172
        %v1872 = vsel %vm1864, %v1839, %v1174
        %v1873 = vsel %vm1864, %v1840, %v1176
        %v1874 = vsel %vm1864, %v1841, %v1178
        %v1875 = vsel %vm1864, %v1842, %v1180
        %v1876 = vsel %vm1864, %v1843, %v1182
        %v1877 = vsel %vm1864, %v1844, %v1184
        %v1878 = vsel %vm1864, %v1845, %v1186
        %v1879 = vsel %vm1864, %v1846, %v1188
        %v1880 = vsel %vm1864, %v1847, %v1190
        %v1881 = vsel %vm1864, %v1848, %v1192
        %v1882 = vsel %vm1864, %v1849, %v1194
        %v1883 = vsel %vm1864, %v1850, %v1196
        %v1884 = vsel %vm1864, %v1851, %v1198
        %v1885 = vsel %vm1864, %v1852, %v1200
        %v1886 = vsel %vm1864, %v1853, %v1202
        %v1887 = vsel %vm1864, %v1854, %v1204
        %v1888 = vsel %vm1864, %v1855, %v1206
        %v1889 = vsel %vm1864, %v1856, %v1208
        %v1890 = vsel %vm1864, %v1857, %v1210
        %v1891 = vsel %vm1864, %v1858, %v1212
        %v1892 = vsel %vm1864, %v1859, %v1214
        %v1893 = vsel %vm1864, %v1860, %v1216
        %v1894 = vsel %vm1864, %v1861, %v1218
        %v1895 = vsel %vm1864, %v1862, %v1220
        %v1896 = vsel %vm1864, %v1863, %v1222
        %vm1897 = vcmask 162816
        %v1898 = vsel %vm1897, %v1865, %v1288
        %v1899 = vsel %vm1897, %v1866, %v1290
        %v1900 = vsel %vm1897, %v1867, %v1292
        %v1901 = vsel %vm1897, %v1868, %v1294
        %v1902 = vsel %vm1897, %v1869, %v1296
        %v1903 = vsel %vm1897, %v1870, %v1298
        %v1904 = vsel %vm1897, %v1871, %v1300
        %v1905 = vsel %vm1897, %v1872, %v1302
        %v1906 = vsel %vm1897, %v1873, %v1304
        %v1907 = vsel %vm1897, %v1874, %v1306
        %v1908 = vsel %vm1897, %v1875, %v1308
        %v1909 = vsel %vm1897, %v1876, %v1310
        %v1910 = vsel %vm1897, %v1877, %v1312
        %v1911 = vsel %vm1897, %v1878, %v1314
        %v1912 = vsel %vm1897, %v1879, %v1316
        %v1913 = vsel %vm1897, %v1880, %v1318
        %v1914 = vsel %vm1897, %v1881, %v1320
        %v1915 = vsel %vm1897, %v1882, %v1322
        %v1916 = vsel %vm1897, %v1883, %v1324
        %v1917 = vsel %vm1897, %v1884, %v1326
        %v1918 = vsel %vm1897, %v1885, %v1328
        %v1919 = vsel %vm1897, %v1886, %v1330
        %v1920 = vsel %vm1897, %v1887, %v1332
        %v1921 = vsel %vm1897, %v1888, %v1334
        %v1922 = vsel %vm1897, %v1889, %v1336
        %v1923 = vsel %vm1897, %v1890, %v1338
        %v1924 = vsel %vm1897, %v1891, %v1340
        %v1925 = vsel %vm1897, %v1892, %v1342
        %v1926 = vsel %vm1897, %v1893, %v1344
        %v1927 = vsel %vm1897, %v1894, %v1346
        %v1928 = vsel %vm1897, %v1895, %v1348
        %v1929 = vsel %vm1897, %v1896, %v1350
        %vm1930 = vcmask 195584
        %v1931 = vsel %vm1930, %v1898, %v1416
        %v1932 = vsel %vm1930, %v1899, %v1418
        %v1933 = vsel %vm1930, %v1900, %v1420
        %v1934 = vsel %vm1930, %v1901, %v1422
        %v1935 = vsel %vm1930, %v1902, %v1424
        %v1936 = vsel %vm1930, %v1903, %v1426
        %v1937 = vsel %vm1930, %v1904, %v1428
        %v1938 = vsel %vm1930, %v1905, %v1430
        %v1939 = vsel %vm1930, %v1906, %v1432
        %v1940 = vsel %vm1930, %v1907, %v1434
        %v1941 = vsel %vm1930, %v1908, %v1436
        %v1942 = vsel %vm1930, %v1909, %v1438
        %v1943 = vsel %vm1930, %v1910, %v1440
        %v1944 = vsel %vm1930, %v1911, %v1442
        %v1945 = vsel %vm1930, %v1912, %v1444
        %v1946 = vsel %vm1930, %v1913, %v1446
        %v1947 = vsel %vm1930, %v1914, %v1448
        %v1948 = vsel %vm1930, %v1915, %v1450
        %v1949 = vsel %vm1930, %v1916, %v1452
        %v1950 = vsel %vm1930, %v1917, %v1454
        %v1951 = vsel %vm1930, %v1918, %v1456
        %v1952 = vsel %vm1930, %v1919, %v1458
        %v1953 = vsel %vm1930, %v1920, %v1460
        %v1954 = vsel %vm1930, %v1921, %v1462
        %v1955 = vsel %vm1930, %v1922, %v1464
        %v1956 = vsel %vm1930, %v1923, %v1466
        %v1957 = vsel %vm1930, %v1924, %v1468
        %v1958 = vsel %vm1930, %v1925, %v1470
        %v1959 = vsel %vm1930, %v1926, %v1472
        %v1960 = vsel %vm1930, %v1927, %v1474
        %v1961 = vsel %vm1930, %v1928, %v1476
        %v1962 = vsel %vm1930, %v1929, %v1478
        %vm1963 = vcmask 228352
        %v1964 = vsel %vm1963, %v1931, %v1544
        %v1965 = vsel %vm1963, %v1932, %v1546
        %v1966 = vsel %vm1963, %v1933, %v1548
        %v1967 = vsel %vm1963, %v1934, %v1550
        %v1968 = vsel %vm1963, %v1935, %v1552
        %v1969 = vsel %vm1963, %v1936, %v1554
        %v1970 = vsel %vm1963, %v1937, %v1556
        %v1971 = vsel %vm1963, %v1938, %v1558
        %v1972 = vsel %vm1963, %v1939, %v1560
        %v1973 = vsel %vm1963, %v1940, %v1562
        %v1974 = vsel %vm1963, %v1941, %v1564
        %v1975 = vsel %vm1963, %v1942, %v1566
        %v1976 = vsel %vm1963, %v1943, %v1568
        %v1977 = vsel %vm1963, %v1944, %v1570
        %v1978 = vsel %vm1963, %v1945, %v1572
        %v1979 = vsel %vm1963, %v1946, %v1574
        %v1980 = vsel %vm1963, %v1947, %v1576
        %v1981 = vsel %vm1963, %v1948, %v1578
        %v1982 = vsel %vm1963, %v1949, %v1580
        %v1983 = vsel %vm1963, %v1950, %v1582
        %v1984 = vsel %vm1963, %v1951, %v1584
        %v1985 = vsel %vm1963, %v1952, %v1586
        %v1986 = vsel %vm1963, %v1953, %v1588
        %v1987 = vsel %vm1963, %v1954, %v1590
        %v1988 = vsel %vm1963, %v1955, %v1592
        %v1989 = vsel %vm1963, %v1956, %v1594
        %v1990 = vsel %vm1963, %v1957, %v1596
        %v1991 = vsel %vm1963, %v1958, %v1598
        %v1992 = vsel %vm1963, %v1959, %v1600
        %v1993 = vsel %vm1963, %v1960, %v1602
        %v1994 = vsel %vm1963, %v1961, %v1604
        %v1995 = vsel %vm1963, %v1962, %v1606
        %vm1996 = vcmask 261120
        %v1997 = vsel %vm1996, %v1964, %v1672
        %v1998 = vsel %vm1996, %v1965, %v1674
        %v1999 = vsel %vm1996, %v1966, %v1676
        %v2000 = vsel %vm1996, %v1967, %v1678
        %v2001 = vsel %vm1996, %v1968, %v1680
        %v2002 = vsel %vm1996, %v1969, %v1682
        %v2003 = vsel %vm1996, %v1970, %v1684
        %v2004 = vsel %vm1996, %v1971, %v1686
        %v2005 = vsel %vm1996, %v1972, %v1688
        %v2006 = vsel %vm1996, %v1973, %v1690
        %v2007 = vsel %vm1996, %v1974, %v1692
        %v2008 = vsel %vm1996, %v1975, %v1694
        %v2009 = vsel %vm1996, %v1976, %v1696
        %v2010 = vsel %vm1996, %v1977, %v1698
        %v2011 = vsel %vm1996, %v1978, %v1700
        %v2012 = vsel %vm1996, %v1979, %v1702
        %v2013 = vsel %vm1996, %v1980, %v1704
        %v2014 = vsel %vm1996, %v1981, %v1706
        %v2015 = vsel %vm1996, %v1982, %v1708
        %v2016 = vsel %vm1996, %v1983, %v1710
        %v2017 = vsel %vm1996, %v1984, %v1712
        %v2018 = vsel %vm1996, %v1985, %v1714
        %v2019 = vsel %vm1996, %v1986, %v1716
        %v2020 = vsel %vm1996, %v1987, %v1718
        %v2021 = vsel %vm1996, %v1988, %v1720
        %v2022 = vsel %vm1996, %v1989, %v1722
        %v2023 = vsel %vm1996, %v1990, %v1724
        %v2024 = vsel %vm1996, %v1991, %v1726
        %v2025 = vsel %vm1996, %v1992, %v1728
        %v2026 = vsel %vm1996, %v1993, %v1730
        %v2027 = vsel %vm1996, %v1994, %v1732
        %v2028 = vsel %vm1996, %v1995, %v1734
        %v2029 = vld [vmem:[%s1] sm:$0xff]
        %v2030 = vld [vmem:[%s1 + $0x8] sm:$0xff]
        %v2031 = vld [vmem:[%s1 + $0x10] sm:$0xff]
        %v2032 = vld [vmem:[%s1 + $0x18] sm:$0xff]
        %v2033 = vld [vmem:[%s1 + $0x20] sm:$0xf]
        %v2034 = vld [vmem:[%s2] sm:$0x1]
        %v2036 = vperm.slane %v2034, 0
        %vm2038 = vcmask 293888
        %v2040 = vsel %vm2038, %v1997, 0
        %v2043 = vsel %vm2038, %v1998, 0
        %v2046 = vsel %vm2038, %v1999, 0
        %v2049 = vsel %vm2038, %v2000, 0
        %v2052 = vsel %vm2038, %v2001, 0
        %v2055 = vsel %vm2038, %v2002, 0
        %v2058 = vsel %vm2038, %v2003, 0
        %v2061 = vsel %vm2038, %v2004, 0
        %v2064 = vsel %vm2038, %v2005, 0
        %v2067 = vsel %vm2038, %v2006, 0
        %v2070 = vsel %vm2038, %v2007, 0
        %v2073 = vsel %vm2038, %v2008, 0
        %v2076 = vsel %vm2038, %v2009, 0
        %v2079 = vsel %vm2038, %v2010, 0
        %v2082 = vsel %vm2038, %v2011, 0
        %v2085 = vsel %vm2038, %v2012, 0
        %v2088 = vsel %vm2038, %v2013, 0
        %v2091 = vsel %vm2038, %v2014, 0
        %v2094 = vsel %vm2038, %v2015, 0
        %v2097 = vsel %vm2038, %v2016, 0
        %v2100 = vsel %vm2038, %v2017, 0
        %v2103 = vsel %vm2038, %v2018, 0
        %v2106 = vsel %vm2038, %v2019, 0
        %v2109 = vsel %vm2038, %v2020, 0
        %v2112 = vsel %vm2038, %v2021, 0
        %v2115 = vsel %vm2038, %v2022, 0
        %v2118 = vsel %vm2038, %v2023, 0
        %v2121 = vsel %vm2038, %v2024, 0
        %v2124 = vsel %vm2038, %v2025, 0
        %v2127 = vsel %vm2038, %v2026, 0
        %v2130 = vsel %vm2038, %v2027, 0
        %v2133 = vsel %vm2038, %v2028, 0
        %vm2135 = vcmask 1043456
        %v2137 = vsel %vm2135, %v2033, 0
        %2139 = vmatpush.msra.mxu0 0.0
        %2140 = vmatpush.msra.mxu0 0.0
        %2141 = vmatpush.msra.mxu0 0.0
        %2142 = vmatpush.msra.mxu0 0.0
        %2143 = vmatpush.msra.mxu0 0.0
        %2144 = vmatpush.msra.mxu0 0.0
        %2145 = vmatpush.msra.mxu0 0.0
        %2146 = vmatpush.msra.mxu0 0.0
        %2147 = vmatpush.msra.mxu0 0.0
        %2148 = vmatpush.msra.mxu0 0.0
        %2149 = vmatpush.msra.mxu0 0.0
        %2150 = vmatpush.msra.mxu0 %v2137
        %2151 = vmatpush.msra.mxu0 %v2032
        %2152 = vmatpush.msra.mxu0 %v2031
        %2153 = vmatpush.msra.mxu0 %v2030
        %2154 = vmatpush.msra.mxu0 %v2029
        %2155 = vmatmul.f32.gmra.mxu0 %v2040
        %v2156 = vpop.f32.mrf.mxu0
        %v2157 = vadd.f32 %v2036, %v2156
        %2158 = vmatmul.f32.gmra.mxu0 %v2043
        %v2159 = vpop.f32.mrf.mxu0
        %v2160 = vadd.f32 %v2036, %v2159
        %2161 = vmatmul.f32.gmra.mxu0 %v2046
        %v2162 = vpop.f32.mrf.mxu0
        %v2163 = vadd.f32 %v2036, %v2162
        %2164 = vmatmul.f32.gmra.mxu0 %v2049
        %v2165 = vpop.f32.mrf.mxu0
        %v2166 = vadd.f32 %v2036, %v2165
        %2167 = vmatmul.f32.gmra.mxu0 %v2052
        %v2168 = vpop.f32.mrf.mxu0
        %v2169 = vadd.f32 %v2036, %v2168
        %2170 = vmatmul.f32.gmra.mxu0 %v2055
        %v2171 = vpop.f32.mrf.mxu0
        %v2172 = vadd.f32 %v2036, %v2171
        %2173 = vmatmul.f32.gmra.mxu0 %v2058
        %v2174 = vpop.f32.mrf.mxu0
        %v2175 = vadd.f32 %v2036, %v2174
        %2176 = vmatmul.f32.gmra.mxu0 %v2061
        %v2177 = vpop.f32.mrf.mxu0
        %v2178 = vadd.f32 %v2036, %v2177
        %2179 = vmatmul.f32.gmra.mxu0 %v2064
        %v2180 = vpop.f32.mrf.mxu0
        %v2181 = vadd.f32 %v2036, %v2180
        %2182 = vmatmul.f32.gmra.mxu0 %v2067
        %v2183 = vpop.f32.mrf.mxu0
        %v2184 = vadd.f32 %v2036, %v2183
        %2185 = vmatmul.f32.gmra.mxu0 %v2070
        %v2186 = vpop.f32.mrf.mxu0
        %v2187 = vadd.f32 %v2036, %v2186
        %2188 = vmatmul.f32.gmra.mxu0 %v2073
        %v2189 = vpop.f32.mrf.mxu0
        %v2190 = vadd.f32 %v2036, %v2189
        %2191 = vmatmul.f32.gmra.mxu0 %v2076
        %v2192 = vpop.f32.mrf.mxu0
        %v2193 = vadd.f32 %v2036, %v2192
        %2194 = vmatmul.f32.gmra.mxu0 %v2079
        %v2195 = vpop.f32.mrf.mxu0
        %v2196 = vadd.f32 %v2036, %v2195
        %2197 = vmatmul.f32.gmra.mxu0 %v2082
        %v2198 = vpop.f32.mrf.mxu0
        %v2199 = vadd.f32 %v2036, %v2198
        %2200 = vmatmul.f32.gmra.mxu0 %v2085
        %v2201 = vpop.f32.mrf.mxu0
        %v2202 = vadd.f32 %v2036, %v2201
        %2203 = vmatmul.f32.gmra.mxu0 %v2088
        %v2204 = vpop.f32.mrf.mxu0
        %v2205 = vadd.f32 %v2036, %v2204
        %2206 = vmatmul.f32.gmra.mxu0 %v2091
        %v2207 = vpop.f32.mrf.mxu0
        %v2208 = vadd.f32 %v2036, %v2207
        %2209 = vmatmul.f32.gmra.mxu0 %v2094
        %v2210 = vpop.f32.mrf.mxu0
        %v2211 = vadd.f32 %v2036, %v2210
        %2212 = vmatmul.f32.gmra.mxu0 %v2097
        %v2213 = vpop.f32.mrf.mxu0
        %v2214 = vadd.f32 %v2036, %v2213
        %2215 = vmatmul.f32.gmra.mxu0 %v2100
        %v2216 = vpop.f32.mrf.mxu0
        %v2217 = vadd.f32 %v2036, %v2216
        %2218 = vmatmul.f32.gmra.mxu0 %v2103
        %v2219 = vpop.f32.mrf.mxu0
        %v2220 = vadd.f32 %v2036, %v2219
        %2221 = vmatmul.f32.gmra.mxu0 %v2106
        %v2222 = vpop.f32.mrf.mxu0
        %v2223 = vadd.f32 %v2036, %v2222
        %2224 = vmatmul.f32.gmra.mxu0 %v2109
        %v2225 = vpop.f32.mrf.mxu0
        %v2226 = vadd.f32 %v2036, %v2225
        %2227 = vmatmul.f32.gmra.mxu0 %v2112
        %v2228 = vpop.f32.mrf.mxu0
        %v2229 = vadd.f32 %v2036, %v2228
        %2230 = vmatmul.f32.gmra.mxu0 %v2115
        %v2231 = vpop.f32.mrf.mxu0
        %v2232 = vadd.f32 %v2036, %v2231
        %2233 = vmatmul.f32.gmra.mxu0 %v2118
        %v2234 = vpop.f32.mrf.mxu0
        %v2235 = vadd.f32 %v2036, %v2234
        %2236 = vmatmul.f32.gmra.mxu0 %v2121
        %v2237 = vpop.f32.mrf.mxu0
        %v2238 = vadd.f32 %v2036, %v2237
        %2239 = vmatmul.f32.gmra.mxu0 %v2124
        %v2240 = vpop.f32.mrf.mxu0
        %v2241 = vadd.f32 %v2036, %v2240
        %2242 = vmatmul.f32.gmra.mxu0 %v2127
        %v2243 = vpop.f32.mrf.mxu0
        %v2244 = vadd.f32 %v2036, %v2243
        %2245 = vmatmul.f32.gmra.mxu0 %v2130
        %v2246 = vpop.f32.mrf.mxu0
        %v2247 = vadd.f32 %v2036, %v2246
        %2248 = vmatmul.f32.gmra.mxu0 %v2133
        %v2249 = vpop.f32.mrf.mxu0
        %v2250 = vadd.f32 %v2036, %v2249
        %2251 = vdwg.mxu0
        %v2252 = vmax.f32 %v2157, 0.0
        %v2253 = vmax.f32 %v2160, 0.0
        %v2254 = vmax.f32 %v2163, 0.0
        %v2255 = vmax.f32 %v2166, 0.0
        %v2256 = vmax.f32 %v2169, 0.0
        %v2257 = vmax.f32 %v2172, 0.0
        %v2258 = vmax.f32 %v2175, 0.0
        %v2259 = vmax.f32 %v2178, 0.0
        %v2260 = vmax.f32 %v2181, 0.0
        %v2261 = vmax.f32 %v2184, 0.0
        %v2262 = vmax.f32 %v2187, 0.0
        %v2263 = vmax.f32 %v2190, 0.0
        %v2264 = vmax.f32 %v2193, 0.0
        %v2265 = vmax.f32 %v2196, 0.0
        %v2266 = vmax.f32 %v2199, 0.0
        %v2267 = vmax.f32 %v2202, 0.0
        %v2268 = vmax.f32 %v2205, 0.0
        %v2269 = vmax.f32 %v2208, 0.0
        %v2270 = vmax.f32 %v2211, 0.0
        %v2271 = vmax.f32 %v2214, 0.0
        %v2272 = vmax.f32 %v2217, 0.0
        %v2273 = vmax.f32 %v2220, 0.0
        %v2274 = vmax.f32 %v2223, 0.0
        %v2275 = vmax.f32 %v2226, 0.0
        %v2276 = vmax.f32 %v2229, 0.0
        %v2277 = vmax.f32 %v2232, 0.0
        %v2278 = vmax.f32 %v2235, 0.0
        %v2279 = vmax.f32 %v2238, 0.0
        %v2280 = vmax.f32 %v2241, 0.0
        %v2281 = vmax.f32 %v2244, 0.0
        %v2282 = vmax.f32 %v2247, 0.0
        %v2283 = vmax.f32 %v2250, 0.0
        %s2284 = scalar_lea.vmem [#allocation3], 24
        %2285 = vst.msk [vmem:[%s2284 + $0x1] sm:$0xff] %vm398, %v2252
        %2286 = vst.msk [vmem:[%s2284 + $0x9] sm:$0xff] %vm398, %v2253
        %2287 = vst.msk [vmem:[%s2284 + $0x19] sm:$0xff] %vm398, %v2254
        %2288 = vst.msk [vmem:[%s2284 + $0x21] sm:$0xff] %vm398, %v2255
        %2289 = vst.msk [vmem:[%s2284 + $0x31] sm:$0xff] %vm398, %v2256
        %2290 = vst.msk [vmem:[%s2284 + $0x39] sm:$0xff] %vm398, %v2257
        %2291 = vst.msk [vmem:[%s2284 + $0x49] sm:$0xff] %vm398, %v2258
        %2292 = vst.msk [vmem:[%s2284 + $0x51] sm:$0xff] %vm398, %v2259
        %2293 = vst.msk [vmem:[%s2284 + $0x61] sm:$0xff] %vm398, %v2260
        %2294 = vst.msk [vmem:[%s2284 + $0x69] sm:$0xff] %vm398, %v2261
        %2295 = vst.msk [vmem:[%s2284 + $0x79] sm:$0xff] %vm398, %v2262
        %2296 = vst.msk [vmem:[%s2284 + $0x81] sm:$0xff] %vm398, %v2263
        %2297 = vst.msk [vmem:[%s2284 + $0x91] sm:$0xff] %vm398, %v2264
        %2298 = vst.msk [vmem:[%s2284 + $0x99] sm:$0xff] %vm398, %v2265
        %2299 = vst.msk [vmem:[%s2284 + $0xa9] sm:$0xff] %vm398, %v2266
        %2300 = vst.msk [vmem:[%s2284 + $0xb1] sm:$0xff] %vm398, %v2267
        %2301 = vst.msk [vmem:[%s2284 + $0xc1] sm:$0xff] %vm398, %v2268
        %2302 = vst.msk [vmem:[%s2284 + $0xc9] sm:$0xff] %vm398, %v2269
        %2303 = vst.msk [vmem:[%s2284 + $0xd9] sm:$0xff] %vm398, %v2270
        %2304 = vst.msk [vmem:[%s2284 + $0xe1] sm:$0xff] %vm398, %v2271
        %2305 = vst.msk [vmem:[%s2284 + $0xf1] sm:$0xff] %vm398, %v2272
        %2306 = vst.msk [vmem:[%s2284 + $0xf9] sm:$0xff] %vm398, %v2273
        %2307 = vst.msk [vmem:[%s2284 + $0x109] sm:$0xff] %vm398, %v2274
        %2308 = vst.msk [vmem:[%s2284 + $0x111] sm:$0xff] %vm398, %v2275
        %2309 = vst.msk [vmem:[%s2284 + $0x121] sm:$0xff] %vm398, %v2276
        %2310 = vst.msk [vmem:[%s2284 + $0x129] sm:$0xff] %vm398, %v2277
        %2311 = vst.msk [vmem:[%s2284 + $0x139] sm:$0xff] %vm398, %v2278
        %2312 = vst.msk [vmem:[%s2284 + $0x141] sm:$0xff] %vm398, %v2279
        %2313 = vst.msk [vmem:[%s2284 + $0x151] sm:$0xff] %vm398, %v2280
        %2314 = vst.msk [vmem:[%s2284 + $0x159] sm:$0xff] %vm398, %v2281
        %2315 = vst.msk [vmem:[%s2284 + $0x169] sm:$0xff] %vm398, %v2282
        %2316 = vst.msk [vmem:[%s2284 + $0x171] sm:$0xff] %vm398, %v2283
        %v2317 = vld [vmem:[#allocation3] sm:$0xff]
        %v2318 = vld [vmem:[#allocation3 + $0x8] sm:$0xff]
        %v2319 = vld [vmem:[#allocation3 + $0x18] sm:$0xff]
        %v2320 = vld [vmem:[#allocation3 + $0x20] sm:$0xff]
        %v2321 = vld [vmem:[#allocation3 + $0x30] sm:$0xff]
        %v2322 = vld [vmem:[#allocation3 + $0x38] sm:$0xff]
        %v2323 = vld [vmem:[#allocation3 + $0x48] sm:$0xff]
        %v2324 = vld [vmem:[#allocation3 + $0x50] sm:$0xff]
        %v2325 = vld [vmem:[#allocation3 + $0x60] sm:$0xff]
        %v2326 = vld [vmem:[#allocation3 + $0x68] sm:$0xff]
        %v2327 = vld [vmem:[#allocation3 + $0x78] sm:$0xff]
        %v2328 = vld [vmem:[#allocation3 + $0x80] sm:$0xff]
        %v2329 = vld [vmem:[#allocation3 + $0x90] sm:$0xff]
        %v2330 = vld [vmem:[#allocation3 + $0x98] sm:$0xff]
        %v2331 = vld [vmem:[#allocation3 + $0xa8] sm:$0xff]
        %v2332 = vld [vmem:[#allocation3 + $0xb0] sm:$0xff]
        %v2333 = vld [vmem:[#allocation3 + $0xc0] sm:$0xff]
        %v2334 = vld [vmem:[#allocation3 + $0xc8] sm:$0xff]
        %v2335 = vld [vmem:[#allocation3 + $0xd8] sm:$0xff]
        %v2336 = vld [vmem:[#allocation3 + $0xe0] sm:$0xff]
        %v2337 = vld [vmem:[#allocation3 + $0xf0] sm:$0xff]
        %v2338 = vld [vmem:[#allocation3 + $0xf8] sm:$0xff]
        %v2339 = vld [vmem:[#allocation3 + $0x108] sm:$0xff]
        %v2340 = vld [vmem:[#allocation3 + $0x110] sm:$0xff]
        %v2341 = vld [vmem:[#allocation3 + $0x120] sm:$0xff]
        %v2342 = vld [vmem:[#allocation3 + $0x128] sm:$0xff]
        %v2343 = vld [vmem:[#allocation3 + $0x138] sm:$0xff]
        %v2344 = vld [vmem:[#allocation3 + $0x140] sm:$0xff]
        %v2345 = vld [vmem:[#allocation3 + $0x150] sm:$0xff]
        %v2346 = vld [vmem:[#allocation3 + $0x158] sm:$0xff]
        %v2347 = vld [vmem:[#allocation3 + $0x168] sm:$0xff]
        %v2348 = vld [vmem:[#allocation3 + $0x170] sm:$0xff]
        %v2349 = vld [vmem:[#allocation3 + $0x1] sm:$0xff]
        %v2350 = vld [vmem:[#allocation3 + $0x9] sm:$0xff]
        %v2351 = vld [vmem:[#allocation3 + $0x19] sm:$0xff]
        %v2352 = vld [vmem:[#allocation3 + $0x21] sm:$0xff]
        %v2353 = vld [vmem:[#allocation3 + $0x31] sm:$0xff]
        %v2354 = vld [vmem:[#allocation3 + $0x39] sm:$0xff]
        %v2355 = vld [vmem:[#allocation3 + $0x49] sm:$0xff]
        %v2356 = vld [vmem:[#allocation3 + $0x51] sm:$0xff]
        %v2357 = vld [vmem:[#allocation3 + $0x61] sm:$0xff]
        %v2358 = vld [vmem:[#allocation3 + $0x69] sm:$0xff]
        %v2359 = vld [vmem:[#allocation3 + $0x79] sm:$0xff]
        %v2360 = vld [vmem:[#allocation3 + $0x81] sm:$0xff]
        %v2361 = vld [vmem:[#allocation3 + $0x91] sm:$0xff]
        %v2362 = vld [vmem:[#allocation3 + $0x99] sm:$0xff]
        %v2363 = vld [vmem:[#allocation3 + $0xa9] sm:$0xff]
        %v2364 = vld [vmem:[#allocation3 + $0xb1] sm:$0xff]
        %v2365 = vld [vmem:[#allocation3 + $0xc1] sm:$0xff]
        %v2366 = vld [vmem:[#allocation3 + $0xc9] sm:$0xff]
        %v2367 = vld [vmem:[#allocation3 + $0xd9] sm:$0xff]
        %v2368 = vld [vmem:[#allocation3 + $0xe1] sm:$0xff]
        %v2369 = vld [vmem:[#allocation3 + $0xf1] sm:$0xff]
        %v2370 = vld [vmem:[#allocation3 + $0xf9] sm:$0xff]
        %v2371 = vld [vmem:[#allocation3 + $0x109] sm:$0xff]
        %v2372 = vld [vmem:[#allocation3 + $0x111] sm:$0xff]
        %v2373 = vld [vmem:[#allocation3 + $0x121] sm:$0xff]
        %v2374 = vld [vmem:[#allocation3 + $0x129] sm:$0xff]
        %v2375 = vld [vmem:[#allocation3 + $0x139] sm:$0xff]
        %v2376 = vld [vmem:[#allocation3 + $0x141] sm:$0xff]
        %v2377 = vld [vmem:[#allocation3 + $0x151] sm:$0xff]
        %v2378 = vld [vmem:[#allocation3 + $0x159] sm:$0xff]
        %v2379 = vld [vmem:[#allocation3 + $0x169] sm:$0xff]
        %v2380 = vld [vmem:[#allocation3 + $0x171] sm:$0xff]
        %v2381 = vld [vmem:[#allocation3 + $0x2] sm:$0xff]
        %v2382 = vld [vmem:[#allocation3 + $0xa] sm:$0xff]
        %v2383 = vld [vmem:[#allocation3 + $0x1a] sm:$0xff]
        %v2384 = vld [vmem:[#allocation3 + $0x22] sm:$0xff]
        %v2385 = vld [vmem:[#allocation3 + $0x32] sm:$0xff]
        %v2386 = vld [vmem:[#allocation3 + $0x3a] sm:$0xff]
        %v2387 = vld [vmem:[#allocation3 + $0x4a] sm:$0xff]
        %v2388 = vld [vmem:[#allocation3 + $0x52] sm:$0xff]
        %v2389 = vld [vmem:[#allocation3 + $0x62] sm:$0xff]
        %v2390 = vld [vmem:[#allocation3 + $0x6a] sm:$0xff]
        %v2391 = vld [vmem:[#allocation3 + $0x7a] sm:$0xff]
        %v2392 = vld [vmem:[#allocation3 + $0x82] sm:$0xff]
        %v2393 = vld [vmem:[#allocation3 + $0x92] sm:$0xff]
        %v2394 = vld [vmem:[#allocation3 + $0x9a] sm:$0xff]
        %v2395 = vld [vmem:[#allocation3 + $0xaa] sm:$0xff]
        %v2396 = vld [vmem:[#allocation3 + $0xb2] sm:$0xff]
        %v2397 = vld [vmem:[#allocation3 + $0xc2] sm:$0xff]
        %v2398 = vld [vmem:[#allocation3 + $0xca] sm:$0xff]
        %v2399 = vld [vmem:[#allocation3 + $0xda] sm:$0xff]
        %v2400 = vld [vmem:[#allocation3 + $0xe2] sm:$0xff]
        %v2401 = vld [vmem:[#allocation3 + $0xf2] sm:$0xff]
        %v2402 = vld [vmem:[#allocation3 + $0xfa] sm:$0xff]
        %v2403 = vld [vmem:[#allocation3 + $0x10a] sm:$0xff]
        %v2404 = vld [vmem:[#allocation3 + $0x112] sm:$0xff]
        %v2405 = vld [vmem:[#allocation3 + $0x122] sm:$0xff]
        %v2406 = vld [vmem:[#allocation3 + $0x12a] sm:$0xff]
        %v2407 = vld [vmem:[#allocation3 + $0x13a] sm:$0xff]
        %v2408 = vld [vmem:[#allocation3 + $0x142] sm:$0xff]
        %v2409 = vld [vmem:[#allocation3 + $0x152] sm:$0xff]
        %v2410 = vld [vmem:[#allocation3 + $0x15a] sm:$0xff]
        %v2411 = vld [vmem:[#allocation3 + $0x16a] sm:$0xff]
        %v2412 = vld [vmem:[#allocation3 + $0x172] sm:$0xff]
        %v2413 = vld [vmem:[%s2284] sm:$0xff]
        %v2414 = vld [vmem:[%s2284 + $0x8] sm:$0xff]
        %v2415 = vld [vmem:[%s2284 + $0x18] sm:$0xff]
        %v2416 = vld [vmem:[%s2284 + $0x20] sm:$0xff]
        %v2417 = vld [vmem:[%s2284 + $0x30] sm:$0xff]
        %v2418 = vld [vmem:[%s2284 + $0x38] sm:$0xff]
        %v2419 = vld [vmem:[%s2284 + $0x48] sm:$0xff]
        %v2420 = vld [vmem:[%s2284 + $0x50] sm:$0xff]
        %v2421 = vld [vmem:[%s2284 + $0x60] sm:$0xff]
        %v2422 = vld [vmem:[%s2284 + $0x68] sm:$0xff]
        %v2423 = vld [vmem:[%s2284 + $0x78] sm:$0xff]
        %v2424 = vld [vmem:[%s2284 + $0x80] sm:$0xff]
        %v2425 = vld [vmem:[%s2284 + $0x90] sm:$0xff]
        %v2426 = vld [vmem:[%s2284 + $0x98] sm:$0xff]
        %v2427 = vld [vmem:[%s2284 + $0xa8] sm:$0xff]
        %v2428 = vld [vmem:[%s2284 + $0xb0] sm:$0xff]
        %v2429 = vld [vmem:[%s2284 + $0xc0] sm:$0xff]
        %v2430 = vld [vmem:[%s2284 + $0xc8] sm:$0xff]
        %v2431 = vld [vmem:[%s2284 + $0xd8] sm:$0xff]
        %v2432 = vld [vmem:[%s2284 + $0xe0] sm:$0xff]
        %v2433 = vld [vmem:[%s2284 + $0xf0] sm:$0xff]
        %v2434 = vld [vmem:[%s2284 + $0xf8] sm:$0xff]
        %v2435 = vld [vmem:[%s2284 + $0x108] sm:$0xff]
        %v2436 = vld [vmem:[%s2284 + $0x110] sm:$0xff]
        %v2437 = vld [vmem:[%s2284 + $0x120] sm:$0xff]
        %v2438 = vld [vmem:[%s2284 + $0x128] sm:$0xff]
        %v2439 = vld [vmem:[%s2284 + $0x138] sm:$0xff]
        %v2440 = vld [vmem:[%s2284 + $0x140] sm:$0xff]
        %v2441 = vld [vmem:[%s2284 + $0x150] sm:$0xff]
        %v2442 = vld [vmem:[%s2284 + $0x158] sm:$0xff]
        %v2443 = vld [vmem:[%s2284 + $0x168] sm:$0xff]
        %v2444 = vld [vmem:[%s2284 + $0x170] sm:$0xff]
        %v2445 = vld [vmem:[%s2284 + $0x1] sm:$0xff]
        %v2446 = vld [vmem:[%s2284 + $0x9] sm:$0xff]
        %v2447 = vld [vmem:[%s2284 + $0x19] sm:$0xff]
        %v2448 = vld [vmem:[%s2284 + $0x21] sm:$0xff]
        %v2449 = vld [vmem:[%s2284 + $0x31] sm:$0xff]
        %v2450 = vld [vmem:[%s2284 + $0x39] sm:$0xff]
        %v2451 = vld [vmem:[%s2284 + $0x49] sm:$0xff]
        %v2452 = vld [vmem:[%s2284 + $0x51] sm:$0xff]
        %v2453 = vld [vmem:[%s2284 + $0x61] sm:$0xff]
        %v2454 = vld [vmem:[%s2284 + $0x69] sm:$0xff]
        %v2455 = vld [vmem:[%s2284 + $0x79] sm:$0xff]
        %v2456 = vld [vmem:[%s2284 + $0x81] sm:$0xff]
        %v2457 = vld [vmem:[%s2284 + $0x91] sm:$0xff]
        %v2458 = vld [vmem:[%s2284 + $0x99] sm:$0xff]
        %v2459 = vld [vmem:[%s2284 + $0xa9] sm:$0xff]
        %v2460 = vld [vmem:[%s2284 + $0xb1] sm:$0xff]
        %v2461 = vld [vmem:[%s2284 + $0xc1] sm:$0xff]
        %v2462 = vld [vmem:[%s2284 + $0xc9] sm:$0xff]
        %v2463 = vld [vmem:[%s2284 + $0xd9] sm:$0xff]
        %v2464 = vld [vmem:[%s2284 + $0xe1] sm:$0xff]
        %v2465 = vld [vmem:[%s2284 + $0xf1] sm:$0xff]
        %v2466 = vld [vmem:[%s2284 + $0xf9] sm:$0xff]
        %v2467 = vld [vmem:[%s2284 + $0x109] sm:$0xff]
        %v2468 = vld [vmem:[%s2284 + $0x111] sm:$0xff]
        %v2469 = vld [vmem:[%s2284 + $0x121] sm:$0xff]
        %v2470 = vld [vmem:[%s2284 + $0x129] sm:$0xff]
        %v2471 = vld [vmem:[%s2284 + $0x139] sm:$0xff]
        %v2472 = vld [vmem:[%s2284 + $0x141] sm:$0xff]
        %v2473 = vld [vmem:[%s2284 + $0x151] sm:$0xff]
        %v2474 = vld [vmem:[%s2284 + $0x159] sm:$0xff]
        %v2475 = vld [vmem:[%s2284 + $0x169] sm:$0xff]
        %v2476 = vld [vmem:[%s2284 + $0x171] sm:$0xff]
        %v2477 = vld [vmem:[%s2284 + $0x2] sm:$0xff]
        %v2478 = vld [vmem:[%s2284 + $0xa] sm:$0xff]
        %v2479 = vld [vmem:[%s2284 + $0x1a] sm:$0xff]
        %v2480 = vld [vmem:[%s2284 + $0x22] sm:$0xff]
        %v2481 = vld [vmem:[%s2284 + $0x32] sm:$0xff]
        %v2482 = vld [vmem:[%s2284 + $0x3a] sm:$0xff]
        %v2483 = vld [vmem:[%s2284 + $0x4a] sm:$0xff]
        %v2484 = vld [vmem:[%s2284 + $0x52] sm:$0xff]
        %v2485 = vld [vmem:[%s2284 + $0x62] sm:$0xff]
        %v2486 = vld [vmem:[%s2284 + $0x6a] sm:$0xff]
        %v2487 = vld [vmem:[%s2284 + $0x7a] sm:$0xff]
        %v2488 = vld [vmem:[%s2284 + $0x82] sm:$0xff]
        %v2489 = vld [vmem:[%s2284 + $0x92] sm:$0xff]
        %v2490 = vld [vmem:[%s2284 + $0x9a] sm:$0xff]
        %v2491 = vld [vmem:[%s2284 + $0xaa] sm:$0xff]
        %v2492 = vld [vmem:[%s2284 + $0xb2] sm:$0xff]
        %v2493 = vld [vmem:[%s2284 + $0xc2] sm:$0xff]
        %v2494 = vld [vmem:[%s2284 + $0xca] sm:$0xff]
        %v2495 = vld [vmem:[%s2284 + $0xda] sm:$0xff]
        %v2496 = vld [vmem:[%s2284 + $0xe2] sm:$0xff]
        %v2497 = vld [vmem:[%s2284 + $0xf2] sm:$0xff]
        %v2498 = vld [vmem:[%s2284 + $0xfa] sm:$0xff]
        %v2499 = vld [vmem:[%s2284 + $0x10a] sm:$0xff]
        %v2500 = vld [vmem:[%s2284 + $0x112] sm:$0xff]
        %v2501 = vld [vmem:[%s2284 + $0x122] sm:$0xff]
        %v2502 = vld [vmem:[%s2284 + $0x12a] sm:$0xff]
        %v2503 = vld [vmem:[%s2284 + $0x13a] sm:$0xff]
        %v2504 = vld [vmem:[%s2284 + $0x142] sm:$0xff]
        %v2505 = vld [vmem:[%s2284 + $0x152] sm:$0xff]
        %v2506 = vld [vmem:[%s2284 + $0x15a] sm:$0xff]
        %v2507 = vld [vmem:[%s2284 + $0x16a] sm:$0xff]
        %v2508 = vld [vmem:[%s2284 + $0x172] sm:$0xff]
        %s2509 = scalar_lea.vmem [#allocation3], 48
        %v2510 = vld [vmem:[%s2509] sm:$0xff]
        %v2511 = vld [vmem:[%s2509 + $0x8] sm:$0xff]
        %v2512 = vld [vmem:[%s2509 + $0x18] sm:$0xff]
        %v2513 = vld [vmem:[%s2509 + $0x20] sm:$0xff]
        %v2514 = vld [vmem:[%s2509 + $0x30] sm:$0xff]
        %v2515 = vld [vmem:[%s2509 + $0x38] sm:$0xff]
        %v2516 = vld [vmem:[%s2509 + $0x48] sm:$0xff]
        %v2517 = vld [vmem:[%s2509 + $0x50] sm:$0xff]
        %v2518 = vld [vmem:[%s2509 + $0x60] sm:$0xff]
        %v2519 = vld [vmem:[%s2509 + $0x68] sm:$0xff]
        %v2520 = vld [vmem:[%s2509 + $0x78] sm:$0xff]
        %v2521 = vld [vmem:[%s2509 + $0x80] sm:$0xff]
        %v2522 = vld [vmem:[%s2509 + $0x90] sm:$0xff]
        %v2523 = vld [vmem:[%s2509 + $0x98] sm:$0xff]
        %v2524 = vld [vmem:[%s2509 + $0xa8] sm:$0xff]
        %v2525 = vld [vmem:[%s2509 + $0xb0] sm:$0xff]
        %v2526 = vld [vmem:[%s2509 + $0xc0] sm:$0xff]
        %v2527 = vld [vmem:[%s2509 + $0xc8] sm:$0xff]
        %v2528 = vld [vmem:[%s2509 + $0xd8] sm:$0xff]
        %v2529 = vld [vmem:[%s2509 + $0xe0] sm:$0xff]
        %v2530 = vld [vmem:[%s2509 + $0xf0] sm:$0xff]
        %v2531 = vld [vmem:[%s2509 + $0xf8] sm:$0xff]
        %v2532 = vld [vmem:[%s2509 + $0x108] sm:$0xff]
        %v2533 = vld [vmem:[%s2509 + $0x110] sm:$0xff]
        %v2534 = vld [vmem:[%s2509 + $0x120] sm:$0xff]
        %v2535 = vld [vmem:[%s2509 + $0x128] sm:$0xff]
        %v2536 = vld [vmem:[%s2509 + $0x138] sm:$0xff]
        %v2537 = vld [vmem:[%s2509 + $0x140] sm:$0xff]
        %v2538 = vld [vmem:[%s2509 + $0x150] sm:$0xff]
        %v2539 = vld [vmem:[%s2509 + $0x158] sm:$0xff]
        %v2540 = vld [vmem:[%s2509 + $0x168] sm:$0xff]
        %v2541 = vld [vmem:[%s2509 + $0x170] sm:$0xff]
        %v2542 = vld [vmem:[%s2509 + $0x1] sm:$0xff]
        %v2543 = vld [vmem:[%s2509 + $0x9] sm:$0xff]
        %v2544 = vld [vmem:[%s2509 + $0x19] sm:$0xff]
        %v2545 = vld [vmem:[%s2509 + $0x21] sm:$0xff]
        %v2546 = vld [vmem:[%s2509 + $0x31] sm:$0xff]
        %v2547 = vld [vmem:[%s2509 + $0x39] sm:$0xff]
        %v2548 = vld [vmem:[%s2509 + $0x49] sm:$0xff]
        %v2549 = vld [vmem:[%s2509 + $0x51] sm:$0xff]
        %v2550 = vld [vmem:[%s2509 + $0x61] sm:$0xff]
        %v2551 = vld [vmem:[%s2509 + $0x69] sm:$0xff]
        %v2552 = vld [vmem:[%s2509 + $0x79] sm:$0xff]
        %v2553 = vld [vmem:[%s2509 + $0x81] sm:$0xff]
        %v2554 = vld [vmem:[%s2509 + $0x91] sm:$0xff]
        %v2555 = vld [vmem:[%s2509 + $0x99] sm:$0xff]
        %v2556 = vld [vmem:[%s2509 + $0xa9] sm:$0xff]
        %v2557 = vld [vmem:[%s2509 + $0xb1] sm:$0xff]
        %v2558 = vld [vmem:[%s2509 + $0xc1] sm:$0xff]
        %v2559 = vld [vmem:[%s2509 + $0xc9] sm:$0xff]
        %v2560 = vld [vmem:[%s2509 + $0xd9] sm:$0xff]
        %v2561 = vld [vmem:[%s2509 + $0xe1] sm:$0xff]
        %v2562 = vld [vmem:[%s2509 + $0xf1] sm:$0xff]
        %v2563 = vld [vmem:[%s2509 + $0xf9] sm:$0xff]
        %v2564 = vld [vmem:[%s2509 + $0x109] sm:$0xff]
        %v2565 = vld [vmem:[%s2509 + $0x111] sm:$0xff]
        %v2566 = vld [vmem:[%s2509 + $0x121] sm:$0xff]
        %v2567 = vld [vmem:[%s2509 + $0x129] sm:$0xff]
        %v2568 = vld [vmem:[%s2509 + $0x139] sm:$0xff]
        %v2569 = vld [vmem:[%s2509 + $0x141] sm:$0xff]
        %v2570 = vld [vmem:[%s2509 + $0x151] sm:$0xff]
        %v2571 = vld [vmem:[%s2509 + $0x159] sm:$0xff]
        %v2572 = vld [vmem:[%s2509 + $0x169] sm:$0xff]
        %v2573 = vld [vmem:[%s2509 + $0x171] sm:$0xff]
        %v2574 = vld [vmem:[%s2509 + $0x2] sm:$0xff]
        %v2575 = vld [vmem:[%s2509 + $0xa] sm:$0xff]
        %v2576 = vld [vmem:[%s2509 + $0x1a] sm:$0xff]
        %v2577 = vld [vmem:[%s2509 + $0x22] sm:$0xff]
        %v2578 = vld [vmem:[%s2509 + $0x32] sm:$0xff]
        %v2579 = vld [vmem:[%s2509 + $0x3a] sm:$0xff]
        %v2580 = vld [vmem:[%s2509 + $0x4a] sm:$0xff]
        %v2581 = vld [vmem:[%s2509 + $0x52] sm:$0xff]
        %v2582 = vld [vmem:[%s2509 + $0x62] sm:$0xff]
        %v2583 = vld [vmem:[%s2509 + $0x6a] sm:$0xff]
        %v2584 = vld [vmem:[%s2509 + $0x7a] sm:$0xff]
        %v2585 = vld [vmem:[%s2509 + $0x82] sm:$0xff]
        %v2586 = vld [vmem:[%s2509 + $0x92] sm:$0xff]
        %v2587 = vld [vmem:[%s2509 + $0x9a] sm:$0xff]
        %v2588 = vld [vmem:[%s2509 + $0xaa] sm:$0xff]
        %v2589 = vld [vmem:[%s2509 + $0xb2] sm:$0xff]
        %v2590 = vld [vmem:[%s2509 + $0xc2] sm:$0xff]
        %v2591 = vld [vmem:[%s2509 + $0xca] sm:$0xff]
        %v2592 = vld [vmem:[%s2509 + $0xda] sm:$0xff]
        %v2593 = vld [vmem:[%s2509 + $0xe2] sm:$0xff]
        %v2594 = vld [vmem:[%s2509 + $0xf2] sm:$0xff]
        %v2595 = vld [vmem:[%s2509 + $0xfa] sm:$0xff]
        %v2596 = vld [vmem:[%s2509 + $0x10a] sm:$0xff]
        %v2597 = vld [vmem:[%s2509 + $0x112] sm:$0xff]
        %v2598 = vld [vmem:[%s2509 + $0x122] sm:$0xff]
        %v2599 = vld [vmem:[%s2509 + $0x12a] sm:$0xff]
        %v2600 = vld [vmem:[%s2509 + $0x13a] sm:$0xff]
        %v2601 = vld [vmem:[%s2509 + $0x142] sm:$0xff]
        %v2602 = vld [vmem:[%s2509 + $0x152] sm:$0xff]
        %v2603 = vld [vmem:[%s2509 + $0x15a] sm:$0xff]
        %v2604 = vld [vmem:[%s2509 + $0x16a] sm:$0xff]
        %v2605 = vld [vmem:[%s2509 + $0x172] sm:$0xff]
        %2638 = vrot.lane.b32.xlu0 %v2349, 8
        %v2639 = vpop.permute.xlu0 %2638
        %2640 = vrot.lane.b32.xlu0 %v2350, 8
        %v2641 = vpop.permute.xlu0 %2640
        %2642 = vrot.lane.b32.xlu0 %v2351, 8
        %v2643 = vpop.permute.xlu0 %2642
        %2644 = vrot.lane.b32.xlu0 %v2352, 8
        %v2645 = vpop.permute.xlu0 %2644
        %2646 = vrot.lane.b32.xlu0 %v2353, 8
        %v2647 = vpop.permute.xlu0 %2646
        %2648 = vrot.lane.b32.xlu0 %v2354, 8
        %v2649 = vpop.permute.xlu0 %2648
        %2650 = vrot.lane.b32.xlu0 %v2355, 8
        %v2651 = vpop.permute.xlu0 %2650
        %2652 = vrot.lane.b32.xlu0 %v2356, 8
        %v2653 = vpop.permute.xlu0 %2652
        %2654 = vrot.lane.b32.xlu0 %v2357, 8
        %v2655 = vpop.permute.xlu0 %2654
        %2656 = vrot.lane.b32.xlu0 %v2358, 8
        %v2657 = vpop.permute.xlu0 %2656
        %2658 = vrot.lane.b32.xlu0 %v2359, 8
        %v2659 = vpop.permute.xlu0 %2658
        %2660 = vrot.lane.b32.xlu0 %v2360, 8
        %v2661 = vpop.permute.xlu0 %2660
        %2662 = vrot.lane.b32.xlu0 %v2361, 8
        %v2663 = vpop.permute.xlu0 %2662
        %2664 = vrot.lane.b32.xlu0 %v2362, 8
        %v2665 = vpop.permute.xlu0 %2664
        %2666 = vrot.lane.b32.xlu0 %v2363, 8
        %v2667 = vpop.permute.xlu0 %2666
        %2668 = vrot.lane.b32.xlu0 %v2364, 8
        %v2669 = vpop.permute.xlu0 %2668
        %2670 = vrot.lane.b32.xlu0 %v2365, 8
        %v2671 = vpop.permute.xlu0 %2670
        %2672 = vrot.lane.b32.xlu0 %v2366, 8
        %v2673 = vpop.permute.xlu0 %2672
        %2674 = vrot.lane.b32.xlu0 %v2367, 8
        %v2675 = vpop.permute.xlu0 %2674
        %2676 = vrot.lane.b32.xlu0 %v2368, 8
        %v2677 = vpop.permute.xlu0 %2676
        %2678 = vrot.lane.b32.xlu0 %v2369, 8
        %v2679 = vpop.permute.xlu0 %2678
        %2680 = vrot.lane.b32.xlu0 %v2370, 8
        %v2681 = vpop.permute.xlu0 %2680
        %2682 = vrot.lane.b32.xlu0 %v2371, 8
        %v2683 = vpop.permute.xlu0 %2682
        %2684 = vrot.lane.b32.xlu0 %v2372, 8
        %v2685 = vpop.permute.xlu0 %2684
        %2686 = vrot.lane.b32.xlu0 %v2373, 8
        %v2687 = vpop.permute.xlu0 %2686
        %2688 = vrot.lane.b32.xlu0 %v2374, 8
        %v2689 = vpop.permute.xlu0 %2688
        %2690 = vrot.lane.b32.xlu0 %v2375, 8
        %v2691 = vpop.permute.xlu0 %2690
        %2692 = vrot.lane.b32.xlu0 %v2376, 8
        %v2693 = vpop.permute.xlu0 %2692
        %2694 = vrot.lane.b32.xlu0 %v2377, 8
        %v2695 = vpop.permute.xlu0 %2694
        %2696 = vrot.lane.b32.xlu0 %v2378, 8
        %v2697 = vpop.permute.xlu0 %2696
        %2698 = vrot.lane.b32.xlu0 %v2379, 8
        %v2699 = vpop.permute.xlu0 %2698
        %2700 = vrot.lane.b32.xlu0 %v2380, 8
        %v2701 = vpop.permute.xlu0 %2700
        %2766 = vrot.lane.b32.xlu0 %v2381, 16
        %v2767 = vpop.permute.xlu0 %2766
        %2768 = vrot.lane.b32.xlu0 %v2382, 16
        %v2769 = vpop.permute.xlu0 %2768
        %2770 = vrot.lane.b32.xlu0 %v2383, 16
        %v2771 = vpop.permute.xlu0 %2770
        %2772 = vrot.lane.b32.xlu0 %v2384, 16
        %v2773 = vpop.permute.xlu0 %2772
        %2774 = vrot.lane.b32.xlu0 %v2385, 16
        %v2775 = vpop.permute.xlu0 %2774
        %2776 = vrot.lane.b32.xlu0 %v2386, 16
        %v2777 = vpop.permute.xlu0 %2776
        %2778 = vrot.lane.b32.xlu0 %v2387, 16
        %v2779 = vpop.permute.xlu0 %2778
        %2780 = vrot.lane.b32.xlu0 %v2388, 16
        %v2781 = vpop.permute.xlu0 %2780
        %2782 = vrot.lane.b32.xlu0 %v2389, 16
        %v2783 = vpop.permute.xlu0 %2782
        %2784 = vrot.lane.b32.xlu0 %v2390, 16
        %v2785 = vpop.permute.xlu0 %2784
        %2786 = vrot.lane.b32.xlu0 %v2391, 16
        %v2787 = vpop.permute.xlu0 %2786
        %2788 = vrot.lane.b32.xlu0 %v2392, 16
        %v2789 = vpop.permute.xlu0 %2788
        %2790 = vrot.lane.b32.xlu0 %v2393, 16
        %v2791 = vpop.permute.xlu0 %2790
        %2792 = vrot.lane.b32.xlu0 %v2394, 16
        %v2793 = vpop.permute.xlu0 %2792
        %2794 = vrot.lane.b32.xlu0 %v2395, 16
        %v2795 = vpop.permute.xlu0 %2794
        %2796 = vrot.lane.b32.xlu0 %v2396, 16
        %v2797 = vpop.permute.xlu0 %2796
        %2798 = vrot.lane.b32.xlu0 %v2397, 16
        %v2799 = vpop.permute.xlu0 %2798
        %2800 = vrot.lane.b32.xlu0 %v2398, 16
        %v2801 = vpop.permute.xlu0 %2800
        %2802 = vrot.lane.b32.xlu0 %v2399, 16
        %v2803 = vpop.permute.xlu0 %2802
        %2804 = vrot.lane.b32.xlu0 %v2400, 16
        %v2805 = vpop.permute.xlu0 %2804
        %2806 = vrot.lane.b32.xlu0 %v2401, 16
        %v2807 = vpop.permute.xlu0 %2806
        %2808 = vrot.lane.b32.xlu0 %v2402, 16
        %v2809 = vpop.permute.xlu0 %2808
        %2810 = vrot.lane.b32.xlu0 %v2403, 16
        %v2811 = vpop.permute.xlu0 %2810
        %2812 = vrot.lane.b32.xlu0 %v2404, 16
        %v2813 = vpop.permute.xlu0 %2812
        %2814 = vrot.lane.b32.xlu0 %v2405, 16
        %v2815 = vpop.permute.xlu0 %2814
        %2816 = vrot.lane.b32.xlu0 %v2406, 16
        %v2817 = vpop.permute.xlu0 %2816
        %2818 = vrot.lane.b32.xlu0 %v2407, 16
        %v2819 = vpop.permute.xlu0 %2818
        %2820 = vrot.lane.b32.xlu0 %v2408, 16
        %v2821 = vpop.permute.xlu0 %2820
        %2822 = vrot.lane.b32.xlu0 %v2409, 16
        %v2823 = vpop.permute.xlu0 %2822
        %2824 = vrot.lane.b32.xlu0 %v2410, 16
        %v2825 = vpop.permute.xlu0 %2824
        %2826 = vrot.lane.b32.xlu0 %v2411, 16
        %v2827 = vpop.permute.xlu0 %2826
        %2828 = vrot.lane.b32.xlu0 %v2412, 16
        %v2829 = vpop.permute.xlu0 %2828
        %2894 = vrot.lane.b32.xlu0 %v2413, 24
        %v2895 = vpop.permute.xlu0 %2894
        %2896 = vrot.lane.b32.xlu0 %v2414, 24
        %v2897 = vpop.permute.xlu0 %2896
        %2898 = vrot.lane.b32.xlu0 %v2415, 24
        %v2899 = vpop.permute.xlu0 %2898
        %2900 = vrot.lane.b32.xlu0 %v2416, 24
        %v2901 = vpop.permute.xlu0 %2900
        %2902 = vrot.lane.b32.xlu0 %v2417, 24
        %v2903 = vpop.permute.xlu0 %2902
        %2904 = vrot.lane.b32.xlu0 %v2418, 24
        %v2905 = vpop.permute.xlu0 %2904
        %2906 = vrot.lane.b32.xlu0 %v2419, 24
        %v2907 = vpop.permute.xlu0 %2906
        %2908 = vrot.lane.b32.xlu0 %v2420, 24
        %v2909 = vpop.permute.xlu0 %2908
        %2910 = vrot.lane.b32.xlu0 %v2421, 24
        %v2911 = vpop.permute.xlu0 %2910
        %2912 = vrot.lane.b32.xlu0 %v2422, 24
        %v2913 = vpop.permute.xlu0 %2912
        %2914 = vrot.lane.b32.xlu0 %v2423, 24
        %v2915 = vpop.permute.xlu0 %2914
        %2916 = vrot.lane.b32.xlu0 %v2424, 24
        %v2917 = vpop.permute.xlu0 %2916
        %2918 = vrot.lane.b32.xlu0 %v2425, 24
        %v2919 = vpop.permute.xlu0 %2918
        %2920 = vrot.lane.b32.xlu0 %v2426, 24
        %v2921 = vpop.permute.xlu0 %2920
        %2922 = vrot.lane.b32.xlu0 %v2427, 24
        %v2923 = vpop.permute.xlu0 %2922
        %2924 = vrot.lane.b32.xlu0 %v2428, 24
        %v2925 = vpop.permute.xlu0 %2924
        %2926 = vrot.lane.b32.xlu0 %v2429, 24
        %v2927 = vpop.permute.xlu0 %2926
        %2928 = vrot.lane.b32.xlu0 %v2430, 24
        %v2929 = vpop.permute.xlu0 %2928
        %2930 = vrot.lane.b32.xlu0 %v2431, 24
        %v2931 = vpop.permute.xlu0 %2930
        %2932 = vrot.lane.b32.xlu0 %v2432, 24
        %v2933 = vpop.permute.xlu0 %2932
        %2934 = vrot.lane.b32.xlu0 %v2433, 24
        %v2935 = vpop.permute.xlu0 %2934
        %2936 = vrot.lane.b32.xlu0 %v2434, 24
        %v2937 = vpop.permute.xlu0 %2936
        %2938 = vrot.lane.b32.xlu0 %v2435, 24
        %v2939 = vpop.permute.xlu0 %2938
        %2940 = vrot.lane.b32.xlu0 %v2436, 24
        %v2941 = vpop.permute.xlu0 %2940
        %2942 = vrot.lane.b32.xlu0 %v2437, 24
        %v2943 = vpop.permute.xlu0 %2942
        %2944 = vrot.lane.b32.xlu0 %v2438, 24
        %v2945 = vpop.permute.xlu0 %2944
        %2946 = vrot.lane.b32.xlu0 %v2439, 24
        %v2947 = vpop.permute.xlu0 %2946
        %2948 = vrot.lane.b32.xlu0 %v2440, 24
        %v2949 = vpop.permute.xlu0 %2948
        %2950 = vrot.lane.b32.xlu0 %v2441, 24
        %v2951 = vpop.permute.xlu0 %2950
        %2952 = vrot.lane.b32.xlu0 %v2442, 24
        %v2953 = vpop.permute.xlu0 %2952
        %2954 = vrot.lane.b32.xlu0 %v2443, 24
        %v2955 = vpop.permute.xlu0 %2954
        %2956 = vrot.lane.b32.xlu0 %v2444, 24
        %v2957 = vpop.permute.xlu0 %2956
        %3022 = vrot.lane.b32.xlu0 %v2445, 32
        %v3023 = vpop.permute.xlu0 %3022
        %3024 = vrot.lane.b32.xlu0 %v2446, 32
        %v3025 = vpop.permute.xlu0 %3024
        %3026 = vrot.lane.b32.xlu0 %v2447, 32
        %v3027 = vpop.permute.xlu0 %3026
        %3028 = vrot.lane.b32.xlu0 %v2448, 32
        %v3029 = vpop.permute.xlu0 %3028
        %3030 = vrot.lane.b32.xlu0 %v2449, 32
        %v3031 = vpop.permute.xlu0 %3030
        %3032 = vrot.lane.b32.xlu0 %v2450, 32
        %v3033 = vpop.permute.xlu0 %3032
        %3034 = vrot.lane.b32.xlu0 %v2451, 32
        %v3035 = vpop.permute.xlu0 %3034
        %3036 = vrot.lane.b32.xlu0 %v2452, 32
        %v3037 = vpop.permute.xlu0 %3036
        %3038 = vrot.lane.b32.xlu0 %v2453, 32
        %v3039 = vpop.permute.xlu0 %3038
        %3040 = vrot.lane.b32.xlu0 %v2454, 32
        %v3041 = vpop.permute.xlu0 %3040
        %3042 = vrot.lane.b32.xlu0 %v2455, 32
        %v3043 = vpop.permute.xlu0 %3042
        %3044 = vrot.lane.b32.xlu0 %v2456, 32
        %v3045 = vpop.permute.xlu0 %3044
        %3046 = vrot.lane.b32.xlu0 %v2457, 32
        %v3047 = vpop.permute.xlu0 %3046
        %3048 = vrot.lane.b32.xlu0 %v2458, 32
        %v3049 = vpop.permute.xlu0 %3048
        %3050 = vrot.lane.b32.xlu0 %v2459, 32
        %v3051 = vpop.permute.xlu0 %3050
        %3052 = vrot.lane.b32.xlu0 %v2460, 32
        %v3053 = vpop.permute.xlu0 %3052
        %3054 = vrot.lane.b32.xlu0 %v2461, 32
        %v3055 = vpop.permute.xlu0 %3054
        %3056 = vrot.lane.b32.xlu0 %v2462, 32
        %v3057 = vpop.permute.xlu0 %3056
        %3058 = vrot.lane.b32.xlu0 %v2463, 32
        %v3059 = vpop.permute.xlu0 %3058
        %3060 = vrot.lane.b32.xlu0 %v2464, 32
        %v3061 = vpop.permute.xlu0 %3060
        %3062 = vrot.lane.b32.xlu0 %v2465, 32
        %v3063 = vpop.permute.xlu0 %3062
        %3064 = vrot.lane.b32.xlu0 %v2466, 32
        %v3065 = vpop.permute.xlu0 %3064
        %3066 = vrot.lane.b32.xlu0 %v2467, 32
        %v3067 = vpop.permute.xlu0 %3066
        %3068 = vrot.lane.b32.xlu0 %v2468, 32
        %v3069 = vpop.permute.xlu0 %3068
        %3070 = vrot.lane.b32.xlu0 %v2469, 32
        %v3071 = vpop.permute.xlu0 %3070
        %3072 = vrot.lane.b32.xlu0 %v2470, 32
        %v3073 = vpop.permute.xlu0 %3072
        %3074 = vrot.lane.b32.xlu0 %v2471, 32
        %v3075 = vpop.permute.xlu0 %3074
        %3076 = vrot.lane.b32.xlu0 %v2472, 32
        %v3077 = vpop.permute.xlu0 %3076
        %3078 = vrot.lane.b32.xlu0 %v2473, 32
        %v3079 = vpop.permute.xlu0 %3078
        %3080 = vrot.lane.b32.xlu0 %v2474, 32
        %v3081 = vpop.permute.xlu0 %3080
        %3082 = vrot.lane.b32.xlu0 %v2475, 32
        %v3083 = vpop.permute.xlu0 %3082
        %3084 = vrot.lane.b32.xlu0 %v2476, 32
        %v3085 = vpop.permute.xlu0 %3084
        %3150 = vrot.lane.b32.xlu0 %v2477, 40
        %v3151 = vpop.permute.xlu0 %3150
        %3152 = vrot.lane.b32.xlu0 %v2478, 40
        %v3153 = vpop.permute.xlu0 %3152
        %3154 = vrot.lane.b32.xlu0 %v2479, 40
        %v3155 = vpop.permute.xlu0 %3154
        %3156 = vrot.lane.b32.xlu0 %v2480, 40
        %v3157 = vpop.permute.xlu0 %3156
        %3158 = vrot.lane.b32.xlu0 %v2481, 40
        %v3159 = vpop.permute.xlu0 %3158
        %3160 = vrot.lane.b32.xlu0 %v2482, 40
        %v3161 = vpop.permute.xlu0 %3160
        %3162 = vrot.lane.b32.xlu0 %v2483, 40
        %v3163 = vpop.permute.xlu0 %3162
        %3164 = vrot.lane.b32.xlu0 %v2484, 40
        %v3165 = vpop.permute.xlu0 %3164
        %3166 = vrot.lane.b32.xlu0 %v2485, 40
        %v3167 = vpop.permute.xlu0 %3166
        %3168 = vrot.lane.b32.xlu0 %v2486, 40
        %v3169 = vpop.permute.xlu0 %3168
        %3170 = vrot.lane.b32.xlu0 %v2487, 40
        %v3171 = vpop.permute.xlu0 %3170
        %3172 = vrot.lane.b32.xlu0 %v2488, 40
        %v3173 = vpop.permute.xlu0 %3172
        %3174 = vrot.lane.b32.xlu0 %v2489, 40
        %v3175 = vpop.permute.xlu0 %3174
        %3176 = vrot.lane.b32.xlu0 %v2490, 40
        %v3177 = vpop.permute.xlu0 %3176
        %3178 = vrot.lane.b32.xlu0 %v2491, 40
        %v3179 = vpop.permute.xlu0 %3178
        %3180 = vrot.lane.b32.xlu0 %v2492, 40
        %v3181 = vpop.permute.xlu0 %3180
        %3182 = vrot.lane.b32.xlu0 %v2493, 40
        %v3183 = vpop.permute.xlu0 %3182
        %3184 = vrot.lane.b32.xlu0 %v2494, 40
        %v3185 = vpop.permute.xlu0 %3184
        %3186 = vrot.lane.b32.xlu0 %v2495, 40
        %v3187 = vpop.permute.xlu0 %3186
        %3188 = vrot.lane.b32.xlu0 %v2496, 40
        %v3189 = vpop.permute.xlu0 %3188
        %3190 = vrot.lane.b32.xlu0 %v2497, 40
        %v3191 = vpop.permute.xlu0 %3190
        %3192 = vrot.lane.b32.xlu0 %v2498, 40
        %v3193 = vpop.permute.xlu0 %3192
        %3194 = vrot.lane.b32.xlu0 %v2499, 40
        %v3195 = vpop.permute.xlu0 %3194
        %3196 = vrot.lane.b32.xlu0 %v2500, 40
        %v3197 = vpop.permute.xlu0 %3196
        %3198 = vrot.lane.b32.xlu0 %v2501, 40
        %v3199 = vpop.permute.xlu0 %3198
        %3200 = vrot.lane.b32.xlu0 %v2502, 40
        %v3201 = vpop.permute.xlu0 %3200
        %3202 = vrot.lane.b32.xlu0 %v2503, 40
        %v3203 = vpop.permute.xlu0 %3202
        %3204 = vrot.lane.b32.xlu0 %v2504, 40
        %v3205 = vpop.permute.xlu0 %3204
        %3206 = vrot.lane.b32.xlu0 %v2505, 40
        %v3207 = vpop.permute.xlu0 %3206
        %3208 = vrot.lane.b32.xlu0 %v2506, 40
        %v3209 = vpop.permute.xlu0 %3208
        %3210 = vrot.lane.b32.xlu0 %v2507, 40
        %v3211 = vpop.permute.xlu0 %3210
        %3212 = vrot.lane.b32.xlu0 %v2508, 40
        %v3213 = vpop.permute.xlu0 %3212
        %3278 = vrot.lane.b32.xlu0 %v2510, 48
        %v3279 = vpop.permute.xlu0 %3278
        %3280 = vrot.lane.b32.xlu0 %v2511, 48
        %v3281 = vpop.permute.xlu0 %3280
        %3282 = vrot.lane.b32.xlu0 %v2512, 48
        %v3283 = vpop.permute.xlu0 %3282
        %3284 = vrot.lane.b32.xlu0 %v2513, 48
        %v3285 = vpop.permute.xlu0 %3284
        %3286 = vrot.lane.b32.xlu0 %v2514, 48
        %v3287 = vpop.permute.xlu0 %3286
        %3288 = vrot.lane.b32.xlu0 %v2515, 48
        %v3289 = vpop.permute.xlu0 %3288
        %3290 = vrot.lane.b32.xlu0 %v2516, 48
        %v3291 = vpop.permute.xlu0 %3290
        %3292 = vrot.lane.b32.xlu0 %v2517, 48
        %v3293 = vpop.permute.xlu0 %3292
        %3294 = vrot.lane.b32.xlu0 %v2518, 48
        %v3295 = vpop.permute.xlu0 %3294
        %3296 = vrot.lane.b32.xlu0 %v2519, 48
        %v3297 = vpop.permute.xlu0 %3296
        %3298 = vrot.lane.b32.xlu0 %v2520, 48
        %v3299 = vpop.permute.xlu0 %3298
        %3300 = vrot.lane.b32.xlu0 %v2521, 48
        %v3301 = vpop.permute.xlu0 %3300
        %3302 = vrot.lane.b32.xlu0 %v2522, 48
        %v3303 = vpop.permute.xlu0 %3302
        %3304 = vrot.lane.b32.xlu0 %v2523, 48
        %v3305 = vpop.permute.xlu0 %3304
        %3306 = vrot.lane.b32.xlu0 %v2524, 48
        %v3307 = vpop.permute.xlu0 %3306
        %3308 = vrot.lane.b32.xlu0 %v2525, 48
        %v3309 = vpop.permute.xlu0 %3308
        %3310 = vrot.lane.b32.xlu0 %v2526, 48
        %v3311 = vpop.permute.xlu0 %3310
        %3312 = vrot.lane.b32.xlu0 %v2527, 48
        %v3313 = vpop.permute.xlu0 %3312
        %3314 = vrot.lane.b32.xlu0 %v2528, 48
        %v3315 = vpop.permute.xlu0 %3314
        %3316 = vrot.lane.b32.xlu0 %v2529, 48
        %v3317 = vpop.permute.xlu0 %3316
        %3318 = vrot.lane.b32.xlu0 %v2530, 48
        %v3319 = vpop.permute.xlu0 %3318
        %3320 = vrot.lane.b32.xlu0 %v2531, 48
        %v3321 = vpop.permute.xlu0 %3320
        %3322 = vrot.lane.b32.xlu0 %v2532, 48
        %v3323 = vpop.permute.xlu0 %3322
        %3324 = vrot.lane.b32.xlu0 %v2533, 48
        %v3325 = vpop.permute.xlu0 %3324
        %3326 = vrot.lane.b32.xlu0 %v2534, 48
        %v3327 = vpop.permute.xlu0 %3326
        %3328 = vrot.lane.b32.xlu0 %v2535, 48
        %v3329 = vpop.permute.xlu0 %3328
        %3330 = vrot.lane.b32.xlu0 %v2536, 48
        %v3331 = vpop.permute.xlu0 %3330
        %3332 = vrot.lane.b32.xlu0 %v2537, 48
        %v3333 = vpop.permute.xlu0 %3332
        %3334 = vrot.lane.b32.xlu0 %v2538, 48
        %v3335 = vpop.permute.xlu0 %3334
        %3336 = vrot.lane.b32.xlu0 %v2539, 48
        %v3337 = vpop.permute.xlu0 %3336
        %3338 = vrot.lane.b32.xlu0 %v2540, 48
        %v3339 = vpop.permute.xlu0 %3338
        %3340 = vrot.lane.b32.xlu0 %v2541, 48
        %v3341 = vpop.permute.xlu0 %3340
        %3406 = vrot.lane.b32.xlu0 %v2542, 56
        %v3407 = vpop.permute.xlu0 %3406
        %3408 = vrot.lane.b32.xlu0 %v2543, 56
        %v3409 = vpop.permute.xlu0 %3408
        %3410 = vrot.lane.b32.xlu0 %v2544, 56
        %v3411 = vpop.permute.xlu0 %3410
        %3412 = vrot.lane.b32.xlu0 %v2545, 56
        %v3413 = vpop.permute.xlu0 %3412
        %3414 = vrot.lane.b32.xlu0 %v2546, 56
        %v3415 = vpop.permute.xlu0 %3414
        %3416 = vrot.lane.b32.xlu0 %v2547, 56
        %v3417 = vpop.permute.xlu0 %3416
        %3418 = vrot.lane.b32.xlu0 %v2548, 56
        %v3419 = vpop.permute.xlu0 %3418
        %3420 = vrot.lane.b32.xlu0 %v2549, 56
        %v3421 = vpop.permute.xlu0 %3420
        %3422 = vrot.lane.b32.xlu0 %v2550, 56
        %v3423 = vpop.permute.xlu0 %3422
        %3424 = vrot.lane.b32.xlu0 %v2551, 56
        %v3425 = vpop.permute.xlu0 %3424
        %3426 = vrot.lane.b32.xlu0 %v2552, 56
        %v3427 = vpop.permute.xlu0 %3426
        %3428 = vrot.lane.b32.xlu0 %v2553, 56
        %v3429 = vpop.permute.xlu0 %3428
        %3430 = vrot.lane.b32.xlu0 %v2554, 56
        %v3431 = vpop.permute.xlu0 %3430
        %3432 = vrot.lane.b32.xlu0 %v2555, 56
        %v3433 = vpop.permute.xlu0 %3432
        %3434 = vrot.lane.b32.xlu0 %v2556, 56
        %v3435 = vpop.permute.xlu0 %3434
        %3436 = vrot.lane.b32.xlu0 %v2557, 56
        %v3437 = vpop.permute.xlu0 %3436
        %3438 = vrot.lane.b32.xlu0 %v2558, 56
        %v3439 = vpop.permute.xlu0 %3438
        %3440 = vrot.lane.b32.xlu0 %v2559, 56
        %v3441 = vpop.permute.xlu0 %3440
        %3442 = vrot.lane.b32.xlu0 %v2560, 56
        %v3443 = vpop.permute.xlu0 %3442
        %3444 = vrot.lane.b32.xlu0 %v2561, 56
        %v3445 = vpop.permute.xlu0 %3444
        %3446 = vrot.lane.b32.xlu0 %v2562, 56
        %v3447 = vpop.permute.xlu0 %3446
        %3448 = vrot.lane.b32.xlu0 %v2563, 56
        %v3449 = vpop.permute.xlu0 %3448
        %3450 = vrot.lane.b32.xlu0 %v2564, 56
        %v3451 = vpop.permute.xlu0 %3450
        %3452 = vrot.lane.b32.xlu0 %v2565, 56
        %v3453 = vpop.permute.xlu0 %3452
        %3454 = vrot.lane.b32.xlu0 %v2566, 56
        %v3455 = vpop.permute.xlu0 %3454
        %3456 = vrot.lane.b32.xlu0 %v2567, 56
        %v3457 = vpop.permute.xlu0 %3456
        %3458 = vrot.lane.b32.xlu0 %v2568, 56
        %v3459 = vpop.permute.xlu0 %3458
        %3460 = vrot.lane.b32.xlu0 %v2569, 56
        %v3461 = vpop.permute.xlu0 %3460
        %3462 = vrot.lane.b32.xlu0 %v2570, 56
        %v3463 = vpop.permute.xlu0 %3462
        %3464 = vrot.lane.b32.xlu0 %v2571, 56
        %v3465 = vpop.permute.xlu0 %3464
        %3466 = vrot.lane.b32.xlu0 %v2572, 56
        %v3467 = vpop.permute.xlu0 %3466
        %3468 = vrot.lane.b32.xlu0 %v2573, 56
        %v3469 = vpop.permute.xlu0 %3468
        %3534 = vrot.lane.b32.xlu0 %v2574, 64
        %v3535 = vpop.permute.xlu0 %3534
        %3536 = vrot.lane.b32.xlu0 %v2575, 64
        %v3537 = vpop.permute.xlu0 %3536
        %3538 = vrot.lane.b32.xlu0 %v2576, 64
        %v3539 = vpop.permute.xlu0 %3538
        %3540 = vrot.lane.b32.xlu0 %v2577, 64
        %v3541 = vpop.permute.xlu0 %3540
        %3542 = vrot.lane.b32.xlu0 %v2578, 64
        %v3543 = vpop.permute.xlu0 %3542
        %3544 = vrot.lane.b32.xlu0 %v2579, 64
        %v3545 = vpop.permute.xlu0 %3544
        %3546 = vrot.lane.b32.xlu0 %v2580, 64
        %v3547 = vpop.permute.xlu0 %3546
        %3548 = vrot.lane.b32.xlu0 %v2581, 64
        %v3549 = vpop.permute.xlu0 %3548
        %3550 = vrot.lane.b32.xlu0 %v2582, 64
        %v3551 = vpop.permute.xlu0 %3550
        %3552 = vrot.lane.b32.xlu0 %v2583, 64
        %v3553 = vpop.permute.xlu0 %3552
        %3554 = vrot.lane.b32.xlu0 %v2584, 64
        %v3555 = vpop.permute.xlu0 %3554
        %3556 = vrot.lane.b32.xlu0 %v2585, 64
        %v3557 = vpop.permute.xlu0 %3556
        %3558 = vrot.lane.b32.xlu0 %v2586, 64
        %v3559 = vpop.permute.xlu0 %3558
        %3560 = vrot.lane.b32.xlu0 %v2587, 64
        %v3561 = vpop.permute.xlu0 %3560
        %3562 = vrot.lane.b32.xlu0 %v2588, 64
        %v3563 = vpop.permute.xlu0 %3562
        %3564 = vrot.lane.b32.xlu0 %v2589, 64
        %v3565 = vpop.permute.xlu0 %3564
        %3566 = vrot.lane.b32.xlu0 %v2590, 64
        %v3567 = vpop.permute.xlu0 %3566
        %3568 = vrot.lane.b32.xlu0 %v2591, 64
        %v3569 = vpop.permute.xlu0 %3568
        %3570 = vrot.lane.b32.xlu0 %v2592, 64
        %v3571 = vpop.permute.xlu0 %3570
        %3572 = vrot.lane.b32.xlu0 %v2593, 64
        %v3573 = vpop.permute.xlu0 %3572
        %3574 = vrot.lane.b32.xlu0 %v2594, 64
        %v3575 = vpop.permute.xlu0 %3574
        %3576 = vrot.lane.b32.xlu0 %v2595, 64
        %v3577 = vpop.permute.xlu0 %3576
        %3578 = vrot.lane.b32.xlu0 %v2596, 64
        %v3579 = vpop.permute.xlu0 %3578
        %3580 = vrot.lane.b32.xlu0 %v2597, 64
        %v3581 = vpop.permute.xlu0 %3580
        %3582 = vrot.lane.b32.xlu0 %v2598, 64
        %v3583 = vpop.permute.xlu0 %3582
        %3584 = vrot.lane.b32.xlu0 %v2599, 64
        %v3585 = vpop.permute.xlu0 %3584
        %3586 = vrot.lane.b32.xlu0 %v2600, 64
        %v3587 = vpop.permute.xlu0 %3586
        %3588 = vrot.lane.b32.xlu0 %v2601, 64
        %v3589 = vpop.permute.xlu0 %3588
        %3590 = vrot.lane.b32.xlu0 %v2602, 64
        %v3591 = vpop.permute.xlu0 %3590
        %3592 = vrot.lane.b32.xlu0 %v2603, 64
        %v3593 = vpop.permute.xlu0 %3592
        %3594 = vrot.lane.b32.xlu0 %v2604, 64
        %v3595 = vpop.permute.xlu0 %3594
        %3596 = vrot.lane.b32.xlu0 %v2605, 64
        %v3597 = vpop.permute.xlu0 %3596
        %v3630 = vsel %vm398, %v2317, %v2639
        %v3631 = vsel %vm398, %v2318, %v2641
        %v3632 = vsel %vm398, %v2319, %v2643
        %v3633 = vsel %vm398, %v2320, %v2645
        %v3634 = vsel %vm398, %v2321, %v2647
        %v3635 = vsel %vm398, %v2322, %v2649
        %v3636 = vsel %vm398, %v2323, %v2651
        %v3637 = vsel %vm398, %v2324, %v2653
        %v3638 = vsel %vm398, %v2325, %v2655
        %v3639 = vsel %vm398, %v2326, %v2657
        %v3640 = vsel %vm398, %v2327, %v2659
        %v3641 = vsel %vm398, %v2328, %v2661
        %v3642 = vsel %vm398, %v2329, %v2663
        %v3643 = vsel %vm398, %v2330, %v2665
        %v3644 = vsel %vm398, %v2331, %v2667
        %v3645 = vsel %vm398, %v2332, %v2669
        %v3646 = vsel %vm398, %v2333, %v2671
        %v3647 = vsel %vm398, %v2334, %v2673
        %v3648 = vsel %vm398, %v2335, %v2675
        %v3649 = vsel %vm398, %v2336, %v2677
        %v3650 = vsel %vm398, %v2337, %v2679
        %v3651 = vsel %vm398, %v2338, %v2681
        %v3652 = vsel %vm398, %v2339, %v2683
        %v3653 = vsel %vm398, %v2340, %v2685
        %v3654 = vsel %vm398, %v2341, %v2687
        %v3655 = vsel %vm398, %v2342, %v2689
        %v3656 = vsel %vm398, %v2343, %v2691
        %v3657 = vsel %vm398, %v2344, %v2693
        %v3658 = vsel %vm398, %v2345, %v2695
        %v3659 = vsel %vm398, %v2346, %v2697
        %v3660 = vsel %vm398, %v2347, %v2699
        %v3661 = vsel %vm398, %v2348, %v2701
        %v3662 = vsel %vm1864, %v3630, %v2767
        %v3663 = vsel %vm1864, %v3631, %v2769
        %v3664 = vsel %vm1864, %v3632, %v2771
        %v3665 = vsel %vm1864, %v3633, %v2773
        %v3666 = vsel %vm1864, %v3634, %v2775
        %v3667 = vsel %vm1864, %v3635, %v2777
        %v3668 = vsel %vm1864, %v3636, %v2779
        %v3669 = vsel %vm1864, %v3637, %v2781
        %v3670 = vsel %vm1864, %v3638, %v2783
        %v3671 = vsel %vm1864, %v3639, %v2785
        %v3672 = vsel %vm1864, %v3640, %v2787
        %v3673 = vsel %vm1864, %v3641, %v2789
        %v3674 = vsel %vm1864, %v3642, %v2791
        %v3675 = vsel %vm1864, %v3643, %v2793
        %v3676 = vsel %vm1864, %v3644, %v2795
        %v3677 = vsel %vm1864, %v3645, %v2797
        %v3678 = vsel %vm1864, %v3646, %v2799
        %v3679 = vsel %vm1864, %v3647, %v2801
        %v3680 = vsel %vm1864, %v3648, %v2803
        %v3681 = vsel %vm1864, %v3649, %v2805
        %v3682 = vsel %vm1864, %v3650, %v2807
        %v3683 = vsel %vm1864, %v3651, %v2809
        %v3684 = vsel %vm1864, %v3652, %v2811
        %v3685 = vsel %vm1864, %v3653, %v2813
        %v3686 = vsel %vm1864, %v3654, %v2815
        %v3687 = vsel %vm1864, %v3655, %v2817
        %v3688 = vsel %vm1864, %v3656, %v2819
        %v3689 = vsel %vm1864, %v3657, %v2821
        %v3690 = vsel %vm1864, %v3658, %v2823
        %v3691 = vsel %vm1864, %v3659, %v2825
        %v3692 = vsel %vm1864, %v3660, %v2827
        %v3693 = vsel %vm1864, %v3661, %v2829
        %v3694 = vsel %vm1930, %v3662, %v2895
        %v3695 = vsel %vm1930, %v3663, %v2897
        %v3696 = vsel %vm1930, %v3664, %v2899
        %v3697 = vsel %vm1930, %v3665, %v2901
        %v3698 = vsel %vm1930, %v3666, %v2903
        %v3699 = vsel %vm1930, %v3667, %v2905
        %v3700 = vsel %vm1930, %v3668, %v2907
        %v3701 = vsel %vm1930, %v3669, %v2909
        %v3702 = vsel %vm1930, %v3670, %v2911
        %v3703 = vsel %vm1930, %v3671, %v2913
        %v3704 = vsel %vm1930, %v3672, %v2915
        %v3705 = vsel %vm1930, %v3673, %v2917
        %v3706 = vsel %vm1930, %v3674, %v2919
        %v3707 = vsel %vm1930, %v3675, %v2921
        %v3708 = vsel %vm1930, %v3676, %v2923
        %v3709 = vsel %vm1930, %v3677, %v2925
        %v3710 = vsel %vm1930, %v3678, %v2927
        %v3711 = vsel %vm1930, %v3679, %v2929
        %v3712 = vsel %vm1930, %v3680, %v2931
        %v3713 = vsel %vm1930, %v3681, %v2933
        %v3714 = vsel %vm1930, %v3682, %v2935
        %v3715 = vsel %vm1930, %v3683, %v2937
        %v3716 = vsel %vm1930, %v3684, %v2939
        %v3717 = vsel %vm1930, %v3685, %v2941
        %v3718 = vsel %vm1930, %v3686, %v2943
        %v3719 = vsel %vm1930, %v3687, %v2945
        %v3720 = vsel %vm1930, %v3688, %v2947
        %v3721 = vsel %vm1930, %v3689, %v2949
        %v3722 = vsel %vm1930, %v3690, %v2951
        %v3723 = vsel %vm1930, %v3691, %v2953
        %v3724 = vsel %vm1930, %v3692, %v2955
        %v3725 = vsel %vm1930, %v3693, %v2957
        %v3726 = vsel %vm1996, %v3694, %v3023
        %v3727 = vsel %vm1996, %v3695, %v3025
        %v3728 = vsel %vm1996, %v3696, %v3027
        %v3729 = vsel %vm1996, %v3697, %v3029
        %v3730 = vsel %vm1996, %v3698, %v3031
        %v3731 = vsel %vm1996, %v3699, %v3033
        %v3732 = vsel %vm1996, %v3700, %v3035
        %v3733 = vsel %vm1996, %v3701, %v3037
        %v3734 = vsel %vm1996, %v3702, %v3039
        %v3735 = vsel %vm1996, %v3703, %v3041
        %v3736 = vsel %vm1996, %v3704, %v3043
        %v3737 = vsel %vm1996, %v3705, %v3045
        %v3738 = vsel %vm1996, %v3706, %v3047
        %v3739 = vsel %vm1996, %v3707, %v3049
        %v3740 = vsel %vm1996, %v3708, %v3051
        %v3741 = vsel %vm1996, %v3709, %v3053
        %v3742 = vsel %vm1996, %v3710, %v3055
        %v3743 = vsel %vm1996, %v3711, %v3057
        %v3744 = vsel %vm1996, %v3712, %v3059
        %v3745 = vsel %vm1996, %v3713, %v3061
        %v3746 = vsel %vm1996, %v3714, %v3063
        %v3747 = vsel %vm1996, %v3715, %v3065
        %v3748 = vsel %vm1996, %v3716, %v3067
        %v3749 = vsel %vm1996, %v3717, %v3069
        %v3750 = vsel %vm1996, %v3718, %v3071
        %v3751 = vsel %vm1996, %v3719, %v3073
        %v3752 = vsel %vm1996, %v3720, %v3075
        %v3753 = vsel %vm1996, %v3721, %v3077
        %v3754 = vsel %vm1996, %v3722, %v3079
        %v3755 = vsel %vm1996, %v3723, %v3081
        %v3756 = vsel %vm1996, %v3724, %v3083
        %v3757 = vsel %vm1996, %v3725, %v3085
        %vm3758 = vcmask 326656
        %v3759 = vsel %vm3758, %v3726, %v3151
        %v3760 = vsel %vm3758, %v3727, %v3153
        %v3761 = vsel %vm3758, %v3728, %v3155
        %v3762 = vsel %vm3758, %v3729, %v3157
        %v3763 = vsel %vm3758, %v3730, %v3159
        %v3764 = vsel %vm3758, %v3731, %v3161
        %v3765 = vsel %vm3758, %v3732, %v3163
        %v3766 = vsel %vm3758, %v3733, %v3165
        %v3767 = vsel %vm3758, %v3734, %v3167
        %v3768 = vsel %vm3758, %v3735, %v3169
        %v3769 = vsel %vm3758, %v3736, %v3171
        %v3770 = vsel %vm3758, %v3737, %v3173
        %v3771 = vsel %vm3758, %v3738, %v3175
        %v3772 = vsel %vm3758, %v3739, %v3177
        %v3773 = vsel %vm3758, %v3740, %v3179
        %v3774 = vsel %vm3758, %v3741, %v3181
        %v3775 = vsel %vm3758, %v3742, %v3183
        %v3776 = vsel %vm3758, %v3743, %v3185
        %v3777 = vsel %vm3758, %v3744, %v3187
        %v3778 = vsel %vm3758, %v3745, %v3189
        %v3779 = vsel %vm3758, %v3746, %v3191
        %v3780 = vsel %vm3758, %v3747, %v3193
        %v3781 = vsel %vm3758, %v3748, %v3195
        %v3782 = vsel %vm3758, %v3749, %v3197
        %v3783 = vsel %vm3758, %v3750, %v3199
        %v3784 = vsel %vm3758, %v3751, %v3201
        %v3785 = vsel %vm3758, %v3752, %v3203
        %v3786 = vsel %vm3758, %v3753, %v3205
        %v3787 = vsel %vm3758, %v3754, %v3207
        %v3788 = vsel %vm3758, %v3755, %v3209
        %v3789 = vsel %vm3758, %v3756, %v3211
        %v3790 = vsel %vm3758, %v3757, %v3213
        %vm3791 = vcmask 392192
        %v3792 = vsel %vm3791, %v3759, %v3279
        %v3793 = vsel %vm3791, %v3760, %v3281
        %v3794 = vsel %vm3791, %v3761, %v3283
        %v3795 = vsel %vm3791, %v3762, %v3285
        %v3796 = vsel %vm3791, %v3763, %v3287
        %v3797 = vsel %vm3791, %v3764, %v3289
        %v3798 = vsel %vm3791, %v3765, %v3291
        %v3799 = vsel %vm3791, %v3766, %v3293
        %v3800 = vsel %vm3791, %v3767, %v3295
        %v3801 = vsel %vm3791, %v3768, %v3297
        %v3802 = vsel %vm3791, %v3769, %v3299
        %v3803 = vsel %vm3791, %v3770, %v3301
        %v3804 = vsel %vm3791, %v3771, %v3303
        %v3805 = vsel %vm3791, %v3772, %v3305
        %v3806 = vsel %vm3791, %v3773, %v3307
        %v3807 = vsel %vm3791, %v3774, %v3309
        %v3808 = vsel %vm3791, %v3775, %v3311
        %v3809 = vsel %vm3791, %v3776, %v3313
        %v3810 = vsel %vm3791, %v3777, %v3315
        %v3811 = vsel %vm3791, %v3778, %v3317
        %v3812 = vsel %vm3791, %v3779, %v3319
        %v3813 = vsel %vm3791, %v3780, %v3321
        %v3814 = vsel %vm3791, %v3781, %v3323
        %v3815 = vsel %vm3791, %v3782, %v3325
        %v3816 = vsel %vm3791, %v3783, %v3327
        %v3817 = vsel %vm3791, %v3784, %v3329
        %v3818 = vsel %vm3791, %v3785, %v3331
        %v3819 = vsel %vm3791, %v3786, %v3333
        %v3820 = vsel %vm3791, %v3787, %v3335
        %v3821 = vsel %vm3791, %v3788, %v3337
        %v3822 = vsel %vm3791, %v3789, %v3339
        %v3823 = vsel %vm3791, %v3790, %v3341
        %vm3824 = vcmask 457728
        %v3825 = vsel %vm3824, %v3792, %v3407
        %v3826 = vsel %vm3824, %v3793, %v3409
        %v3827 = vsel %vm3824, %v3794, %v3411
        %v3828 = vsel %vm3824, %v3795, %v3413
        %v3829 = vsel %vm3824, %v3796, %v3415
        %v3830 = vsel %vm3824, %v3797, %v3417
        %v3831 = vsel %vm3824, %v3798, %v3419
        %v3832 = vsel %vm3824, %v3799, %v3421
        %v3833 = vsel %vm3824, %v3800, %v3423
        %v3834 = vsel %vm3824, %v3801, %v3425
        %v3835 = vsel %vm3824, %v3802, %v3427
        %v3836 = vsel %vm3824, %v3803, %v3429
        %v3837 = vsel %vm3824, %v3804, %v3431
        %v3838 = vsel %vm3824, %v3805, %v3433
        %v3839 = vsel %vm3824, %v3806, %v3435
        %v3840 = vsel %vm3824, %v3807, %v3437
        %v3841 = vsel %vm3824, %v3808, %v3439
        %v3842 = vsel %vm3824, %v3809, %v3441
        %v3843 = vsel %vm3824, %v3810, %v3443
        %v3844 = vsel %vm3824, %v3811, %v3445
        %v3845 = vsel %vm3824, %v3812, %v3447
        %v3846 = vsel %vm3824, %v3813, %v3449
        %v3847 = vsel %vm3824, %v3814, %v3451
        %v3848 = vsel %vm3824, %v3815, %v3453
        %v3849 = vsel %vm3824, %v3816, %v3455
        %v3850 = vsel %vm3824, %v3817, %v3457
        %v3851 = vsel %vm3824, %v3818, %v3459
        %v3852 = vsel %vm3824, %v3819, %v3461
        %v3853 = vsel %vm3824, %v3820, %v3463
        %v3854 = vsel %vm3824, %v3821, %v3465
        %v3855 = vsel %vm3824, %v3822, %v3467
        %v3856 = vsel %vm3824, %v3823, %v3469
        %vm3857 = vcmask 523264
        %v3858 = vsel %vm3857, %v3825, %v3535
        %v3859 = vsel %vm3857, %v3826, %v3537
        %v3860 = vsel %vm3857, %v3827, %v3539
        %v3861 = vsel %vm3857, %v3828, %v3541
        %v3862 = vsel %vm3857, %v3829, %v3543
        %v3863 = vsel %vm3857, %v3830, %v3545
        %v3864 = vsel %vm3857, %v3831, %v3547
        %v3865 = vsel %vm3857, %v3832, %v3549
        %v3866 = vsel %vm3857, %v3833, %v3551
        %v3867 = vsel %vm3857, %v3834, %v3553
        %v3868 = vsel %vm3857, %v3835, %v3555
        %v3869 = vsel %vm3857, %v3836, %v3557
        %v3870 = vsel %vm3857, %v3837, %v3559
        %v3871 = vsel %vm3857, %v3838, %v3561
        %v3872 = vsel %vm3857, %v3839, %v3563
        %v3873 = vsel %vm3857, %v3840, %v3565
        %v3874 = vsel %vm3857, %v3841, %v3567
        %v3875 = vsel %vm3857, %v3842, %v3569
        %v3876 = vsel %vm3857, %v3843, %v3571
        %v3877 = vsel %vm3857, %v3844, %v3573
        %v3878 = vsel %vm3857, %v3845, %v3575
        %v3879 = vsel %vm3857, %v3846, %v3577
        %v3880 = vsel %vm3857, %v3847, %v3579
        %v3881 = vsel %vm3857, %v3848, %v3581
        %v3882 = vsel %vm3857, %v3849, %v3583
        %v3883 = vsel %vm3857, %v3850, %v3585
        %v3884 = vsel %vm3857, %v3851, %v3587
        %v3885 = vsel %vm3857, %v3852, %v3589
        %v3886 = vsel %vm3857, %v3853, %v3591
        %v3887 = vsel %vm3857, %v3854, %v3593
        %v3888 = vsel %vm3857, %v3855, %v3595
        %v3889 = vsel %vm3857, %v3856, %v3597
        %v3890 = vld [vmem:[%s3] sm:$0xff]
        %v3891 = vld [vmem:[%s3 + $0x8] sm:$0xff]
        %v3892 = vld [vmem:[%s3 + $0x10] sm:$0xff]
        %v3893 = vld [vmem:[%s3 + $0x18] sm:$0xff]
        %v3894 = vld [vmem:[%s3 + $0x20] sm:$0xff]
        %v3895 = vld [vmem:[%s3 + $0x28] sm:$0xff]
        %v3896 = vld [vmem:[%s3 + $0x30] sm:$0xff]
        %v3897 = vld [vmem:[%s3 + $0x38] sm:$0xff]
        %v3898 = vld [vmem:[%s3 + $0x40] sm:$0xff]
        %v3899 = vld [vmem:[%s4] sm:$0x1]
        %v3901 = vperm.slane %v3899, 0
        %vm3903 = vcmask 588800
        %v3905 = vsel %vm3903, %v3858, 0
        %v3908 = vsel %vm3903, %v3859, 0
        %v3911 = vsel %vm3903, %v3860, 0
        %v3914 = vsel %vm3903, %v3861, 0
        %v3917 = vsel %vm3903, %v3862, 0
        %v3920 = vsel %vm3903, %v3863, 0
        %v3923 = vsel %vm3903, %v3864, 0
        %v3926 = vsel %vm3903, %v3865, 0
        %v3929 = vsel %vm3903, %v3866, 0
        %v3932 = vsel %vm3903, %v3867, 0
        %v3935 = vsel %vm3903, %v3868, 0
        %v3938 = vsel %vm3903, %v3869, 0
        %v3941 = vsel %vm3903, %v3870, 0
        %v3944 = vsel %vm3903, %v3871, 0
        %v3947 = vsel %vm3903, %v3872, 0
        %v3950 = vsel %vm3903, %v3873, 0
        %v3953 = vsel %vm3903, %v3874, 0
        %v3956 = vsel %vm3903, %v3875, 0
        %v3959 = vsel %vm3903, %v3876, 0
        %v3962 = vsel %vm3903, %v3877, 0
        %v3965 = vsel %vm3903, %v3878, 0
        %v3968 = vsel %vm3903, %v3879, 0
        %v3971 = vsel %vm3903, %v3880, 0
        %v3974 = vsel %vm3903, %v3881, 0
        %v3977 = vsel %vm3903, %v3882, 0
        %v3980 = vsel %vm3903, %v3883, 0
        %v3983 = vsel %vm3903, %v3884, 0
        %v3986 = vsel %vm3903, %v3885, 0
        %v3989 = vsel %vm3903, %v3886, 0
        %v3992 = vsel %vm3903, %v3887, 0
        %v3995 = vsel %vm3903, %v3888, 0
        %v3998 = vsel %vm3903, %v3889, 0
        %4000 = vmatpush.msra.mxu0 0.0
        %4001 = vmatpush.msra.mxu0 0.0
        %4002 = vmatpush.msra.mxu0 0.0
        %4003 = vmatpush.msra.mxu0 0.0
        %4004 = vmatpush.msra.mxu0 0.0
        %4005 = vmatpush.msra.mxu0 0.0
        %4006 = vmatpush.msra.mxu0 0.0
        %4007 = vmatpush.msra.mxu0 %v3898
        %4008 = vmatpush.msra.mxu0 %v3897
        %4009 = vmatpush.msra.mxu0 %v3896
        %4010 = vmatpush.msra.mxu0 %v3895
        %4011 = vmatpush.msra.mxu0 %v3894
        %4012 = vmatpush.msra.mxu0 %v3893
        %4013 = vmatpush.msra.mxu0 %v3892
        %4014 = vmatpush.msra.mxu0 %v3891
        %4015 = vmatpush.msra.mxu0 %v3890
        %4016 = vmatmul.f32.gmra.mxu0 %v3905
        %v4017 = vpop.f32.mrf.mxu0
        %v4018 = vadd.f32 %v3901, %v4017
        %4019 = vmatmul.f32.gmra.mxu0 %v3908
        %v4020 = vpop.f32.mrf.mxu0
        %v4021 = vadd.f32 %v3901, %v4020
        %4022 = vmatmul.f32.gmra.mxu0 %v3911
        %v4023 = vpop.f32.mrf.mxu0
        %v4024 = vadd.f32 %v3901, %v4023
        %4025 = vmatmul.f32.gmra.mxu0 %v3914
        %v4026 = vpop.f32.mrf.mxu0
        %v4027 = vadd.f32 %v3901, %v4026
        %4028 = vmatmul.f32.gmra.mxu0 %v3917
        %v4029 = vpop.f32.mrf.mxu0
        %v4030 = vadd.f32 %v3901, %v4029
        %4031 = vmatmul.f32.gmra.mxu0 %v3920
        %v4032 = vpop.f32.mrf.mxu0
        %v4033 = vadd.f32 %v3901, %v4032
        %4034 = vmatmul.f32.gmra.mxu0 %v3923
        %v4035 = vpop.f32.mrf.mxu0
        %v4036 = vadd.f32 %v3901, %v4035
        %4037 = vmatmul.f32.gmra.mxu0 %v3926
        %v4038 = vpop.f32.mrf.mxu0
        %v4039 = vadd.f32 %v3901, %v4038
        %4040 = vmatmul.f32.gmra.mxu0 %v3929
        %v4041 = vpop.f32.mrf.mxu0
        %v4042 = vadd.f32 %v3901, %v4041
        %4043 = vmatmul.f32.gmra.mxu0 %v3932
        %v4044 = vpop.f32.mrf.mxu0
        %v4045 = vadd.f32 %v3901, %v4044
        %4046 = vmatmul.f32.gmra.mxu0 %v3935
        %v4047 = vpop.f32.mrf.mxu0
        %v4048 = vadd.f32 %v3901, %v4047
        %4049 = vmatmul.f32.gmra.mxu0 %v3938
        %v4050 = vpop.f32.mrf.mxu0
        %v4051 = vadd.f32 %v3901, %v4050
        %4052 = vmatmul.f32.gmra.mxu0 %v3941
        %v4053 = vpop.f32.mrf.mxu0
        %v4054 = vadd.f32 %v3901, %v4053
        %4055 = vmatmul.f32.gmra.mxu0 %v3944
        %v4056 = vpop.f32.mrf.mxu0
        %v4057 = vadd.f32 %v3901, %v4056
        %4058 = vmatmul.f32.gmra.mxu0 %v3947
        %v4059 = vpop.f32.mrf.mxu0
        %v4060 = vadd.f32 %v3901, %v4059
        %4061 = vmatmul.f32.gmra.mxu0 %v3950
        %v4062 = vpop.f32.mrf.mxu0
        %v4063 = vadd.f32 %v3901, %v4062
        %4064 = vmatmul.f32.gmra.mxu0 %v3953
        %v4065 = vpop.f32.mrf.mxu0
        %v4066 = vadd.f32 %v3901, %v4065
        %4067 = vmatmul.f32.gmra.mxu0 %v3956
        %v4068 = vpop.f32.mrf.mxu0
        %v4069 = vadd.f32 %v3901, %v4068
        %4070 = vmatmul.f32.gmra.mxu0 %v3959
        %v4071 = vpop.f32.mrf.mxu0
        %v4072 = vadd.f32 %v3901, %v4071
        %4073 = vmatmul.f32.gmra.mxu0 %v3962
        %v4074 = vpop.f32.mrf.mxu0
        %v4075 = vadd.f32 %v3901, %v4074
        %4076 = vmatmul.f32.gmra.mxu0 %v3965
        %v4077 = vpop.f32.mrf.mxu0
        %v4078 = vadd.f32 %v3901, %v4077
        %4079 = vmatmul.f32.gmra.mxu0 %v3968
        %v4080 = vpop.f32.mrf.mxu0
        %v4081 = vadd.f32 %v3901, %v4080
        %4082 = vmatmul.f32.gmra.mxu0 %v3971
        %v4083 = vpop.f32.mrf.mxu0
        %v4084 = vadd.f32 %v3901, %v4083
        %4085 = vmatmul.f32.gmra.mxu0 %v3974
        %v4086 = vpop.f32.mrf.mxu0
        %v4087 = vadd.f32 %v3901, %v4086
        %4088 = vmatmul.f32.gmra.mxu0 %v3977
        %v4089 = vpop.f32.mrf.mxu0
        %v4090 = vadd.f32 %v3901, %v4089
        %4091 = vmatmul.f32.gmra.mxu0 %v3980
        %v4092 = vpop.f32.mrf.mxu0
        %v4093 = vadd.f32 %v3901, %v4092
        %4094 = vmatmul.f32.gmra.mxu0 %v3983
        %v4095 = vpop.f32.mrf.mxu0
        %v4096 = vadd.f32 %v3901, %v4095
        %4097 = vmatmul.f32.gmra.mxu0 %v3986
        %v4098 = vpop.f32.mrf.mxu0
        %v4099 = vadd.f32 %v3901, %v4098
        %4100 = vmatmul.f32.gmra.mxu0 %v3989
        %v4101 = vpop.f32.mrf.mxu0
        %v4102 = vadd.f32 %v3901, %v4101
        %4103 = vmatmul.f32.gmra.mxu0 %v3992
        %v4104 = vpop.f32.mrf.mxu0
        %v4105 = vadd.f32 %v3901, %v4104
        %4106 = vmatmul.f32.gmra.mxu0 %v3995
        %v4107 = vpop.f32.mrf.mxu0
        %v4108 = vadd.f32 %v3901, %v4107
        %4109 = vmatmul.f32.gmra.mxu0 %v3998
        %v4110 = vpop.f32.mrf.mxu0
        %v4111 = vadd.f32 %v3901, %v4110
        %4112 = vdwg.mxu0
        %v4113 = vmax.f32 %v4018, 0.0
        %v4114 = vmax.f32 %v4021, 0.0
        %v4115 = vmax.f32 %v4024, 0.0
        %v4116 = vmax.f32 %v4027, 0.0
        %v4117 = vmax.f32 %v4030, 0.0
        %v4118 = vmax.f32 %v4033, 0.0
        %v4119 = vmax.f32 %v4036, 0.0
        %v4120 = vmax.f32 %v4039, 0.0
        %v4121 = vmax.f32 %v4042, 0.0
        %v4122 = vmax.f32 %v4045, 0.0
        %v4123 = vmax.f32 %v4048, 0.0
        %v4124 = vmax.f32 %v4051, 0.0
        %v4125 = vmax.f32 %v4054, 0.0
        %v4126 = vmax.f32 %v4057, 0.0
        %v4127 = vmax.f32 %v4060, 0.0
        %v4128 = vmax.f32 %v4063, 0.0
        %v4129 = vmax.f32 %v4066, 0.0
        %v4130 = vmax.f32 %v4069, 0.0
        %v4131 = vmax.f32 %v4072, 0.0
        %v4132 = vmax.f32 %v4075, 0.0
        %v4133 = vmax.f32 %v4078, 0.0
        %v4134 = vmax.f32 %v4081, 0.0
        %v4135 = vmax.f32 %v4084, 0.0
        %v4136 = vmax.f32 %v4087, 0.0
        %v4137 = vmax.f32 %v4090, 0.0
        %v4138 = vmax.f32 %v4093, 0.0
        %v4139 = vmax.f32 %v4096, 0.0
        %v4140 = vmax.f32 %v4099, 0.0
        %v4141 = vmax.f32 %v4102, 0.0
        %v4142 = vmax.f32 %v4105, 0.0
        %v4143 = vmax.f32 %v4108, 0.0
        %v4144 = vmax.f32 %v4111, 0.0
        %v4145 = vld [vmem:[%s5] sm:$0x1]
        %v4147 = vperm.slane %v4145, 0
        %v4149 = vmul.f32 %v4113, %v4147
        %v4150 = vmul.f32 %v4114, %v4147
        %v4151 = vmul.f32 %v4115, %v4147
        %v4152 = vmul.f32 %v4116, %v4147
        %v4153 = vmul.f32 %v4117, %v4147
        %v4154 = vmul.f32 %v4118, %v4147
        %v4155 = vmul.f32 %v4119, %v4147
        %v4156 = vmul.f32 %v4120, %v4147
        %v4157 = vmul.f32 %v4121, %v4147
        %v4158 = vmul.f32 %v4122, %v4147
        %v4159 = vmul.f32 %v4123, %v4147
        %v4160 = vmul.f32 %v4124, %v4147
        %v4161 = vmul.f32 %v4125, %v4147
        %v4162 = vmul.f32 %v4126, %v4147
        %v4163 = vmul.f32 %v4127, %v4147
        %v4164 = vmul.f32 %v4128, %v4147
        %v4165 = vmul.f32 %v4129, %v4147
        %v4166 = vmul.f32 %v4130, %v4147
        %v4167 = vmul.f32 %v4131, %v4147
        %v4168 = vmul.f32 %v4132, %v4147
        %v4169 = vmul.f32 %v4133, %v4147
        %v4170 = vmul.f32 %v4134, %v4147
        %v4171 = vmul.f32 %v4135, %v4147
        %v4172 = vmul.f32 %v4136, %v4147
        %v4173 = vmul.f32 %v4137, %v4147
        %v4174 = vmul.f32 %v4138, %v4147
        %v4175 = vmul.f32 %v4139, %v4147
        %v4176 = vmul.f32 %v4140, %v4147
        %v4177 = vmul.f32 %v4141, %v4147
        %v4178 = vmul.f32 %v4142, %v4147
        %v4179 = vmul.f32 %v4143, %v4147
        %v4180 = vmul.f32 %v4144, %v4147
        %v4181 = vld [vmem:[%s6] sm:$0x1]
        %v4183 = vperm.slane %v4181, 0
        %v4185 = vadd.f32 %v4149, %v4183
        %v4186 = vadd.f32 %v4150, %v4183
        %v4187 = vadd.f32 %v4151, %v4183
        %v4188 = vadd.f32 %v4152, %v4183
        %v4189 = vadd.f32 %v4153, %v4183
        %v4190 = vadd.f32 %v4154, %v4183
        %v4191 = vadd.f32 %v4155, %v4183
        %v4192 = vadd.f32 %v4156, %v4183
        %v4193 = vadd.f32 %v4157, %v4183
        %v4194 = vadd.f32 %v4158, %v4183
        %v4195 = vadd.f32 %v4159, %v4183
        %v4196 = vadd.f32 %v4160, %v4183
        %v4197 = vadd.f32 %v4161, %v4183
        %v4198 = vadd.f32 %v4162, %v4183
        %v4199 = vadd.f32 %v4163, %v4183
        %v4200 = vadd.f32 %v4164, %v4183
        %v4201 = vadd.f32 %v4165, %v4183
        %v4202 = vadd.f32 %v4166, %v4183
        %v4203 = vadd.f32 %v4167, %v4183
        %v4204 = vadd.f32 %v4168, %v4183
        %v4205 = vadd.f32 %v4169, %v4183
        %v4206 = vadd.f32 %v4170, %v4183
        %v4207 = vadd.f32 %v4171, %v4183
        %v4208 = vadd.f32 %v4172, %v4183
        %v4209 = vadd.f32 %v4173, %v4183
        %v4210 = vadd.f32 %v4174, %v4183
        %v4211 = vadd.f32 %v4175, %v4183
        %v4212 = vadd.f32 %v4176, %v4183
        %v4213 = vadd.f32 %v4177, %v4183
        %v4214 = vadd.f32 %v4178, %v4183
        %v4215 = vadd.f32 %v4179, %v4183
        %v4216 = vadd.f32 %v4180, %v4183
        %4249 = vrot.lane.b32.xlu0 %v4185, 8
        %v4250 = vpop.permute.xlu0 %4249
        %4251 = vrot.lane.b32.xlu0 %v4186, 8
        %v4252 = vpop.permute.xlu0 %4251
        %4253 = vrot.lane.b32.xlu0 %v4187, 8
        %v4254 = vpop.permute.xlu0 %4253
        %4255 = vrot.lane.b32.xlu0 %v4188, 8
        %v4256 = vpop.permute.xlu0 %4255
        %4257 = vrot.lane.b32.xlu0 %v4189, 8
        %v4258 = vpop.permute.xlu0 %4257
        %4259 = vrot.lane.b32.xlu0 %v4190, 8
        %v4260 = vpop.permute.xlu0 %4259
        %4261 = vrot.lane.b32.xlu0 %v4191, 8
        %v4262 = vpop.permute.xlu0 %4261
        %4263 = vrot.lane.b32.xlu0 %v4192, 8
        %v4264 = vpop.permute.xlu0 %4263
        %4265 = vrot.lane.b32.xlu0 %v4193, 8
        %v4266 = vpop.permute.xlu0 %4265
        %4267 = vrot.lane.b32.xlu0 %v4194, 8
        %v4268 = vpop.permute.xlu0 %4267
        %4269 = vrot.lane.b32.xlu0 %v4195, 8
        %v4270 = vpop.permute.xlu0 %4269
        %4271 = vrot.lane.b32.xlu0 %v4196, 8
        %v4272 = vpop.permute.xlu0 %4271
        %4273 = vrot.lane.b32.xlu0 %v4197, 8
        %v4274 = vpop.permute.xlu0 %4273
        %4275 = vrot.lane.b32.xlu0 %v4198, 8
        %v4276 = vpop.permute.xlu0 %4275
        %4277 = vrot.lane.b32.xlu0 %v4199, 8
        %v4278 = vpop.permute.xlu0 %4277
        %4279 = vrot.lane.b32.xlu0 %v4200, 8
        %v4280 = vpop.permute.xlu0 %4279
        %4281 = vrot.lane.b32.xlu0 %v4201, 8
        %v4282 = vpop.permute.xlu0 %4281
        %4283 = vrot.lane.b32.xlu0 %v4202, 8
        %v4284 = vpop.permute.xlu0 %4283
        %4285 = vrot.lane.b32.xlu0 %v4203, 8
        %v4286 = vpop.permute.xlu0 %4285
        %4287 = vrot.lane.b32.xlu0 %v4204, 8
        %v4288 = vpop.permute.xlu0 %4287
        %4289 = vrot.lane.b32.xlu0 %v4205, 8
        %v4290 = vpop.permute.xlu0 %4289
        %4291 = vrot.lane.b32.xlu0 %v4206, 8
        %v4292 = vpop.permute.xlu0 %4291
        %4293 = vrot.lane.b32.xlu0 %v4207, 8
        %v4294 = vpop.permute.xlu0 %4293
        %4295 = vrot.lane.b32.xlu0 %v4208, 8
        %v4296 = vpop.permute.xlu0 %4295
        %4297 = vrot.lane.b32.xlu0 %v4209, 8
        %v4298 = vpop.permute.xlu0 %4297
        %4299 = vrot.lane.b32.xlu0 %v4210, 8
        %v4300 = vpop.permute.xlu0 %4299
        %4301 = vrot.lane.b32.xlu0 %v4211, 8
        %v4302 = vpop.permute.xlu0 %4301
        %4303 = vrot.lane.b32.xlu0 %v4212, 8
        %v4304 = vpop.permute.xlu0 %4303
        %4305 = vrot.lane.b32.xlu0 %v4213, 8
        %v4306 = vpop.permute.xlu0 %4305
        %4307 = vrot.lane.b32.xlu0 %v4214, 8
        %v4308 = vpop.permute.xlu0 %4307
        %4309 = vrot.lane.b32.xlu0 %v4215, 8
        %v4310 = vpop.permute.xlu0 %4309
        %4311 = vrot.lane.b32.xlu0 %v4216, 8
        %v4312 = vpop.permute.xlu0 %4311
        %v4345 = vsel %vm398, %v4185, %v4250
        %v4346 = vsel %vm398, %v4186, %v4252
        %v4347 = vsel %vm398, %v4187, %v4254
        %v4348 = vsel %vm398, %v4188, %v4256
        %v4349 = vsel %vm398, %v4189, %v4258
        %v4350 = vsel %vm398, %v4190, %v4260
        %v4351 = vsel %vm398, %v4191, %v4262
        %v4352 = vsel %vm398, %v4192, %v4264
        %v4353 = vsel %vm398, %v4193, %v4266
        %v4354 = vsel %vm398, %v4194, %v4268
        %v4355 = vsel %vm398, %v4195, %v4270
        %v4356 = vsel %vm398, %v4196, %v4272
        %v4357 = vsel %vm398, %v4197, %v4274
        %v4358 = vsel %vm398, %v4198, %v4276
        %v4359 = vsel %vm398, %v4199, %v4278
        %v4360 = vsel %vm398, %v4200, %v4280
        %v4361 = vsel %vm398, %v4201, %v4282
        %v4362 = vsel %vm398, %v4202, %v4284
        %v4363 = vsel %vm398, %v4203, %v4286
        %v4364 = vsel %vm398, %v4204, %v4288
        %v4365 = vsel %vm398, %v4205, %v4290
        %v4366 = vsel %vm398, %v4206, %v4292
        %v4367 = vsel %vm398, %v4207, %v4294
        %v4368 = vsel %vm398, %v4208, %v4296
        %v4369 = vsel %vm398, %v4209, %v4298
        %v4370 = vsel %vm398, %v4210, %v4300
        %v4371 = vsel %vm398, %v4211, %v4302
        %v4372 = vsel %vm398, %v4212, %v4304
        %v4373 = vsel %vm398, %v4213, %v4306
        %v4374 = vsel %vm398, %v4214, %v4308
        %v4375 = vsel %vm398, %v4215, %v4310
        %v4376 = vsel %vm398, %v4216, %v4312
        %v4377 = vrot.slane %v4349, 4
        %vm4378 = vcmask 1047556
        %v4379 = vsel %vm4378, %v4377, %v4345
        %v4380 = vrot.slane %v4345, 4
        %v4381 = vsel %vm4378, %v4349, %v4380
        %v4383 = vunpack.c.l.s4 1983009808
        %v4384 = vunpack.c.0.s8 %v4383
        %v4385 = vperm.slane %v4379, %v4384
        %v4387 = vunpack.c.l.s4 1983009808
        %v4388 = vunpack.c.0.s8 %v4387
        %v4389 = vperm.slane %v4381, %v4388
        %v4390 = vrot.slane %v4351, 4
        %v4391 = vsel %vm4378, %v4390, %v4347
        %v4392 = vrot.slane %v4347, 4
        %v4393 = vsel %vm4378, %v4351, %v4392
        %v4395 = vunpack.c.l.s4 1983009808
        %v4396 = vunpack.c.0.s8 %v4395
        %v4397 = vperm.slane %v4391, %v4396
        %v4399 = vunpack.c.l.s4 1983009808
        %v4400 = vunpack.c.0.s8 %v4399
        %v4401 = vperm.slane %v4393, %v4400
        %v4402 = vrot.slane %v4357, 4
        %v4403 = vsel %vm4378, %v4402, %v4353
        %v4404 = vrot.slane %v4353, 4
        %v4405 = vsel %vm4378, %v4357, %v4404
        %v4407 = vunpack.c.l.s4 1983009808
        %v4408 = vunpack.c.0.s8 %v4407
        %v4409 = vperm.slane %v4403, %v4408
        %v4411 = vunpack.c.l.s4 1983009808
        %v4412 = vunpack.c.0.s8 %v4411
        %v4413 = vperm.slane %v4405, %v4412
        %v4414 = vrot.slane %v4359, 4
        %v4415 = vsel %vm4378, %v4414, %v4355
        %v4416 = vrot.slane %v4355, 4
        %v4417 = vsel %vm4378, %v4359, %v4416
        %v4419 = vunpack.c.l.s4 1983009808
        %v4420 = vunpack.c.0.s8 %v4419
        %v4421 = vperm.slane %v4415, %v4420
        %v4423 = vunpack.c.l.s4 1983009808
        %v4424 = vunpack.c.0.s8 %v4423
        %v4425 = vperm.slane %v4417, %v4424
        %v4426 = vrot.slane %v4397, 4
        %v4427 = vsel %vm4378, %v4426, %v4385
        %v4428 = vrot.slane %v4385, 4
        %v4429 = vsel %vm4378, %v4397, %v4428
        %v4431 = vunpack.c.l.s4 1934713408
        %v4432 = vunpack.c.0.s8 %v4431
        %v4433 = vperm.slane %v4427, %v4432
        %v4435 = vunpack.c.l.s4 1934713408
        %v4436 = vunpack.c.0.s8 %v4435
        %v4437 = vperm.slane %v4429, %v4436
        %v4438 = vrot.slane %v4401, 4
        %v4439 = vsel %vm4378, %v4438, %v4389
        %v4440 = vrot.slane %v4389, 4
        %v4441 = vsel %vm4378, %v4401, %v4440
        %v4443 = vunpack.c.l.s4 1934713408
        %v4444 = vunpack.c.0.s8 %v4443
        %v4445 = vperm.slane %v4439, %v4444
        %v4447 = vunpack.c.l.s4 1934713408
        %v4448 = vunpack.c.0.s8 %v4447
        %v4449 = vperm.slane %v4441, %v4448
        %v4450 = vrot.slane %v4421, 4
        %v4451 = vsel %vm4378, %v4450, %v4409
        %v4452 = vrot.slane %v4409, 4
        %v4453 = vsel %vm4378, %v4421, %v4452
        %v4455 = vunpack.c.l.s4 1934713408
        %v4456 = vunpack.c.0.s8 %v4455
        %v4457 = vperm.slane %v4451, %v4456
        %v4459 = vunpack.c.l.s4 1934713408
        %v4460 = vunpack.c.0.s8 %v4459
        %v4461 = vperm.slane %v4453, %v4460
        %v4462 = vrot.slane %v4425, 4
        %v4463 = vsel %vm4378, %v4462, %v4413
        %v4464 = vrot.slane %v4413, 4
        %v4465 = vsel %vm4378, %v4425, %v4464
        %v4467 = vunpack.c.l.s4 1934713408
        %v4468 = vunpack.c.0.s8 %v4467
        %v4469 = vperm.slane %v4463, %v4468
        %v4471 = vunpack.c.l.s4 1934713408
        %v4472 = vunpack.c.0.s8 %v4471
        %v4473 = vperm.slane %v4465, %v4472
        %v4474 = vrot.slane %v4457, 4
        %v4475 = vsel %vm4378, %v4474, %v4433
        %v4476 = vrot.slane %v4433, 4
        %v4477 = vsel %vm4378, %v4457, %v4476
        %v4478 = vrot.slane %v4461, 4
        %v4479 = vsel %vm4378, %v4478, %v4437
        %v4480 = vrot.slane %v4437, 4
        %v4481 = vsel %vm4378, %v4461, %v4480
        %v4482 = vrot.slane %v4469, 4
        %v4483 = vsel %vm4378, %v4482, %v4445
        %v4484 = vrot.slane %v4445, 4
        %v4485 = vsel %vm4378, %v4469, %v4484
        %v4486 = vrot.slane %v4473, 4
        %v4487 = vsel %vm4378, %v4486, %v4449
        %v4488 = vrot.slane %v4449, 4
        %v4489 = vsel %vm4378, %v4473, %v4488
        %v4490 = vrot.slane %v4365, 4
        %v4491 = vsel %vm4378, %v4490, %v4361
        %v4492 = vrot.slane %v4361, 4
        %v4493 = vsel %vm4378, %v4365, %v4492
        %v4495 = vunpack.c.l.s4 1983009808
        %v4496 = vunpack.c.0.s8 %v4495
        %v4497 = vperm.slane %v4491, %v4496
        %v4499 = vunpack.c.l.s4 1983009808
        %v4500 = vunpack.c.0.s8 %v4499
        %v4501 = vperm.slane %v4493, %v4500
        %v4502 = vrot.slane %v4367, 4
        %v4503 = vsel %vm4378, %v4502, %v4363
        %v4504 = vrot.slane %v4363, 4
        %v4505 = vsel %vm4378, %v4367, %v4504
        %v4507 = vunpack.c.l.s4 1983009808
        %v4508 = vunpack.c.0.s8 %v4507
        %v4509 = vperm.slane %v4503, %v4508
        %v4511 = vunpack.c.l.s4 1983009808
        %v4512 = vunpack.c.0.s8 %v4511
        %v4513 = vperm.slane %v4505, %v4512
        %v4514 = vrot.slane %v4373, 4
        %v4515 = vsel %vm4378, %v4514, %v4369
        %v4516 = vrot.slane %v4369, 4
        %v4517 = vsel %vm4378, %v4373, %v4516
        %v4519 = vunpack.c.l.s4 1983009808
        %v4520 = vunpack.c.0.s8 %v4519
        %v4521 = vperm.slane %v4515, %v4520
        %v4523 = vunpack.c.l.s4 1983009808
        %v4524 = vunpack.c.0.s8 %v4523
        %v4525 = vperm.slane %v4517, %v4524
        %v4526 = vrot.slane %v4375, 4
        %v4527 = vsel %vm4378, %v4526, %v4371
        %v4528 = vrot.slane %v4371, 4
        %v4529 = vsel %vm4378, %v4375, %v4528
        %v4531 = vunpack.c.l.s4 1983009808
        %v4532 = vunpack.c.0.s8 %v4531
        %v4533 = vperm.slane %v4527, %v4532
        %v4535 = vunpack.c.l.s4 1983009808
        %v4536 = vunpack.c.0.s8 %v4535
        %v4537 = vperm.slane %v4529, %v4536
        %v4538 = vrot.slane %v4509, 4
        %v4539 = vsel %vm4378, %v4538, %v4497
        %v4540 = vrot.slane %v4497, 4
        %v4541 = vsel %vm4378, %v4509, %v4540
        %v4543 = vunpack.c.l.s4 1934713408
        %v4544 = vunpack.c.0.s8 %v4543
        %v4545 = vperm.slane %v4539, %v4544
        %v4547 = vunpack.c.l.s4 1934713408
        %v4548 = vunpack.c.0.s8 %v4547
        %v4549 = vperm.slane %v4541, %v4548
        %v4550 = vrot.slane %v4513, 4
        %v4551 = vsel %vm4378, %v4550, %v4501
        %v4552 = vrot.slane %v4501, 4
        %v4553 = vsel %vm4378, %v4513, %v4552
        %v4555 = vunpack.c.l.s4 1934713408
        %v4556 = vunpack.c.0.s8 %v4555
        %v4557 = vperm.slane %v4551, %v4556
        %v4559 = vunpack.c.l.s4 1934713408
        %v4560 = vunpack.c.0.s8 %v4559
        %v4561 = vperm.slane %v4553, %v4560
        %v4562 = vrot.slane %v4533, 4
        %v4563 = vsel %vm4378, %v4562, %v4521
        %v4564 = vrot.slane %v4521, 4
        %v4565 = vsel %vm4378, %v4533, %v4564
        %v4567 = vunpack.c.l.s4 1934713408
        %v4568 = vunpack.c.0.s8 %v4567
        %v4569 = vperm.slane %v4563, %v4568
        %v4571 = vunpack.c.l.s4 1934713408
        %v4572 = vunpack.c.0.s8 %v4571
        %v4573 = vperm.slane %v4565, %v4572
        %v4574 = vrot.slane %v4537, 4
        %v4575 = vsel %vm4378, %v4574, %v4525
        %v4576 = vrot.slane %v4525, 4
        %v4577 = vsel %vm4378, %v4537, %v4576
        %v4579 = vunpack.c.l.s4 1934713408
        %v4580 = vunpack.c.0.s8 %v4579
        %v4581 = vperm.slane %v4575, %v4580
        %v4583 = vunpack.c.l.s4 1934713408
        %v4584 = vunpack.c.0.s8 %v4583
        %v4585 = vperm.slane %v4577, %v4584
        %v4586 = vrot.slane %v4569, 4
        %v4587 = vsel %vm4378, %v4586, %v4545
        %v4588 = vrot.slane %v4545, 4
        %v4589 = vsel %vm4378, %v4569, %v4588
        %v4590 = vrot.slane %v4573, 4
        %v4591 = vsel %vm4378, %v4590, %v4549
        %v4592 = vrot.slane %v4549, 4
        %v4593 = vsel %vm4378, %v4573, %v4592
        %v4594 = vrot.slane %v4581, 4
        %v4595 = vsel %vm4378, %v4594, %v4557
        %v4596 = vrot.slane %v4557, 4
        %v4597 = vsel %vm4378, %v4581, %v4596
        %v4598 = vrot.slane %v4585, 4
        %v4599 = vsel %vm4378, %v4598, %v4561
        %v4600 = vrot.slane %v4561, 4
        %v4601 = vsel %vm4378, %v4585, %v4600
        %v4602 = vrot.slane %v4350, 4
        %v4603 = vsel %vm4378, %v4602, %v4346
        %v4604 = vrot.slane %v4346, 4
        %v4605 = vsel %vm4378, %v4350, %v4604
        %v4607 = vunpack.c.l.s4 1983009808
        %v4608 = vunpack.c.0.s8 %v4607
        %v4609 = vperm.slane %v4603, %v4608
        %v4611 = vunpack.c.l.s4 1983009808
        %v4612 = vunpack.c.0.s8 %v4611
        %v4613 = vperm.slane %v4605, %v4612
        %v4614 = vrot.slane %v4352, 4
        %v4615 = vsel %vm4378, %v4614, %v4348
        %v4616 = vrot.slane %v4348, 4
        %v4617 = vsel %vm4378, %v4352, %v4616
        %v4619 = vunpack.c.l.s4 1983009808
        %v4620 = vunpack.c.0.s8 %v4619
        %v4621 = vperm.slane %v4615, %v4620
        %v4623 = vunpack.c.l.s4 1983009808
        %v4624 = vunpack.c.0.s8 %v4623
        %v4625 = vperm.slane %v4617, %v4624
        %v4626 = vrot.slane %v4358, 4
        %v4627 = vsel %vm4378, %v4626, %v4354
        %v4628 = vrot.slane %v4354, 4
        %v4629 = vsel %vm4378, %v4358, %v4628
        %v4631 = vunpack.c.l.s4 1983009808
        %v4632 = vunpack.c.0.s8 %v4631
        %v4633 = vperm.slane %v4627, %v4632
        %v4635 = vunpack.c.l.s4 1983009808
        %v4636 = vunpack.c.0.s8 %v4635
        %v4637 = vperm.slane %v4629, %v4636
        %v4638 = vrot.slane %v4360, 4
        %v4639 = vsel %vm4378, %v4638, %v4356
        %v4640 = vrot.slane %v4356, 4
        %v4641 = vsel %vm4378, %v4360, %v4640
        %v4643 = vunpack.c.l.s4 1983009808
        %v4644 = vunpack.c.0.s8 %v4643
        %v4645 = vperm.slane %v4639, %v4644
        %v4647 = vunpack.c.l.s4 1983009808
        %v4648 = vunpack.c.0.s8 %v4647
        %v4649 = vperm.slane %v4641, %v4648
        %v4650 = vrot.slane %v4621, 4
        %v4651 = vsel %vm4378, %v4650, %v4609
        %v4652 = vrot.slane %v4609, 4
        %v4653 = vsel %vm4378, %v4621, %v4652
        %v4655 = vunpack.c.l.s4 1934713408
        %v4656 = vunpack.c.0.s8 %v4655
        %v4657 = vperm.slane %v4651, %v4656
        %v4659 = vunpack.c.l.s4 1934713408
        %v4660 = vunpack.c.0.s8 %v4659
        %v4661 = vperm.slane %v4653, %v4660
        %v4662 = vrot.slane %v4625, 4
        %v4663 = vsel %vm4378, %v4662, %v4613
        %v4664 = vrot.slane %v4613, 4
        %v4665 = vsel %vm4378, %v4625, %v4664
        %v4667 = vunpack.c.l.s4 1934713408
        %v4668 = vunpack.c.0.s8 %v4667
        %v4669 = vperm.slane %v4663, %v4668
        %v4671 = vunpack.c.l.s4 1934713408
        %v4672 = vunpack.c.0.s8 %v4671
        %v4673 = vperm.slane %v4665, %v4672
        %v4674 = vrot.slane %v4645, 4
        %v4675 = vsel %vm4378, %v4674, %v4633
        %v4676 = vrot.slane %v4633, 4
        %v4677 = vsel %vm4378, %v4645, %v4676
        %v4679 = vunpack.c.l.s4 1934713408
        %v4680 = vunpack.c.0.s8 %v4679
        %v4681 = vperm.slane %v4675, %v4680
        %v4683 = vunpack.c.l.s4 1934713408
        %v4684 = vunpack.c.0.s8 %v4683
        %v4685 = vperm.slane %v4677, %v4684
        %v4686 = vrot.slane %v4649, 4
        %v4687 = vsel %vm4378, %v4686, %v4637
        %v4688 = vrot.slane %v4637, 4
        %v4689 = vsel %vm4378, %v4649, %v4688
        %v4691 = vunpack.c.l.s4 1934713408
        %v4692 = vunpack.c.0.s8 %v4691
        %v4693 = vperm.slane %v4687, %v4692
        %v4695 = vunpack.c.l.s4 1934713408
        %v4696 = vunpack.c.0.s8 %v4695
        %v4697 = vperm.slane %v4689, %v4696
        %v4698 = vrot.slane %v4681, 4
        %v4699 = vsel %vm4378, %v4698, %v4657
        %v4700 = vrot.slane %v4657, 4
        %v4701 = vsel %vm4378, %v4681, %v4700
        %v4702 = vrot.slane %v4685, 4
        %v4703 = vsel %vm4378, %v4702, %v4661
        %v4704 = vrot.slane %v4661, 4
        %v4705 = vsel %vm4378, %v4685, %v4704
        %v4706 = vrot.slane %v4693, 4
        %v4707 = vsel %vm4378, %v4706, %v4669
        %v4708 = vrot.slane %v4669, 4
        %v4709 = vsel %vm4378, %v4693, %v4708
        %v4710 = vrot.slane %v4697, 4
        %v4711 = vsel %vm4378, %v4710, %v4673
        %v4712 = vrot.slane %v4673, 4
        %v4713 = vsel %vm4378, %v4697, %v4712
        %v4714 = vrot.slane %v4366, 4
        %v4715 = vsel %vm4378, %v4714, %v4362
        %v4716 = vrot.slane %v4362, 4
        %v4717 = vsel %vm4378, %v4366, %v4716
        %v4719 = vunpack.c.l.s4 1983009808
        %v4720 = vunpack.c.0.s8 %v4719
        %v4721 = vperm.slane %v4715, %v4720
        %v4723 = vunpack.c.l.s4 1983009808
        %v4724 = vunpack.c.0.s8 %v4723
        %v4725 = vperm.slane %v4717, %v4724
        %v4726 = vrot.slane %v4368, 4
        %v4727 = vsel %vm4378, %v4726, %v4364
        %v4728 = vrot.slane %v4364, 4
        %v4729 = vsel %vm4378, %v4368, %v4728
        %v4731 = vunpack.c.l.s4 1983009808
        %v4732 = vunpack.c.0.s8 %v4731
        %v4733 = vperm.slane %v4727, %v4732
        %v4735 = vunpack.c.l.s4 1983009808
        %v4736 = vunpack.c.0.s8 %v4735
        %v4737 = vperm.slane %v4729, %v4736
        %v4738 = vrot.slane %v4374, 4
        %v4739 = vsel %vm4378, %v4738, %v4370
        %v4740 = vrot.slane %v4370, 4
        %v4741 = vsel %vm4378, %v4374, %v4740
        %v4743 = vunpack.c.l.s4 1983009808
        %v4744 = vunpack.c.0.s8 %v4743
        %v4745 = vperm.slane %v4739, %v4744
        %v4747 = vunpack.c.l.s4 1983009808
        %v4748 = vunpack.c.0.s8 %v4747
        %v4749 = vperm.slane %v4741, %v4748
        %v4750 = vrot.slane %v4376, 4
        %v4751 = vsel %vm4378, %v4750, %v4372
        %v4752 = vrot.slane %v4372, 4
        %v4753 = vsel %vm4378, %v4376, %v4752
        %v4755 = vunpack.c.l.s4 1983009808
        %v4756 = vunpack.c.0.s8 %v4755
        %v4757 = vperm.slane %v4751, %v4756
        %v4759 = vunpack.c.l.s4 1983009808
        %v4760 = vunpack.c.0.s8 %v4759
        %v4761 = vperm.slane %v4753, %v4760
        %v4762 = vrot.slane %v4733, 4
        %v4763 = vsel %vm4378, %v4762, %v4721
        %v4764 = vrot.slane %v4721, 4
        %v4765 = vsel %vm4378, %v4733, %v4764
        %v4767 = vunpack.c.l.s4 1934713408
        %v4768 = vunpack.c.0.s8 %v4767
        %v4769 = vperm.slane %v4763, %v4768
        %v4771 = vunpack.c.l.s4 1934713408
        %v4772 = vunpack.c.0.s8 %v4771
        %v4773 = vperm.slane %v4765, %v4772
        %v4774 = vrot.slane %v4737, 4
        %v4775 = vsel %vm4378, %v4774, %v4725
        %v4776 = vrot.slane %v4725, 4
        %v4777 = vsel %vm4378, %v4737, %v4776
        %v4779 = vunpack.c.l.s4 1934713408
        %v4780 = vunpack.c.0.s8 %v4779
        %v4781 = vperm.slane %v4775, %v4780
        %v4783 = vunpack.c.l.s4 1934713408
        %v4784 = vunpack.c.0.s8 %v4783
        %v4785 = vperm.slane %v4777, %v4784
        %v4786 = vrot.slane %v4757, 4
        %v4787 = vsel %vm4378, %v4786, %v4745
        %v4788 = vrot.slane %v4745, 4
        %v4789 = vsel %vm4378, %v4757, %v4788
        %v4791 = vunpack.c.l.s4 1934713408
        %v4792 = vunpack.c.0.s8 %v4791
        %v4793 = vperm.slane %v4787, %v4792
        %v4795 = vunpack.c.l.s4 1934713408
        %v4796 = vunpack.c.0.s8 %v4795
        %v4797 = vperm.slane %v4789, %v4796
        %v4798 = vrot.slane %v4761, 4
        %v4799 = vsel %vm4378, %v4798, %v4749
        %v4800 = vrot.slane %v4749, 4
        %v4801 = vsel %vm4378, %v4761, %v4800
        %v4803 = vunpack.c.l.s4 1934713408
        %v4804 = vunpack.c.0.s8 %v4803
        %v4805 = vperm.slane %v4799, %v4804
        %v4807 = vunpack.c.l.s4 1934713408
        %v4808 = vunpack.c.0.s8 %v4807
        %v4809 = vperm.slane %v4801, %v4808
        %v4810 = vrot.slane %v4793, 4
        %v4811 = vsel %vm4378, %v4810, %v4769
        %v4812 = vrot.slane %v4769, 4
        %v4813 = vsel %vm4378, %v4793, %v4812
        %v4814 = vrot.slane %v4797, 4
        %v4815 = vsel %vm4378, %v4814, %v4773
        %v4816 = vrot.slane %v4773, 4
        %v4817 = vsel %vm4378, %v4797, %v4816
        %v4818 = vrot.slane %v4805, 4
        %v4819 = vsel %vm4378, %v4818, %v4781
        %v4820 = vrot.slane %v4781, 4
        %v4821 = vsel %vm4378, %v4805, %v4820
        %v4822 = vrot.slane %v4809, 4
        %v4823 = vsel %vm4378, %v4822, %v4785
        %v4824 = vrot.slane %v4785, 4
        %v4825 = vsel %vm4378, %v4809, %v4824
        %4828 = vrot.lane.b32.xlu0 %v4477, 16
        %v4829 = vpop.permute.xlu0 %4828
        %4830 = vrot.lane.b32.xlu0 %v4589, 16
        %v4831 = vpop.permute.xlu0 %4830
        %4836 = vrot.lane.b32.xlu0 %v4479, 32
        %v4837 = vpop.permute.xlu0 %4836
        %4838 = vrot.lane.b32.xlu0 %v4591, 32
        %v4839 = vpop.permute.xlu0 %4838
        %4844 = vrot.lane.b32.xlu0 %v4481, 48
        %v4845 = vpop.permute.xlu0 %4844
        %4846 = vrot.lane.b32.xlu0 %v4593, 48
        %v4847 = vpop.permute.xlu0 %4846
        %4852 = vrot.lane.b32.xlu0 %v4483, 64
        %v4853 = vpop.permute.xlu0 %4852
        %4854 = vrot.lane.b32.xlu0 %v4595, 64
        %v4855 = vpop.permute.xlu0 %4854
        %4860 = vrot.lane.b32.xlu0 %v4485, 80
        %v4861 = vpop.permute.xlu0 %4860
        %4862 = vrot.lane.b32.xlu0 %v4597, 80
        %v4863 = vpop.permute.xlu0 %4862
        %4868 = vrot.lane.b32.xlu0 %v4487, 96
        %v4869 = vpop.permute.xlu0 %4868
        %4870 = vrot.lane.b32.xlu0 %v4599, 96
        %v4871 = vpop.permute.xlu0 %4870
        %4876 = vrot.lane.b32.xlu0 %v4489, 112
        %v4877 = vpop.permute.xlu0 %4876
        %4878 = vrot.lane.b32.xlu0 %v4601, 112
        %v4879 = vpop.permute.xlu0 %4878
        %4884 = vrot.lane.b32.xlu0 %v4701, 16
        %v4885 = vpop.permute.xlu0 %4884
        %4886 = vrot.lane.b32.xlu0 %v4813, 16
        %v4887 = vpop.permute.xlu0 %4886
        %4892 = vrot.lane.b32.xlu0 %v4703, 32
        %v4893 = vpop.permute.xlu0 %4892
        %4894 = vrot.lane.b32.xlu0 %v4815, 32
        %v4895 = vpop.permute.xlu0 %4894
        %4900 = vrot.lane.b32.xlu0 %v4705, 48
        %v4901 = vpop.permute.xlu0 %4900
        %4902 = vrot.lane.b32.xlu0 %v4817, 48
        %v4903 = vpop.permute.xlu0 %4902
        %4908 = vrot.lane.b32.xlu0 %v4707, 64
        %v4909 = vpop.permute.xlu0 %4908
        %4910 = vrot.lane.b32.xlu0 %v4819, 64
        %v4911 = vpop.permute.xlu0 %4910
        %4916 = vrot.lane.b32.xlu0 %v4709, 80
        %v4917 = vpop.permute.xlu0 %4916
        %4918 = vrot.lane.b32.xlu0 %v4821, 80
        %v4919 = vpop.permute.xlu0 %4918
        %4924 = vrot.lane.b32.xlu0 %v4711, 96
        %v4925 = vpop.permute.xlu0 %4924
        %4926 = vrot.lane.b32.xlu0 %v4823, 96
        %v4927 = vpop.permute.xlu0 %4926
        %4932 = vrot.lane.b32.xlu0 %v4713, 112
        %v4933 = vpop.permute.xlu0 %4932
        %4934 = vrot.lane.b32.xlu0 %v4825, 112
        %v4935 = vpop.permute.xlu0 %4934
        %v4938 = vsel %vm1864, %v4475, %v4829
        %v4939 = vsel %vm1864, %v4587, %v4831
        %v4940 = vsel %vm1996, %v4938, %v4837
        %v4941 = vsel %vm1996, %v4939, %v4839
        %v4942 = vsel %vm3791, %v4940, %v4845
        %v4943 = vsel %vm3791, %v4941, %v4847
        %v4944 = vsel %vm3857, %v4942, %v4853
        %v4945 = vsel %vm3857, %v4943, %v4855
        %vm4946 = vcmask 654336
        %v4947 = vsel %vm4946, %v4944, %v4861
        %v4948 = vsel %vm4946, %v4945, %v4863
        %vm4949 = vcmask 785408
        %v4950 = vsel %vm4949, %v4947, %v4869
        %v4951 = vsel %vm4949, %v4948, %v4871
        %vm4952 = vcmask 916480
        %v4953 = vsel %vm4952, %v4950, %v4877
        %v4954 = vsel %vm4952, %v4951, %v4879
        %v4955 = vsel %vm1864, %v4699, %v4885
        %v4956 = vsel %vm1864, %v4811, %v4887
        %v4957 = vsel %vm1996, %v4955, %v4893
        %v4958 = vsel %vm1996, %v4956, %v4895
        %v4959 = vsel %vm3791, %v4957, %v4901
        %v4960 = vsel %vm3791, %v4958, %v4903
        %v4961 = vsel %vm3857, %v4959, %v4909
        %v4962 = vsel %vm3857, %v4960, %v4911
        %v4963 = vsel %vm4946, %v4961, %v4917
        %v4964 = vsel %vm4946, %v4962, %v4919
        %v4965 = vsel %vm4949, %v4963, %v4925
        %v4966 = vsel %vm4949, %v4964, %v4927
        %v4967 = vsel %vm4952, %v4965, %v4933
        %v4968 = vsel %vm4952, %v4966, %v4935
        %4969 = vst [vmem:[%s271] sm:$0xff] %v4953
        %4970 = vst [vmem:[%s271 + $0x8] sm:$0xff] %v4967
        %4971 = vst [vmem:[%s271 + $0x10] sm:$0xff] %v4953
        %4972 = vst [vmem:[%s271 + $0x18] sm:$0xff] %v4967
        %4973 = vst [vmem:[%s271 + $0x20] sm:$0xff] %v4954
        %4974 = vst [vmem:[%s271 + $0x28] sm:$0xff] %v4968
        %4975 = vst [vmem:[%s271 + $0x30] sm:$0xff] %v4954
        %4976 = vst [vmem:[%s271 + $0x38] sm:$0xff] %v4968
        %s4977 = sand.u32 %s181, 1
        %s4978 = scalar_lea.sflag [#allocation5], %s4977
        %s4979 = sand.u32 %s181, 1
        %s4980 = smul.addr %s4979, 64
        %s4981 = scalar_lea.vmem [#allocation4], %s4980
        // Predicated region
        $region49: #{tpu_custom_call.1} parent=47 // pred_check
          %p4982 = pneg %p191
        $region50: #{tpu_custom_call.1} parent=47 // pred_check_branch
          %4984 = sbr.rel (%p4982) target = $region52
        $region51: #{tpu_custom_call.1} parent=47 // pred_region
          %4986 = vsyncadd %s4978, 0
          %s4987 = smul.addr %s21, 8
          %s4988 = smul.addr %s4987, 8
          %s4989 = scalar_lea.hbm %s7, %s4988
          %s4990 = sshll.u32 %s4981, 4
          %s4991 = int_to_ptr.vmem [resolvable:$true] %s4990
          %s4992 = sshll.u32 %s4989, 4
          %s4993 = int_to_ptr.hbm [resolvable:$true] %s4992
          %4998 = dma.vmem_to_hbm [thread:$0]  %s4991, 1024, %s4993, %s4978, 512, 512, 32
        $region52: #{tpu_custom_call.1} parent=47 // pred_fallthru
          _
      $region48: #{tpu_custom_call.1} parent=5 // pred_fallthru
        _
      %p4999 = scmp.le.s32.totalorder 2, %s16
      // Predicated region
      $region53: #{tpu_custom_call.1} parent=5 // pred_check
        %p5000 = pneg %p4999
      $region54: #{tpu_custom_call.1} parent=5 // pred_check_branch
        %5002 = sbr.rel (%p5000) target = $region56
      $region55: #{tpu_custom_call.1} parent=5 // pred_region
        %s5003 = ssub.s32 %s16, 2
        // Predicated region
        $region57: #{tpu_custom_call.1} parent=55 // pred_check
          %p5004 = pneg %p197
        $region58: #{tpu_custom_call.1} parent=55 // pred_check_branch
          %5006 = sbr.rel (%p5004) target = $region60
        $region59: #{tpu_custom_call.1} parent=55 // pred_region
          %s5007 = sand.u32 %s182, 1
          %s5008 = scalar_lea.sflag [#allocation5], %s5007
          %s5009 = sand.u32 %s182, 1
          %s5010 = smul.addr %s5009, 64
          %s5011 = scalar_lea.vmem [#allocation4], %s5010
          %5013 = dma.done %s5008, 1024
        $region60: #{tpu_custom_call.1} parent=55 // pred_fallthru
          _
      $region56: #{tpu_custom_call.1} parent=5 // pred_fallthru
        _
    $region6: #{tpu_custom_call.1} parent=1 // loop_footer
      %s20 = sadd.s32 1, %s16
    $region7: #{tpu_custom_call.1} parent=1 // loop_footer_branch
      %15 = sbr.rel target = $region3
    $region8: #{tpu_custom_call.1} parent=1 // loop_exit
      _
    %5014 = vsyncpa [#allocation5], 1
    %s5015 = scalar_lea.sflag [#allocation5], 1
    %5016 = vsyncpa %s5015, 1

</llo_original>
